<compile_context>
chip_gen: v7x
topology: tpu7x:2x2x1
jax: 0.10.0
libtpu: 0.0.40
codegen_flags: <defaults>
</compile_context>

<pallas_src>
import functools

import jax
import jax.numpy as jnp
from jax import lax
from jax.experimental import pallas as pl
from jax.experimental.pallas import tpu as pltpu


# ------------------------------- helpers ----------------------------------- #

def _pick_tile(n, max_tile, align):
    """Largest divisor of n that is <= max_tile and a multiple of `align`."""
    if n <= max_tile:
        return n
    best = align
    t = align
    while t <= max_tile:
        if n % t == 0:
            best = t
        t += align
    return best


def _vmem_limit(block_nbytes):
    """Per-call scoped-VMEM request: double-buffered blocks + slack, clamped
    to v7x's 64 MiB physical VMEM."""
    need = 2 * int(block_nbytes) + (4 << 20)
    return int(min(max(need, 32 << 20), 64 << 20))


# --------------------------- tiled dense kernel ----------------------------- #
# Used for the whole-sequence input projections (x @ W_ih + b) and for the
# kl_logits head.  Grid over (M tiles, N tiles), both "parallel".

def _dense_kernel(x_ref, w_ref, b_ref, o_ref):
    o_ref[...] = (jnp.dot(x_ref[...].astype(w_ref.dtype), w_ref[...],
                          preferred_element_type=jnp.float32) + b_ref[...])


def dense(x2d, w, b, *, max_tm=512, max_tn=2048):
    M, K = x2d.shape
    N = w.shape[1]
    tm = _pick_tile(M, max_tm, 8)
    tn = _pick_tile(N, max_tn, 128)
    blk = (tm * K * x2d.dtype.itemsize + K * tn * w.dtype.itemsize
           + tn * 4 + tm * tn * 4)
    return pl.pallas_call(
        _dense_kernel,
        out_shape=jax.ShapeDtypeStruct((M, N), jnp.float32),
        grid_spec=pltpu.PrefetchScalarGridSpec(
            num_scalar_prefetch=0,
            grid=(M // tm, N // tn),
            in_specs=[
                pl.BlockSpec((tm, K), lambda i, j: (i, 0)),
                pl.BlockSpec((K, tn), lambda i, j: (0, j)),
                pl.BlockSpec((1, tn), lambda i, j: (0, j)),
            ],
            out_specs=pl.BlockSpec((tm, tn), lambda i, j: (i, j)),
        ),
        compiler_params=pltpu.CompilerParams(
            dimension_semantics=("parallel", "parallel"),
            vmem_limit_bytes=_vmem_limit(blk)),
        cost_estimate=pl.CostEstimate(
            flops=2 * M * K * N, transcendentals=0,
            bytes_accessed=int(x2d.size * x2d.dtype.itemsize
                               + w.size * w.dtype.itemsize
                               + b.size * 4 + M * N * 4)),
    )(x2d, w, b)


# ------------------------------ LSTM cell ----------------------------------- #

def _lstm_cell(xproj, h, c, whh_ref):
    """One LSTM step.  Gate column order: (i, f, o, g); bias pre-summed into
    xproj.  State/gate math stays f32; only the MXU matmul runs in bf16."""
    H = h.shape[-1]
    gates = xproj + jnp.dot(h.astype(whh_ref.dtype), whh_ref[...],
                            preferred_element_type=jnp.float32)
    sig = jax.nn.sigmoid(gates[:, :3 * H])          # one contiguous EUP slab
    g_g = jnp.tanh(gates[:, 3 * H:])
    i_g = sig[:, 0 * H:1 * H]
    f_g = sig[:, 1 * H:2 * H]
    o_g = sig[:, 2 * H:3 * H]
    c_new = f_g * c + i_g * g_g
    h_new = o_g * jnp.tanh(c_new)
    return h_new, c_new


# ---------------------------- encoder scan ---------------------------------- #

def _encoder_kernel(xproj_ref, whh_ref, h_fin_ref, c_fin_ref,
                    h_scratch, c_scratch, *, tc):
    g = pl.program_id(0)

    @pl.when(g == 0)
    def _():
        h_scratch[...] = jnp.zeros_like(h_scratch)
        c_scratch[...] = jnp.zeros_like(c_scratch)

    def step(i, carry):
        h, c = carry
        return _lstm_cell(xproj_ref[i], h, c, whh_ref)

    h, c = lax.fori_loop(0, tc, step, (h_scratch[...], c_scratch[...]),
                         unroll=True)
    h_scratch[...] = h
    c_scratch[...] = c

    # h/c only hit the output buffers (and HBM) once, on the final chunk.
    @pl.when(g == pl.num_programs(0) - 1)
    def _():
        h_fin_ref[...] = h
        c_fin_ref[...] = c


def encoder_scan(xproj, whh, *, max_chunk=64):
    S, B, G = xproj.shape
    H = whh.shape[0]
    tc = _pick_tile(S, max_chunk, 1)
    blk = tc * B * G * 4 + H * G * whh.dtype.itemsize + 2 * B * H * 4
    return pl.pallas_call(
        functools.partial(_encoder_kernel, tc=tc),
        out_shape=(jax.ShapeDtypeStruct((B, H), jnp.float32),
                   jax.ShapeDtypeStruct((B, H), jnp.float32)),
        grid_spec=pltpu.PrefetchScalarGridSpec(
            num_scalar_prefetch=0,
            grid=(S // tc,),
            in_specs=[
                pl.BlockSpec((tc, B, G), lambda g: (g, 0, 0)),   # time chunk
                pl.BlockSpec((H, G), lambda g: (0, 0)),          # resident W_hh
            ],
            out_specs=(
                pl.BlockSpec((B, H), lambda g: (0, 0)),
                pl.BlockSpec((B, H), lambda g: (0, 0)),
            ),
            scratch_shapes=[pltpu.VMEM((B, H), jnp.float32),
                            pltpu.VMEM((B, H), jnp.float32)],
        ),
        compiler_params=pltpu.CompilerParams(
            dimension_semantics=("arbitrary",),
            vmem_limit_bytes=_vmem_limit(blk)),
        cost_estimate=pl.CostEstimate(
            flops=S * (2 * B * H * G + 8 * B * H),
            transcendentals=S * 5 * B * H,
            bytes_accessed=int(xproj.size * 4
                               + whh.size * whh.dtype.itemsize
                               + 2 * B * H * 4)),
    )(xproj, whh)


# ------------------------- decoder recurrent scan --------------------------- #

def _decoder_rnn_kernel(xproj_ref, whh_ref, h0_ref, c0_ref,
                        hseq_ref, h_scratch, c_scratch, *, tc):
    g = pl.program_id(0)

    @pl.when(g == 0)
    def _():
        h_scratch[...] = h0_ref[...]          # encoder final state
        c_scratch[...] = c0_ref[...]

    def step(i, carry):
        h, c = carry
        h, c = _lstm_cell(xproj_ref[i], h, c, whh_ref)
        hseq_ref[i] = h
        return (h, c)

    h, c = lax.fori_loop(0, tc, step, (h_scratch[...], c_scratch[...]),
                         unroll=True)
    h_scratch[...] = h
    c_scratch[...] = c


def decoder_rnn_scan(xproj, whh, h0, c0, *, max_chunk=64):
    NT, B, G = xproj.shape                     # NT = T - 1
    H = whh.shape[0]
    tc = _pick_tile(NT, max_chunk, 1)
    blk = (tc * B * G * 4 + H * G * whh.dtype.itemsize
           + tc * B * H * 4 + 4 * B * H * 4)
    return pl.pallas_call(
        functools.partial(_decoder_rnn_kernel, tc=tc),
        out_shape=jax.ShapeDtypeStruct((NT, B, H), jnp.float32),
        grid_spec=pltpu.PrefetchScalarGridSpec(
            num_scalar_prefetch=0,
            grid=(NT // tc,),
            in_specs=[
                pl.BlockSpec((tc, B, G), lambda g: (g, 0, 0)),   # time chunk
                pl.BlockSpec((H, G), lambda g: (0, 0)),          # resident W_hh
                pl.BlockSpec((B, H), lambda g: (0, 0)),
                pl.BlockSpec((B, H), lambda g: (0, 0)),
            ],
            out_specs=pl.BlockSpec((tc, B, H), lambda g: (g, 0, 0)),
            scratch_shapes=[pltpu.VMEM((B, H), jnp.float32),
                            pltpu.VMEM((B, H), jnp.float32)],
        ),
        compiler_params=pltpu.CompilerParams(
            dimension_semantics=("arbitrary",),
            vmem_limit_bytes=_vmem_limit(blk)),
        cost_estimate=pl.CostEstimate(
            flops=NT * (2 * B * H * G + 8 * B * H),
            transcendentals=NT * 5 * B * H,
            bytes_accessed=int(xproj.size * 4
                               + whh.size * whh.dtype.itemsize
                               + NT * B * H * 4 + 2 * B * H * 4)),
    )(xproj, whh, h0, c0)


# ----------------- batched generator / lamda / PMI head --------------------- #
# One vocab-tiled, row-batched matmul over M = (T-1)*B rows with the lamda
# gate and PMI mix fused into the epilogue.  Grid axes are "parallel".

def _head_kernel(h_ref, genw_ref, genb_ref, lamw_ref, lamb_ref, pmi_ref,
                 out_ref):
    tt, b, hdim = h_ref.shape
    vt = genw_ref.shape[1]
    h2 = h_ref[...].reshape(tt * b, hdim)          # feed the MXU (T-1)*B rows
    # lamda gate: VPU multiply + XLU lane reduce (no N=1 MXU pass).
    lam = jax.nn.sigmoid(
        jnp.sum(h2 * lamw_ref[...], axis=-1, keepdims=True) + lamb_ref[...])
    pred = (jnp.dot(h2.astype(genw_ref.dtype), genw_ref[...],
                    preferred_element_type=jnp.float32) + genb_ref[...])
    pred = pred.reshape(tt, b, vt)
    lam = lam.reshape(tt, b, 1)
    out_ref[...] = (1.0 - lam) * pred + lam * pmi_ref[...][None]


def decoder_head(h_seq, gen_w, gen_b, lam_w, lam_b, pmi, *,
                 max_tt=64, max_tv=2048):
    NT, B, H = h_seq.shape
    V = gen_w.shape[1]
    tt = _pick_tile(NT, max_tt, 1)
    tv = _pick_tile(V, max_tv, 128)
    blk = (tt * B * H * 4 + H * tv * gen_w.dtype.itemsize + tv * 4
           + H * 4 + 4 + B * tv * 4 + tt * B * tv * 4)
    return pl.pallas_call(
        _head_kernel,
        out_shape=jax.ShapeDtypeStruct((NT, B, V), jnp.float32),
        grid_spec=pltpu.PrefetchScalarGridSpec(
            num_scalar_prefetch=0,
            grid=(NT // tt, V // tv),
            in_specs=[
                pl.BlockSpec((tt, B, H), lambda i, j: (i, 0, 0)),
                pl.BlockSpec((H, tv), lambda i, j: (0, j)),
                pl.BlockSpec((1, tv), lambda i, j: (0, j)),
                pl.BlockSpec((1, H), lambda i, j: (0, 0)),
                pl.BlockSpec((1, 1), lambda i, j: (0, 0)),
                pl.BlockSpec((B, tv), lambda i, j: (0, j)),
            ],
            out_specs=pl.BlockSpec((tt, B, tv), lambda i, j: (i, 0, j)),
        ),
        compiler_params=pltpu.CompilerParams(
            dimension_semantics=("parallel", "parallel"),
            vmem_limit_bytes=_vmem_limit(blk)),
        cost_estimate=pl.CostEstimate(
            flops=NT * B * (2 * H * V + 2 * H + 4 * V),
            transcendentals=NT * B,
            bytes_accessed=int(h_seq.size * 4
                               + gen_w.size * gen_w.dtype.itemsize
                               + gen_b.size * 4 + pmi.size * 4
                               + NT * B * V * 4)),
    )(h_seq, gen_w, gen_b, lam_w, lam_b, pmi)


# ------------------------------ model glue ---------------------------------- #

def init_params(key, src_vocab, tgt_vocab, emb_dim, hid_dim):
    ks = jax.random.split(key, 11)
    u = lambda k, shape, s: jax.random.uniform(k, shape, jnp.float32, -s, s)
    s_h = float(1.0 / (hid_dim ** 0.5))
    bf = lambda x: x.astype(jnp.bfloat16)
    # NOTE: gate column order is (i, f, o, g); combined bias = b_ih + b_hh.
    return {
        "src_embed": u(ks[0], (src_vocab, emb_dim), 0.1),
        "tgt_embed": u(ks[1], (tgt_vocab, emb_dim), 0.1),
        # encoder LSTM
        "enc_wih": bf(u(ks[2], (emb_dim, 4 * hid_dim), s_h)),
        "enc_whh": bf(u(ks[3], (hid_dim, 4 * hid_dim), s_h)),
        "enc_b":   u(ks[4], (1, 4 * hid_dim), s_h),
        # decoder LSTM
        "dec_wih": bf(u(ks[5], (emb_dim, 4 * hid_dim), s_h)),
        "dec_whh": bf(u(ks[6], (hid_dim, 4 * hid_dim), s_h)),
        "dec_b":   u(ks[7], (1, 4 * hid_dim), s_h),
        # generator: hid -> tgt_vocab
        "gen_w": bf(u(ks[8], (hid_dim, tgt_vocab), s_h)),
        "gen_b": jnp.zeros((1, tgt_vocab), jnp.float32),
        # lamda: Linear(hid, 1) -> Sigmoid  (kept f32, VPU/XLU path)
        "lam_w": u(ks[9], (1, hid_dim), s_h),
        "lam_b": jnp.zeros((1, 1), jnp.float32),
        # pred_kl_logits: Linear(enc_hid, tgt_vocab)
        "kl_w": bf(u(ks[10], (hid_dim, tgt_vocab), s_h)),
        "kl_b": jnp.zeros((1, tgt_vocab), jnp.float32),
    }


@jax.jit
def forward(params, src, src_len, tgt, pmi):
    """src: (S, B) int32, tgt: (T, B) int32, pmi: (B, V) float32.
    Returns (logits (T, B, V), kl_logits (B, V))."""
    del src_len  # TODO(synk): pack_padded_sequence masking not modeled.
    S, B = src.shape
    T, _ = tgt.shape
    E = params["src_embed"].shape[1]
    H = params["enc_whh"].shape[0]
    V = params["gen_w"].shape[1]

    # --- encode ---
    src_emb = params["src_embed"][src].astype(jnp.bfloat16)        # (S, B, E)
    enc_xproj = dense(src_emb.reshape(S * B, E),
                      params["enc_wih"],
                      params["enc_b"]).reshape(S, B, 4 * H)
    h_fin, c_fin = encoder_scan(enc_xproj, params["enc_whh"])

    # kl head on h_fin: separate vocab-tiled dense (not resident in the scan).
    kl_logits = dense(h_fin, params["kl_w"], params["kl_b"])        # (B, V)

    # --- decode (teacher_forcing_ratio == 1 -> inputs are tgt[t-1]) ---
    dec_in = tgt[:-1]                                               # (T-1, B)
    tgt_emb = params["tgt_embed"][dec_in].astype(jnp.bfloat16)      # (T-1,B,E)
    dec_xproj = dense(tgt_emb.reshape((T - 1) * B, E),
                      params["dec_wih"],
                      params["dec_b"]).reshape(T - 1, B, 4 * H)
    h_seq = decoder_rnn_scan(dec_xproj, params["dec_whh"], h_fin, c_fin)

    logits_rest = decoder_head(h_seq, params["gen_w"], params["gen_b"],
                               params["lam_w"], params["lam_b"], pmi)
    logits = jnp.concatenate(
        [jnp.zeros((1, B, V), jnp.float32), logits_rest], axis=0)   # logits[0]=0
    return logits, kl_logits


# --------------------------------- main -------------------------------------- #

if __name__ == "__main__":
    # (8,128)-aligned small shapes: B multiple of 8, E/H/V multiples of 128.
    # NOTE: raising B toward 128/256 is the biggest remaining MXU win.
    SRC_VOCAB = 128
    TGT_VOCAB = 128
    EMB = 128
    HID = 128
    SRC_LEN = 8
    TGT_LEN = 8
    BATCH = 8

    key = jax.random.PRNGKey(0)
    k_p, k_src, k_tgt, k_pmi = jax.random.split(key, 4)

    params = init_params(k_p, SRC_VOCAB, TGT_VOCAB, EMB, HID)

    src = jax.random.randint(k_src, (SRC_LEN, BATCH), 0, SRC_VOCAB, jnp.int32)
    tgt = jax.random.randint(k_tgt, (TGT_LEN, BATCH), 0, TGT_VOCAB, jnp.int32)
    src_len = jnp.full((BATCH,), SRC_LEN, jnp.int32)
    pmi = jax.random.normal(k_pmi, (BATCH, TGT_VOCAB), jnp.float32)

    logits, kl_logits = forward(params, src, src_len, tgt, pmi)
    jax.block_until_ready((logits, kl_logits))

    assert logits.shape == (TGT_LEN, BATCH, TGT_VOCAB)
    assert kl_logits.shape == (BATCH, TGT_VOCAB)
    assert bool(jnp.all(logits[0] == 0.0))
    assert bool(jnp.all(jnp.isfinite(logits))) and bool(jnp.all(jnp.isfinite(kl_logits)))
    print("KERNEL_OK")
</pallas_src>

<mosaic_0001>
module attributes {stable_mosaic.version = 11 : i64} {
  func.func @_dense_kernel(%arg0: i32, %arg1: i32, %arg2: memref<64x128xbf16, #tpu.memory_space<vmem>>, %arg3: memref<128x512xbf16, #tpu.memory_space<vmem>>, %arg4: memref<1x512xf32, #tpu.memory_space<vmem>>, %arg5: memref<64x512xf32, #tpu.memory_space<vmem>>) attributes {dimension_semantics = [#tpu.dimension_semantics<parallel>, #tpu.dimension_semantics<parallel>], iteration_bounds = array<i64: 1, 1>, scalar_prefetch = 0 : i64, scratch_operands = 0 : i64, tpu.core_type = #tpu.core_type<tc>, window_params = [{transform_indices = @transform_0, window_bounds = array<i64: 64, 128>}, {transform_indices = @transform_1, window_bounds = array<i64: 128, 512>}, {transform_indices = @transform_2, window_bounds = array<i64: 1, 512>}, {transform_indices = @transform_3, window_bounds = array<i64: 64, 512>}]} {
    %c0 = arith.constant 0 : index
    %c0_0 = arith.constant 0 : index
    %0 = vector.load %arg2[%c0, %c0_0] : memref<64x128xbf16, #tpu.memory_space<vmem>>, vector<64x128xbf16>
    %c0_1 = arith.constant 0 : index
    %c0_2 = arith.constant 0 : index
    %1 = vector.load %arg3[%c0_1, %c0_2] : memref<128x512xbf16, #tpu.memory_space<vmem>>, vector<128x512xbf16>
    %cst = arith.constant dense<0.000000e+00> : vector<64x512xf32>
    %2 = tpu.matmul %0, %1, %cst {dimension_numbers = #tpu.dot_dimension_numbers<[1], [0], [0], [1], [0, 0, 1, 1], [], []>} : vector<64x128xbf16>, vector<128x512xbf16>, vector<64x512xf32> -> vector<64x512xf32>
    %c0_3 = arith.constant 0 : index
    %c0_4 = arith.constant 0 : index
    %3 = vector.load %arg4[%c0_3, %c0_4] : memref<1x512xf32, #tpu.memory_space<vmem>>, vector<1x512xf32>
    %4 = vector.broadcast %3 : vector<1x512xf32> to vector<64x512xf32>
    %5 = arith.addf %2, %4 : vector<64x512xf32>
    %c0_5 = arith.constant 0 : index
    %c0_6 = arith.constant 0 : index
    %6 = vector.load %arg5[%c0_5, %c0_6] : memref<64x512xf32, #tpu.memory_space<vmem>>, vector<64x512xf32>
    tpu.vector_store %arg5[%c0_5, %c0_6], %5 {strides = array<i32>} : memref<64x512xf32, #tpu.memory_space<vmem>>, vector<64x512xf32>,
    return
  }
  func.func @transform_0(%arg0: i32, %arg1: i32) -> (i32, i32) {
    %c0_i32 = arith.constant 0 : i32
    %c0_i32_0 = arith.constant 0 : i32
    return %arg0, %c0_i32 : i32, i32
  }
  func.func @transform_1(%arg0: i32, %arg1: i32) -> (i32, i32) {
    %c0_i32 = arith.constant 0 : i32
    %c0_i32_0 = arith.constant 0 : i32
    return %c0_i32, %arg1 : i32, i32
  }
  func.func @transform_2(%arg0: i32, %arg1: i32) -> (i32, i32) {
    %c0_i32 = arith.constant 0 : i32
    %c0_i32_0 = arith.constant 0 : i32
    return %c0_i32, %arg1 : i32, i32
  }
  func.func @transform_3(%arg0: i32, %arg1: i32) -> (i32, i32) {
    %c0_i32 = arith.constant 0 : i32
    return %arg0, %arg1 : i32, i32
  }
}

module attributes {stable_mosaic.version = 11 : i64} {
  func.func @_encoder_kernel(%arg0: i32, %arg1: memref<8x8x512xf32, #tpu.memory_space<vmem>>, %arg2: memref<128x512xbf16, #tpu.memory_space<vmem>>, %arg3: memref<8x128xf32, #tpu.memory_space<vmem>>, %arg4: memref<8x128xf32, #tpu.memory_space<vmem>>, %arg5: memref<8x128xf32, #tpu.memory_space<vmem>>, %arg6: memref<8x128xf32, #tpu.memory_space<vmem>>) attributes {dimension_semantics = [#tpu.dimension_semantics<arbitrary>], iteration_bounds = array<i64: 1>, scalar_prefetch = 0 : i64, scratch_operands = 2 : i64, tpu.core_type = #tpu.core_type<tc>, window_params = [{transform_indices = @transform_0, window_bounds = array<i64: 8, 8, 512>}, {pipeline_mode = #tpu.pipeline_mode<synchronous>, transform_indices = @transform_1, window_bounds = array<i64: 128, 512>}, {pipeline_mode = #tpu.pipeline_mode<synchronous>, transform_indices = @transform_2, window_bounds = array<i64: 8, 128>}, {pipeline_mode = #tpu.pipeline_mode<synchronous>, transform_indices = @transform_3, window_bounds = array<i64: 8, 128>}]} {
    %c0_i32 = arith.constant 0 : i32
    %0 = arith.cmpi eq, %arg0, %c0_i32 : i32
    %1 = arith.extui %0 : i1 to i32
    %c0_i32_0 = arith.constant 0 : i32
    %2 = arith.cmpi ne, %1, %c0_i32_0 : i32
    scf.if %2 {
      %cst_58 = arith.constant 0.000000e+00 : f32
      %194 = vector.broadcast %cst_58 : f32 to vector<8x128xf32>
      %c0_59 = arith.constant 0 : index
      %c0_60 = arith.constant 0 : index
      %195 = vector.load %arg5[%c0_59, %c0_60] : memref<8x128xf32, #tpu.memory_space<vmem>>, vector<8x128xf32>
      tpu.vector_store %arg5[%c0_59, %c0_60], %194 {strides = array<i32>} : memref<8x128xf32, #tpu.memory_space<vmem>>, vector<8x128xf32>,
      %cst_61 = arith.constant 0.000000e+00 : f32
      %196 = vector.broadcast %cst_61 : f32 to vector<8x128xf32>
      %c0_62 = arith.constant 0 : index
      %c0_63 = arith.constant 0 : index
      %197 = vector.load %arg6[%c0_62, %c0_63] : memref<8x128xf32, #tpu.memory_space<vmem>>, vector<8x128xf32>
      tpu.vector_store %arg6[%c0_62, %c0_63], %196 {strides = array<i32>} : memref<8x128xf32, #tpu.memory_space<vmem>>, vector<8x128xf32>,
    } else {
    }
    %c0 = arith.constant 0 : index
    %c0_1 = arith.constant 0 : index
    %3 = vector.load %arg5[%c0, %c0_1] : memref<8x128xf32, #tpu.memory_space<vmem>>, vector<8x128xf32>
    %c0_2 = arith.constant 0 : index
    %c0_3 = arith.constant 0 : index
    %4 = vector.load %arg6[%c0_2, %c0_3] : memref<8x128xf32, #tpu.memory_space<vmem>>, vector<8x128xf32>
    %c0_i32_4 = arith.constant 0 : i32
    %5 = arith.index_cast %c0_i32_4 : i32 to index
    %c0_5 = arith.constant 0 : index
    %c0_6 = arith.constant 0 : index
    %6 = vector.load %arg1[%5, %c0_5, %c0_6] : memref<8x8x512xf32, #tpu.memory_space<vmem>>, vector<1x8x512xf32>
    %7 = vector.shape_cast %6 : vector<1x8x512xf32> to vector<8x512xf32>
    %8 = arith.truncf %3 : vector<8x128xf32> to vector<8x128xbf16>
    %c0_7 = arith.constant 0 : index
    %c0_8 = arith.constant 0 : index
    %9 = vector.load %arg2[%c0_7, %c0_8] : memref<128x512xbf16, #tpu.memory_space<vmem>>, vector<128x512xbf16>
    %cst = arith.constant dense<0.000000e+00> : vector<8x512xf32>
    %10 = tpu.matmul %8, %9, %cst {dimension_numbers = #tpu.dot_dimension_numbers<[1], [0], [0], [1], [0, 0, 1, 1], [], []>} : vector<8x128xbf16>, vector<128x512xbf16>, vector<8x512xf32> -> vector<8x512xf32>
    %11 = arith.addf %7, %10 : vector<8x512xf32>
    %12 = vector.extract_strided_slice %11 {offsets = [0, 0], sizes = [8, 384], strides = [1, 1]} : vector<8x512xf32> to vector<8x384xf32>
    %13 = arith.negf %12 : vector<8x384xf32>
    %14 = math.exp %13 : vector<8x384xf32>
    %cst_9 = arith.constant 1.000000e+00 : f32
    %15 = vector.broadcast %cst_9 : f32 to vector<8x384xf32>
    %16 = arith.addf %15, %14 : vector<8x384xf32>
    %17 = arith.divf %15, %16 : vector<8x384xf32>
    %18 = vector.extract_strided_slice %11 {offsets = [0, 384], sizes = [8, 128], strides = [1, 1]} : vector<8x512xf32> to vector<8x128xf32>
    %19 = math.tanh %18 : vector<8x128xf32>
    %20 = vector.extract_strided_slice %17 {offsets = [0, 0], sizes = [8, 128], strides = [1, 1]} : vector<8x384xf32> to vector<8x128xf32>
    %21 = vector.extract_strided_slice %17 {offsets = [0, 128], sizes = [8, 128], strides = [1, 1]} : vector<8x384xf32> to vector<8x128xf32>
    %22 = vector.extract_strided_slice %17 {offsets = [0, 256], sizes = [8, 128], strides = [1, 1]} : vector<8x384xf32> to vector<8x128xf32>
    %23 = arith.mulf %21, %4 : vector<8x128xf32>
    %24 = arith.mulf %20, %19 : vector<8x128xf32>
    %25 = arith.addf %23, %24 : vector<8x128xf32>
    %26 = math.tanh %25 : vector<8x128xf32>
    %27 = arith.mulf %22, %26 : vector<8x128xf32>
    %c1_i32 = arith.constant 1 : i32
    %28 = arith.index_cast %c1_i32 : i32 to index
    %c0_10 = arith.constant 0 : index
    %c0_11 = arith.constant 0 : index
    %29 = vector.load %arg1[%28, %c0_10, %c0_11] : memref<8x8x512xf32, #tpu.memory_space<vmem>>, vector<1x8x512xf32>
    %30 = vector.shape_cast %29 : vector<1x8x512xf32> to vector<8x512xf32>
    %31 = arith.truncf %27 : vector<8x128xf32> to vector<8x128xbf16>
    %c0_12 = arith.constant 0 : index
    %c0_13 = arith.constant 0 : index
    %32 = vector.load %arg2[%c0_12, %c0_13] : memref<128x512xbf16, #tpu.memory_space<vmem>>, vector<128x512xbf16>
    %cst_14 = arith.constant dense<0.000000e+00> : vector<8x512xf32>
    %33 = tpu.matmul %31, %32, %cst_14 {dimension_numbers = #tpu.dot_dimension_numbers<[1], [0], [0], [1], [0, 0, 1, 1], [], []>} : vector<8x128xbf16>, vector<128x512xbf16>, vector<8x512xf32> -> vector<8x512xf32>
    %34 = arith.addf %30, %33 : vector<8x512xf32>
    %35 = vector.extract_strided_slice %34 {offsets = [0, 0], sizes = [8, 384], strides = [1, 1]} : vector<8x512xf32> to vector<8x384xf32>
    %36 = arith.negf %35 : vector<8x384xf32>
    %37 = math.exp %36 : vector<8x384xf32>
    %cst_15 = arith.constant 1.000000e+00 : f32
    %38 = vector.broadcast %cst_15 : f32 to vector<8x384xf32>
    %39 = arith.addf %38, %37 : vector<8x384xf32>
    %40 = arith.divf %38, %39 : vector<8x384xf32>
    %41 = vector.extract_strided_slice %34 {offsets = [0, 384], sizes = [8, 128], strides = [1, 1]} : vector<8x512xf32> to vector<8x128xf32>
    %42 = math.tanh %41 : vector<8x128xf32>
    %43 = vector.extract_strided_slice %40 {offsets = [0, 0], sizes = [8, 128], strides = [1, 1]} : vector<8x384xf32> to vector<8x128xf32>
    %44 = vector.extract_strided_slice %40 {offsets = [0, 128], sizes = [8, 128], strides = [1, 1]} : vector<8x384xf32> to vector<8x128xf32>
    %45 = vector.extract_strided_slice %40 {offsets = [0, 256], sizes = [8, 128], strides = [1, 1]} : vector<8x384xf32> to vector<8x128xf32>
    %46 = arith.mulf %44, %25 : vector<8x128xf32>
    %47 = arith.mulf %43, %42 : vector<8x128xf32>
    %48 = arith.addf %46, %47 : vector<8x128xf32>
    %49 = math.tanh %48 : vector<8x128xf32>
    %50 = arith.mulf %45, %49 : vector<8x128xf32>
    %c2_i32 = arith.constant 2 : i32
    %51 = arith.index_cast %c2_i32 : i32 to index
    %c0_16 = arith.constant 0 : index
    %c0_17 = arith.constant 0 : index
    %52 = vector.load %arg1[%51, %c0_16, %c0_17] : memref<8x8x512xf32, #tpu.memory_space<vmem>>, vector<1x8x512xf32>
    %53 = vector.shape_cast %52 : vector<1x8x512xf32> to vector<8x512xf32>
    %54 = arith.truncf %50 : vector<8x128xf32> to vector<8x128xbf16>
    %c0_18 = arith.constant 0 : index
    %c0_19 = arith.constant 0 : index
    %55 = vector.load %arg2[%c0_18, %c0_19] : memref<128x512xbf16, #tpu.memory_space<vmem>>, vector<128x512xbf16>
    %cst_20 = arith.constant dense<0.000000e+00> : vector<8x512xf32>
    %56 = tpu.matmul %54, %55, %cst_20 {dimension_numbers = #tpu.dot_dimension_numbers<[1], [0], [0], [1], [0, 0, 1, 1], [], []>} : vector<8x128xbf16>, vector<128x512xbf16>, vector<8x512xf32> -> vector<8x512xf32>
    %57 = arith.addf %53, %56 : vector<8x512xf32>
    %58 = vector.extract_strided_slice %57 {offsets = [0, 0], sizes = [8, 384], strides = [1, 1]} : vector<8x512xf32> to vector<8x384xf32>
    %59 = arith.negf %58 : vector<8x384xf32>
    %60 = math.exp %59 : vector<8x384xf32>
    %cst_21 = arith.constant 1.000000e+00 : f32
    %61 = vector.broadcast %cst_21 : f32 to vector<8x384xf32>
    %62 = arith.addf %61, %60 : vector<8x384xf32>
    %63 = arith.divf %61, %62 : vector<8x384xf32>
    %64 = vector.extract_strided_slice %57 {offsets = [0, 384], sizes = [8, 128], strides = [1, 1]} : vector<8x512xf32> to vector<8x128xf32>
    %65 = math.tanh %64 : vector<8x128xf32>
    %66 = vector.extract_strided_slice %63 {offsets = [0, 0], sizes = [8, 128], strides = [1, 1]} : vector<8x384xf32> to vector<8x128xf32>
    %67 = vector.extract_strided_slice %63 {offsets = [0, 128], sizes = [8, 128], strides = [1, 1]} : vector<8x384xf32> to vector<8x128xf32>
    %68 = vector.extract_strided_slice %63 {offsets = [0, 256], sizes = [8, 128], strides = [1, 1]} : vector<8x384xf32> to vector<8x128xf32>
    %69 = arith.mulf %67, %48 : vector<8x128xf32>
    %70 = arith.mulf %66, %65 : vector<8x128xf32>
    %71 = arith.addf %69, %70 : vector<8x128xf32>
    %72 = math.tanh %71 : vector<8x128xf32>
    %73 = arith.mulf %68, %72 : vector<8x128xf32>
    %c3_i32 = arith.constant 3 : i32
    %74 = arith.index_cast %c3_i32 : i32 to index
    %c0_22 = arith.constant 0 : index
    %c0_23 = arith.constant 0 : index
    %75 = vector.load %arg1[%74, %c0_22, %c0_23] : memref<8x8x512xf32, #tpu.memory_space<vmem>>, vector<1x8x512xf32>
    %76 = vector.shape_cast %75 : vector<1x8x512xf32> to vector<8x512xf32>
    %77 = arith.truncf %73 : vector<8x128xf32> to vector<8x128xbf16>
    %c0_24 = arith.constant 0 : index
    %c0_25 = arith.constant 0 : index
    %78 = vector.load %arg2[%c0_24, %c0_25] : memref<128x512xbf16, #tpu.memory_space<vmem>>, vector<128x512xbf16>
    %cst_26 = arith.constant dense<0.000000e+00> : vector<8x512xf32>
    %79 = tpu.matmul %77, %78, %cst_26 {dimension_numbers = #tpu.dot_dimension_numbers<[1], [0], [0], [1], [0, 0, 1, 1], [], []>} : vector<8x128xbf16>, vector<128x512xbf16>, vector<8x512xf32> -> vector<8x512xf32>
    %80 = arith.addf %76, %79 : vector<8x512xf32>
    %81 = vector.extract_strided_slice %80 {offsets = [0, 0], sizes = [8, 384], strides = [1, 1]} : vector<8x512xf32> to vector<8x384xf32>
    %82 = arith.negf %81 : vector<8x384xf32>
    %83 = math.exp %82 : vector<8x384xf32>
    %cst_27 = arith.constant 1.000000e+00 : f32
    %84 = vector.broadcast %cst_27 : f32 to vector<8x384xf32>
    %85 = arith.addf %84, %83 : vector<8x384xf32>
    %86 = arith.divf %84, %85 : vector<8x384xf32>
    %87 = vector.extract_strided_slice %80 {offsets = [0, 384], sizes = [8, 128], strides = [1, 1]} : vector<8x512xf32> to vector<8x128xf32>
    %88 = math.tanh %87 : vector<8x128xf32>
    %89 = vector.extract_strided_slice %86 {offsets = [0, 0], sizes = [8, 128], strides = [1, 1]} : vector<8x384xf32> to vector<8x128xf32>
    %90 = vector.extract_strided_slice %86 {offsets = [0, 128], sizes = [8, 128], strides = [1, 1]} : vector<8x384xf32> to vector<8x128xf32>
    %91 = vector.extract_strided_slice %86 {offsets = [0, 256], sizes = [8, 128], strides = [1, 1]} : vector<8x384xf32> to vector<8x128xf32>
    %92 = arith.mulf %90, %71 : vector<8x128xf32>
    %93 = arith.mulf %89, %88 : vector<8x128xf32>
    %94 = arith.addf %92, %93 : vector<8x128xf32>
    %95 = math.tanh %94 : vector<8x128xf32>
    %96 = arith.mulf %91, %95 : vector<8x128xf32>
    %c4_i32 = arith.constant 4 : i32
    %97 = arith.index_cast %c4_i32 : i32 to index
    %c0_28 = arith.constant 0 : index
    %c0_29 = arith.constant 0 : index
    %98 = vector.load %arg1[%97, %c0_28, %c0_29] : memref<8x8x512xf32, #tpu.memory_space<vmem>>, vector<1x8x512xf32>
    %99 = vector.shape_cast %98 : vector<1x8x512xf32> to vector<8x512xf32>
    %100 = arith.truncf %96 : vector<8x128xf32> to vector<8x128xbf16>
    %c0_30 = arith.constant 0 : index
    %c0_31 = arith.constant 0 : index
    %101 = vector.load %arg2[%c0_30, %c0_31] : memref<128x512xbf16, #tpu.memory_space<vmem>>, vector<128x512xbf16>
    %cst_32 = arith.constant dense<0.000000e+00> : vector<8x512xf32>
    %102 = tpu.matmul %100, %101, %cst_32 {dimension_numbers = #tpu.dot_dimension_numbers<[1], [0], [0], [1], [0, 0, 1, 1], [], []>} : vector<8x128xbf16>, vector<128x512xbf16>, vector<8x512xf32> -> vector<8x512xf32>
    %103 = arith.addf %99, %102 : vector<8x512xf32>
    %104 = vector.extract_strided_slice %103 {offsets = [0, 0], sizes = [8, 384], strides = [1, 1]} : vector<8x512xf32> to vector<8x384xf32>
    %105 = arith.negf %104 : vector<8x384xf32>
    %106 = math.exp %105 : vector<8x384xf32>
    %cst_33 = arith.constant 1.000000e+00 : f32
    %107 = vector.broadcast %cst_33 : f32 to vector<8x384xf32>
    %108 = arith.addf %107, %106 : vector<8x384xf32>
    %109 = arith.divf %107, %108 : vector<8x384xf32>
    %110 = vector.extract_strided_slice %103 {offsets = [0, 384], sizes = [8, 128], strides = [1, 1]} : vector<8x512xf32> to vector<8x128xf32>
    %111 = math.tanh %110 : vector<8x128xf32>
    %112 = vector.extract_strided_slice %109 {offsets = [0, 0], sizes = [8, 128], strides = [1, 1]} : vector<8x384xf32> to vector<8x128xf32>
    %113 = vector.extract_strided_slice %109 {offsets = [0, 128], sizes = [8, 128], strides = [1, 1]} : vector<8x384xf32> to vector<8x128xf32>
    %114 = vector.extract_strided_slice %109 {offsets = [0, 256], sizes = [8, 128], strides = [1, 1]} : vector<8x384xf32> to vector<8x128xf32>
    %115 = arith.mulf %113, %94 : vector<8x128xf32>
    %116 = arith.mulf %112, %111 : vector<8x128xf32>
    %117 = arith.addf %115, %116 : vector<8x128xf32>
    %118 = math.tanh %117 : vector<8x128xf32>
    %119 = arith.mulf %114, %118 : vector<8x128xf32>
    %c5_i32 = arith.constant 5 : i32
    %120 = arith.index_cast %c5_i32 : i32 to index
    %c0_34 = arith.constant 0 : index
    %c0_35 = arith.constant 0 : index
    %121 = vector.load %arg1[%120, %c0_34, %c0_35] : memref<8x8x512xf32, #tpu.memory_space<vmem>>, vector<1x8x512xf32>
    %122 = vector.shape_cast %121 : vector<1x8x512xf32> to vector<8x512xf32>
    %123 = arith.truncf %119 : vector<8x128xf32> to vector<8x128xbf16>
    %c0_36 = arith.constant 0 : index
    %c0_37 = arith.constant 0 : index
    %124 = vector.load %arg2[%c0_36, %c0_37] : memref<128x512xbf16, #tpu.memory_space<vmem>>, vector<128x512xbf16>
    %cst_38 = arith.constant dense<0.000000e+00> : vector<8x512xf32>
    %125 = tpu.matmul %123, %124, %cst_38 {dimension_numbers = #tpu.dot_dimension_numbers<[1], [0], [0], [1], [0, 0, 1, 1], [], []>} : vector<8x128xbf16>, vector<128x512xbf16>, vector<8x512xf32> -> vector<8x512xf32>
    %126 = arith.addf %122, %125 : vector<8x512xf32>
    %127 = vector.extract_strided_slice %126 {offsets = [0, 0], sizes = [8, 384], strides = [1, 1]} : vector<8x512xf32> to vector<8x384xf32>
    %128 = arith.negf %127 : vector<8x384xf32>
    %129 = math.exp %128 : vector<8x384xf32>
    %cst_39 = arith.constant 1.000000e+00 : f32
    %130 = vector.broadcast %cst_39 : f32 to vector<8x384xf32>
    %131 = arith.addf %130, %129 : vector<8x384xf32>
    %132 = arith.divf %130, %131 : vector<8x384xf32>
    %133 = vector.extract_strided_slice %126 {offsets = [0, 384], sizes = [8, 128], strides = [1, 1]} : vector<8x512xf32> to vector<8x128xf32>
    %134 = math.tanh %133 : vector<8x128xf32>
    %135 = vector.extract_strided_slice %132 {offsets = [0, 0], sizes = [8, 128], strides = [1, 1]} : vector<8x384xf32> to vector<8x128xf32>
    %136 = vector.extract_strided_slice %132 {offsets = [0, 128], sizes = [8, 128], strides = [1, 1]} : vector<8x384xf32> to vector<8x128xf32>
    %137 = vector.extract_strided_slice %132 {offsets = [0, 256], sizes = [8, 128], strides = [1, 1]} : vector<8x384xf32> to vector<8x128xf32>
    %138 = arith.mulf %136, %117 : vector<8x128xf32>
    %139 = arith.mulf %135, %134 : vector<8x128xf32>
    %140 = arith.addf %138, %139 : vector<8x128xf32>
    %141 = math.tanh %140 : vector<8x128xf32>
    %142 = arith.mulf %137, %141 : vector<8x128xf32>
    %c6_i32 = arith.constant 6 : i32
    %143 = arith.index_cast %c6_i32 : i32 to index
    %c0_40 = arith.constant 0 : index
    %c0_41 = arith.constant 0 : index
    %144 = vector.load %arg1[%143, %c0_40, %c0_41] : memref<8x8x512xf32, #tpu.memory_space<vmem>>, vector<1x8x512xf32>
    %145 = vector.shape_cast %144 : vector<1x8x512xf32> to vector<8x512xf32>
    %146 = arith.truncf %142 : vector<8x128xf32> to vector<8x128xbf16>
    %c0_42 = arith.constant 0 : index
    %c0_43 = arith.constant 0 : index
    %147 = vector.load %arg2[%c0_42, %c0_43] : memref<128x512xbf16, #tpu.memory_space<vmem>>, vector<128x512xbf16>
    %cst_44 = arith.constant dense<0.000000e+00> : vector<8x512xf32>
    %148 = tpu.matmul %146, %147, %cst_44 {dimension_numbers = #tpu.dot_dimension_numbers<[1], [0], [0], [1], [0, 0, 1, 1], [], []>} : vector<8x128xbf16>, vector<128x512xbf16>, vector<8x512xf32> -> vector<8x512xf32>
    %149 = arith.addf %145, %148 : vector<8x512xf32>
    %150 = vector.extract_strided_slice %149 {offsets = [0, 0], sizes = [8, 384], strides = [1, 1]} : vector<8x512xf32> to vector<8x384xf32>
    %151 = arith.negf %150 : vector<8x384xf32>
    %152 = math.exp %151 : vector<8x384xf32>
    %cst_45 = arith.constant 1.000000e+00 : f32
    %153 = vector.broadcast %cst_45 : f32 to vector<8x384xf32>
    %154 = arith.addf %153, %152 : vector<8x384xf32>
    %155 = arith.divf %153, %154 : vector<8x384xf32>
    %156 = vector.extract_strided_slice %149 {offsets = [0, 384], sizes = [8, 128], strides = [1, 1]} : vector<8x512xf32> to vector<8x128xf32>
    %157 = math.tanh %156 : vector<8x128xf32>
    %158 = vector.extract_strided_slice %155 {offsets = [0, 0], sizes = [8, 128], strides = [1, 1]} : vector<8x384xf32> to vector<8x128xf32>
    %159 = vector.extract_strided_slice %155 {offsets = [0, 128], sizes = [8, 128], strides = [1, 1]} : vector<8x384xf32> to vector<8x128xf32>
    %160 = vector.extract_strided_slice %155 {offsets = [0, 256], sizes = [8, 128], strides = [1, 1]} : vector<8x384xf32> to vector<8x128xf32>
    %161 = arith.mulf %159, %140 : vector<8x128xf32>
    %162 = arith.mulf %158, %157 : vector<8x128xf32>
    %163 = arith.addf %161, %162 : vector<8x128xf32>
    %164 = math.tanh %163 : vector<8x128xf32>
    %165 = arith.mulf %160, %164 : vector<8x128xf32>
    %c7_i32 = arith.constant 7 : i32
    %166 = arith.index_cast %c7_i32 : i32 to index
    %c0_46 = arith.constant 0 : index
    %c0_47 = arith.constant 0 : index
    %167 = vector.load %arg1[%166, %c0_46, %c0_47] : memref<8x8x512xf32, #tpu.memory_space<vmem>>, vector<1x8x512xf32>
    %168 = vector.shape_cast %167 : vector<1x8x512xf32> to vector<8x512xf32>
    %169 = arith.truncf %165 : vector<8x128xf32> to vector<8x128xbf16>
    %c0_48 = arith.constant 0 : index
    %c0_49 = arith.constant 0 : index
    %170 = vector.load %arg2[%c0_48, %c0_49] : memref<128x512xbf16, #tpu.memory_space<vmem>>, vector<128x512xbf16>
    %cst_50 = arith.constant dense<0.000000e+00> : vector<8x512xf32>
    %171 = tpu.matmul %169, %170, %cst_50 {dimension_numbers = #tpu.dot_dimension_numbers<[1], [0], [0], [1], [0, 0, 1, 1], [], []>} : vector<8x128xbf16>, vector<128x512xbf16>, vector<8x512xf32> -> vector<8x512xf32>
    %172 = arith.addf %168, %171 : vector<8x512xf32>
    %173 = vector.extract_strided_slice %172 {offsets = [0, 0], sizes = [8, 384], strides = [1, 1]} : vector<8x512xf32> to vector<8x384xf32>
    %174 = arith.negf %173 : vector<8x384xf32>
    %175 = math.exp %174 : vector<8x384xf32>
    %cst_51 = arith.constant 1.000000e+00 : f32
    %176 = vector.broadcast %cst_51 : f32 to vector<8x384xf32>
    %177 = arith.addf %176, %175 : vector<8x384xf32>
    %178 = arith.divf %176, %177 : vector<8x384xf32>
    %179 = vector.extract_strided_slice %172 {offsets = [0, 384], sizes = [8, 128], strides = [1, 1]} : vector<8x512xf32> to vector<8x128xf32>
    %180 = math.tanh %179 : vector<8x128xf32>
    %181 = vector.extract_strided_slice %178 {offsets = [0, 0], sizes = [8, 128], strides = [1, 1]} : vector<8x384xf32> to vector<8x128xf32>
    %182 = vector.extract_strided_slice %178 {offsets = [0, 128], sizes = [8, 128], strides = [1, 1]} : vector<8x384xf32> to vector<8x128xf32>
    %183 = vector.extract_strided_slice %178 {offsets = [0, 256], sizes = [8, 128], strides = [1, 1]} : vector<8x384xf32> to vector<8x128xf32>
    %184 = arith.mulf %182, %163 : vector<8x128xf32>
    %185 = arith.mulf %181, %180 : vector<8x128xf32>
    %186 = arith.addf %184, %185 : vector<8x128xf32>
    %187 = math.tanh %186 : vector<8x128xf32>
    %188 = arith.mulf %183, %187 : vector<8x128xf32>
    %c8_i32 = arith.constant 8 : i32
    %c0_52 = arith.constant 0 : index
    %c0_53 = arith.constant 0 : index
    %189 = vector.load %arg5[%c0_52, %c0_53] : memref<8x128xf32, #tpu.memory_space<vmem>>, vector<8x128xf32>
    tpu.vector_store %arg5[%c0_52, %c0_53], %188 {strides = array<i32>} : memref<8x128xf32, #tpu.memory_space<vmem>>, vector<8x128xf32>,
    %c0_54 = arith.constant 0 : index
    %c0_55 = arith.constant 0 : index
    %190 = vector.load %arg6[%c0_54, %c0_55] : memref<8x128xf32, #tpu.memory_space<vmem>>, vector<8x128xf32>
    tpu.vector_store %arg6[%c0_54, %c0_55], %186 {strides = array<i32>} : memref<8x128xf32, #tpu.memory_space<vmem>>, vector<8x128xf32>,
    %c0_i32_56 = arith.constant 0 : i32
    %191 = arith.cmpi eq, %arg0, %c0_i32_56 : i32
    %192 = arith.extui %191 : i1 to i32
    %c0_i32_57 = arith.constant 0 : i32
    %193 = arith.cmpi ne, %192, %c0_i32_57 : i32
    scf.if %193 {
      %c0_58 = arith.constant 0 : index
      %c0_59 = arith.constant 0 : index
      %194 = vector.load %arg3[%c0_58, %c0_59] : memref<8x128xf32, #tpu.memory_space<vmem>>, vector<8x128xf32>
      tpu.vector_store %arg3[%c0_58, %c0_59], %188 {strides = array<i32>} : memref<8x128xf32, #tpu.memory_space<vmem>>, vector<8x128xf32>,
      %c0_60 = arith.constant 0 : index
      %c0_61 = arith.constant 0 : index
      %195 = vector.load %arg4[%c0_60, %c0_61] : memref<8x128xf32, #tpu.memory_space<vmem>>, vector<8x128xf32>
      tpu.vector_store %arg4[%c0_60, %c0_61], %186 {strides = array<i32>} : memref<8x128xf32, #tpu.memory_space<vmem>>, vector<8x128xf32>,
    } else {
    }
    return
  }
  func.func @transform_0(%arg0: i32) -> (i32, i32, i32) {
    %c0_i32 = arith.constant 0 : i32
    %c0_i32_0 = arith.constant 0 : i32
    %c0_i32_1 = arith.constant 0 : i32
    return %arg0, %c0_i32, %c0_i32_0 : i32, i32, i32
  }
  func.func @transform_1(%arg0: i32) -> (i32, i32) {
    %c0_i32 = arith.constant 0 : i32
    %c0_i32_0 = arith.constant 0 : i32
    %c0_i32_1 = arith.constant 0 : i32
    return %c0_i32, %c0_i32_0 : i32, i32
  }
  func.func @transform_2(%arg0: i32) -> (i32, i32) {
    %c0_i32 = arith.constant 0 : i32
    %c0_i32_0 = arith.constant 0 : i32
    %c0_i32_1 = arith.constant 0 : i32
    return %c0_i32, %c0_i32_0 : i32, i32
  }
  func.func @transform_3(%arg0: i32) -> (i32, i32) {
    %c0_i32 = arith.constant 0 : i32
    %c0_i32_0 = arith.constant 0 : i32
    %c0_i32_1 = arith.constant 0 : i32
    return %c0_i32, %c0_i32_0 : i32, i32
  }
}

module attributes {stable_mosaic.version = 11 : i64} {
  func.func @_dense_kernel(%arg0: i32, %arg1: i32, %arg2: memref<56x128xbf16, #tpu.memory_space<vmem>>, %arg3: memref<128x512xbf16, #tpu.memory_space<vmem>>, %arg4: memref<1x512xf32, #tpu.memory_space<vmem>>, %arg5: memref<56x512xf32, #tpu.memory_space<vmem>>) attributes {dimension_semantics = [#tpu.dimension_semantics<parallel>, #tpu.dimension_semantics<parallel>], iteration_bounds = array<i64: 1, 1>, scalar_prefetch = 0 : i64, scratch_operands = 0 : i64, tpu.core_type = #tpu.core_type<tc>, window_params = [{transform_indices = @transform_0, window_bounds = array<i64: 56, 128>}, {transform_indices = @transform_1, window_bounds = array<i64: 128, 512>}, {transform_indices = @transform_2, window_bounds = array<i64: 1, 512>}, {transform_indices = @transform_3, window_bounds = array<i64: 56, 512>}]} {
    %c0 = arith.constant 0 : index
    %c0_0 = arith.constant 0 : index
    %0 = vector.load %arg2[%c0, %c0_0] : memref<56x128xbf16, #tpu.memory_space<vmem>>, vector<56x128xbf16>
    %c0_1 = arith.constant 0 : index
    %c0_2 = arith.constant 0 : index
    %1 = vector.load %arg3[%c0_1, %c0_2] : memref<128x512xbf16, #tpu.memory_space<vmem>>, vector<128x512xbf16>
    %cst = arith.constant dense<0.000000e+00> : vector<56x512xf32>
    %2 = tpu.matmul %0, %1, %cst {dimension_numbers = #tpu.dot_dimension_numbers<[1], [0], [0], [1], [0, 0, 1, 1], [], []>} : vector<56x128xbf16>, vector<128x512xbf16>, vector<56x512xf32> -> vector<56x512xf32>
    %c0_3 = arith.constant 0 : index
    %c0_4 = arith.constant 0 : index
    %3 = vector.load %arg4[%c0_3, %c0_4] : memref<1x512xf32, #tpu.memory_space<vmem>>, vector<1x512xf32>
    %4 = vector.broadcast %3 : vector<1x512xf32> to vector<56x512xf32>
    %5 = arith.addf %2, %4 : vector<56x512xf32>
    %c0_5 = arith.constant 0 : index
    %c0_6 = arith.constant 0 : index
    %6 = vector.load %arg5[%c0_5, %c0_6] : memref<56x512xf32, #tpu.memory_space<vmem>>, vector<56x512xf32>
    tpu.vector_store %arg5[%c0_5, %c0_6], %5 {strides = array<i32>} : memref<56x512xf32, #tpu.memory_space<vmem>>, vector<56x512xf32>,
    return
  }
  func.func @transform_0(%arg0: i32, %arg1: i32) -> (i32, i32) {
    %c0_i32 = arith.constant 0 : i32
    %c0_i32_0 = arith.constant 0 : i32
    return %arg0, %c0_i32 : i32, i32
  }
  func.func @transform_1(%arg0: i32, %arg1: i32) -> (i32, i32) {
    %c0_i32 = arith.constant 0 : i32
    %c0_i32_0 = arith.constant 0 : i32
    return %c0_i32, %arg1 : i32, i32
  }
  func.func @transform_2(%arg0: i32, %arg1: i32) -> (i32, i32) {
    %c0_i32 = arith.constant 0 : i32
    %c0_i32_0 = arith.constant 0 : i32
    return %c0_i32, %arg1 : i32, i32
  }
  func.func @transform_3(%arg0: i32, %arg1: i32) -> (i32, i32) {
    %c0_i32 = arith.constant 0 : i32
    return %arg0, %arg1 : i32, i32
  }
}

module attributes {stable_mosaic.version = 11 : i64} {
  func.func @_decoder_rnn_kernel(%arg0: i32, %arg1: memref<7x8x512xf32, #tpu.memory_space<vmem>>, %arg2: memref<128x512xbf16, #tpu.memory_space<vmem>>, %arg3: memref<8x128xf32, #tpu.memory_space<vmem>>, %arg4: memref<8x128xf32, #tpu.memory_space<vmem>>, %arg5: memref<7x8x128xf32, #tpu.memory_space<vmem>>, %arg6: memref<8x128xf32, #tpu.memory_space<vmem>>, %arg7: memref<8x128xf32, #tpu.memory_space<vmem>>) attributes {dimension_semantics = [#tpu.dimension_semantics<arbitrary>], iteration_bounds = array<i64: 1>, scalar_prefetch = 0 : i64, scratch_operands = 2 : i64, tpu.core_type = #tpu.core_type<tc>, window_params = [{transform_indices = @transform_0, window_bounds = array<i64: 7, 8, 512>}, {pipeline_mode = #tpu.pipeline_mode<synchronous>, transform_indices = @transform_1, window_bounds = array<i64: 128, 512>}, {pipeline_mode = #tpu.pipeline_mode<synchronous>, transform_indices = @transform_2, window_bounds = array<i64: 8, 128>}, {pipeline_mode = #tpu.pipeline_mode<synchronous>, transform_indices = @transform_3, window_bounds = array<i64: 8, 128>}, {transform_indices = @transform_4, window_bounds = array<i64: 7, 8, 128>}]} {
    %c0_i32 = arith.constant 0 : i32
    %0 = arith.cmpi eq, %arg0, %c0_i32 : i32
    %1 = arith.extui %0 : i1 to i32
    %c0_i32_0 = arith.constant 0 : i32
    %2 = arith.cmpi ne, %1, %c0_i32_0 : i32
    scf.if %2 {
      %c0_64 = arith.constant 0 : index
      %c0_65 = arith.constant 0 : index
      %196 = vector.load %arg3[%c0_64, %c0_65] : memref<8x128xf32, #tpu.memory_space<vmem>>, vector<8x128xf32>
      %c0_66 = arith.constant 0 : index
      %c0_67 = arith.constant 0 : index
      %197 = vector.load %arg6[%c0_66, %c0_67] : memref<8x128xf32, #tpu.memory_space<vmem>>, vector<8x128xf32>
      tpu.vector_store %arg6[%c0_66, %c0_67], %196 {strides = array<i32>} : memref<8x128xf32, #tpu.memory_space<vmem>>, vector<8x128xf32>,
      %c0_68 = arith.constant 0 : index
      %c0_69 = arith.constant 0 : index
      %198 = vector.load %arg4[%c0_68, %c0_69] : memref<8x128xf32, #tpu.memory_space<vmem>>, vector<8x128xf32>
      %c0_70 = arith.constant 0 : index
      %c0_71 = arith.constant 0 : index
      %199 = vector.load %arg7[%c0_70, %c0_71] : memref<8x128xf32, #tpu.memory_space<vmem>>, vector<8x128xf32>
      tpu.vector_store %arg7[%c0_70, %c0_71], %198 {strides = array<i32>} : memref<8x128xf32, #tpu.memory_space<vmem>>, vector<8x128xf32>,
    } else {
    }
    %c0 = arith.constant 0 : index
    %c0_1 = arith.constant 0 : index
    %3 = vector.load %arg6[%c0, %c0_1] : memref<8x128xf32, #tpu.memory_space<vmem>>, vector<8x128xf32>
    %c0_2 = arith.constant 0 : index
    %c0_3 = arith.constant 0 : index
    %4 = vector.load %arg7[%c0_2, %c0_3] : memref<8x128xf32, #tpu.memory_space<vmem>>, vector<8x128xf32>
    %c0_i32_4 = arith.constant 0 : i32
    %5 = arith.index_cast %c0_i32_4 : i32 to index
    %c0_5 = arith.constant 0 : index
    %c0_6 = arith.constant 0 : index
    %6 = vector.load %arg1[%5, %c0_5, %c0_6] : memref<7x8x512xf32, #tpu.memory_space<vmem>>, vector<1x8x512xf32>
    %7 = vector.shape_cast %6 : vector<1x8x512xf32> to vector<8x512xf32>
    %8 = arith.truncf %3 : vector<8x128xf32> to vector<8x128xbf16>
    %c0_7 = arith.constant 0 : index
    %c0_8 = arith.constant 0 : index
    %9 = vector.load %arg2[%c0_7, %c0_8] : memref<128x512xbf16, #tpu.memory_space<vmem>>, vector<128x512xbf16>
    %cst = arith.constant dense<0.000000e+00> : vector<8x512xf32>
    %10 = tpu.matmul %8, %9, %cst {dimension_numbers = #tpu.dot_dimension_numbers<[1], [0], [0], [1], [0, 0, 1, 1], [], []>} : vector<8x128xbf16>, vector<128x512xbf16>, vector<8x512xf32> -> vector<8x512xf32>
    %11 = arith.addf %7, %10 : vector<8x512xf32>
    %12 = vector.extract_strided_slice %11 {offsets = [0, 0], sizes = [8, 384], strides = [1, 1]} : vector<8x512xf32> to vector<8x384xf32>
    %13 = arith.negf %12 : vector<8x384xf32>
    %14 = math.exp %13 : vector<8x384xf32>
    %cst_9 = arith.constant 1.000000e+00 : f32
    %15 = vector.broadcast %cst_9 : f32 to vector<8x384xf32>
    %16 = arith.addf %15, %14 : vector<8x384xf32>
    %17 = arith.divf %15, %16 : vector<8x384xf32>
    %18 = vector.extract_strided_slice %11 {offsets = [0, 384], sizes = [8, 128], strides = [1, 1]} : vector<8x512xf32> to vector<8x128xf32>
    %19 = math.tanh %18 : vector<8x128xf32>
    %20 = vector.extract_strided_slice %17 {offsets = [0, 0], sizes = [8, 128], strides = [1, 1]} : vector<8x384xf32> to vector<8x128xf32>
    %21 = vector.extract_strided_slice %17 {offsets = [0, 128], sizes = [8, 128], strides = [1, 1]} : vector<8x384xf32> to vector<8x128xf32>
    %22 = vector.extract_strided_slice %17 {offsets = [0, 256], sizes = [8, 128], strides = [1, 1]} : vector<8x384xf32> to vector<8x128xf32>
    %23 = arith.mulf %21, %4 : vector<8x128xf32>
    %24 = arith.mulf %20, %19 : vector<8x128xf32>
    %25 = arith.addf %23, %24 : vector<8x128xf32>
    %26 = math.tanh %25 : vector<8x128xf32>
    %27 = arith.mulf %22, %26 : vector<8x128xf32>
    %28 = arith.index_cast %c0_i32_4 : i32 to index
    %c0_10 = arith.constant 0 : index
    %c0_11 = arith.constant 0 : index
    %29 = vector.load %arg5[%28, %c0_10, %c0_11] : memref<7x8x128xf32, #tpu.memory_space<vmem>>, vector<1x8x128xf32>
    %30 = vector.shape_cast %29 : vector<1x8x128xf32> to vector<8x128xf32>
    %31 = vector.shape_cast %27 : vector<8x128xf32> to vector<1x8x128xf32>
    tpu.vector_store %arg5[%28, %c0_10, %c0_11], %31 {strides = array<i32>} : memref<7x8x128xf32, #tpu.memory_space<vmem>>, vector<1x8x128xf32>,
    %c1_i32 = arith.constant 1 : i32
    %32 = arith.index_cast %c1_i32 : i32 to index
    %c0_12 = arith.constant 0 : index
    %c0_13 = arith.constant 0 : index
    %33 = vector.load %arg1[%32, %c0_12, %c0_13] : memref<7x8x512xf32, #tpu.memory_space<vmem>>, vector<1x8x512xf32>
    %34 = vector.shape_cast %33 : vector<1x8x512xf32> to vector<8x512xf32>
    %35 = arith.truncf %27 : vector<8x128xf32> to vector<8x128xbf16>
    %c0_14 = arith.constant 0 : index
    %c0_15 = arith.constant 0 : index
    %36 = vector.load %arg2[%c0_14, %c0_15] : memref<128x512xbf16, #tpu.memory_space<vmem>>, vector<128x512xbf16>
    %cst_16 = arith.constant dense<0.000000e+00> : vector<8x512xf32>
    %37 = tpu.matmul %35, %36, %cst_16 {dimension_numbers = #tpu.dot_dimension_numbers<[1], [0], [0], [1], [0, 0, 1, 1], [], []>} : vector<8x128xbf16>, vector<128x512xbf16>, vector<8x512xf32> -> vector<8x512xf32>
    %38 = arith.addf %34, %37 : vector<8x512xf32>
    %39 = vector.extract_strided_slice %38 {offsets = [0, 0], sizes = [8, 384], strides = [1, 1]} : vector<8x512xf32> to vector<8x384xf32>
    %40 = arith.negf %39 : vector<8x384xf32>
    %41 = math.exp %40 : vector<8x384xf32>
    %cst_17 = arith.constant 1.000000e+00 : f32
    %42 = vector.broadcast %cst_17 : f32 to vector<8x384xf32>
    %43 = arith.addf %42, %41 : vector<8x384xf32>
    %44 = arith.divf %42, %43 : vector<8x384xf32>
    %45 = vector.extract_strided_slice %38 {offsets = [0, 384], sizes = [8, 128], strides = [1, 1]} : vector<8x512xf32> to vector<8x128xf32>
    %46 = math.tanh %45 : vector<8x128xf32>
    %47 = vector.extract_strided_slice %44 {offsets = [0, 0], sizes = [8, 128], strides = [1, 1]} : vector<8x384xf32> to vector<8x128xf32>
    %48 = vector.extract_strided_slice %44 {offsets = [0, 128], sizes = [8, 128], strides = [1, 1]} : vector<8x384xf32> to vector<8x128xf32>
    %49 = vector.extract_strided_slice %44 {offsets = [0, 256], sizes = [8, 128], strides = [1, 1]} : vector<8x384xf32> to vector<8x128xf32>
    %50 = arith.mulf %48, %25 : vector<8x128xf32>
    %51 = arith.mulf %47, %46 : vector<8x128xf32>
    %52 = arith.addf %50, %51 : vector<8x128xf32>
    %53 = math.tanh %52 : vector<8x128xf32>
    %54 = arith.mulf %49, %53 : vector<8x128xf32>
    %55 = arith.index_cast %c1_i32 : i32 to index
    %c0_18 = arith.constant 0 : index
    %c0_19 = arith.constant 0 : index
    %56 = vector.load %arg5[%55, %c0_18, %c0_19] : memref<7x8x128xf32, #tpu.memory_space<vmem>>, vector<1x8x128xf32>
    %57 = vector.shape_cast %56 : vector<1x8x128xf32> to vector<8x128xf32>
    %58 = vector.shape_cast %54 : vector<8x128xf32> to vector<1x8x128xf32>
    tpu.vector_store %arg5[%55, %c0_18, %c0_19], %58 {strides = array<i32>} : memref<7x8x128xf32, #tpu.memory_space<vmem>>, vector<1x8x128xf32>,
    %c2_i32 = arith.constant 2 : i32
    %59 = arith.index_cast %c2_i32 : i32 to index
    %c0_20 = arith.constant 0 : index
    %c0_21 = arith.constant 0 : index
    %60 = vector.load %arg1[%59, %c0_20, %c0_21] : memref<7x8x512xf32, #tpu.memory_space<vmem>>, vector<1x8x512xf32>
    %61 = vector.shape_cast %60 : vector<1x8x512xf32> to vector<8x512xf32>
    %62 = arith.truncf %54 : vector<8x128xf32> to vector<8x128xbf16>
    %c0_22 = arith.constant 0 : index
    %c0_23 = arith.constant 0 : index
    %63 = vector.load %arg2[%c0_22, %c0_23] : memref<128x512xbf16, #tpu.memory_space<vmem>>, vector<128x512xbf16>
    %cst_24 = arith.constant dense<0.000000e+00> : vector<8x512xf32>
    %64 = tpu.matmul %62, %63, %cst_24 {dimension_numbers = #tpu.dot_dimension_numbers<[1], [0], [0], [1], [0, 0, 1, 1], [], []>} : vector<8x128xbf16>, vector<128x512xbf16>, vector<8x512xf32> -> vector<8x512xf32>
    %65 = arith.addf %61, %64 : vector<8x512xf32>
    %66 = vector.extract_strided_slice %65 {offsets = [0, 0], sizes = [8, 384], strides = [1, 1]} : vector<8x512xf32> to vector<8x384xf32>
    %67 = arith.negf %66 : vector<8x384xf32>
    %68 = math.exp %67 : vector<8x384xf32>
    %cst_25 = arith.constant 1.000000e+00 : f32
    %69 = vector.broadcast %cst_25 : f32 to vector<8x384xf32>
    %70 = arith.addf %69, %68 : vector<8x384xf32>
    %71 = arith.divf %69, %70 : vector<8x384xf32>
    %72 = vector.extract_strided_slice %65 {offsets = [0, 384], sizes = [8, 128], strides = [1, 1]} : vector<8x512xf32> to vector<8x128xf32>
    %73 = math.tanh %72 : vector<8x128xf32>
    %74 = vector.extract_strided_slice %71 {offsets = [0, 0], sizes = [8, 128], strides = [1, 1]} : vector<8x384xf32> to vector<8x128xf32>
    %75 = vector.extract_strided_slice %71 {offsets = [0, 128], sizes = [8, 128], strides = [1, 1]} : vector<8x384xf32> to vector<8x128xf32>
    %76 = vector.extract_strided_slice %71 {offsets = [0, 256], sizes = [8, 128], strides = [1, 1]} : vector<8x384xf32> to vector<8x128xf32>
    %77 = arith.mulf %75, %52 : vector<8x128xf32>
    %78 = arith.mulf %74, %73 : vector<8x128xf32>
    %79 = arith.addf %77, %78 : vector<8x128xf32>
    %80 = math.tanh %79 : vector<8x128xf32>
    %81 = arith.mulf %76, %80 : vector<8x128xf32>
    %82 = arith.index_cast %c2_i32 : i32 to index
    %c0_26 = arith.constant 0 : index
    %c0_27 = arith.constant 0 : index
    %83 = vector.load %arg5[%82, %c0_26, %c0_27] : memref<7x8x128xf32, #tpu.memory_space<vmem>>, vector<1x8x128xf32>
    %84 = vector.shape_cast %83 : vector<1x8x128xf32> to vector<8x128xf32>
    %85 = vector.shape_cast %81 : vector<8x128xf32> to vector<1x8x128xf32>
    tpu.vector_store %arg5[%82, %c0_26, %c0_27], %85 {strides = array<i32>} : memref<7x8x128xf32, #tpu.memory_space<vmem>>, vector<1x8x128xf32>,
    %c3_i32 = arith.constant 3 : i32
    %86 = arith.index_cast %c3_i32 : i32 to index
    %c0_28 = arith.constant 0 : index
    %c0_29 = arith.constant 0 : index
    %87 = vector.load %arg1[%86, %c0_28, %c0_29] : memref<7x8x512xf32, #tpu.memory_space<vmem>>, vector<1x8x512xf32>
    %88 = vector.shape_cast %87 : vector<1x8x512xf32> to vector<8x512xf32>
    %89 = arith.truncf %81 : vector<8x128xf32> to vector<8x128xbf16>
    %c0_30 = arith.constant 0 : index
    %c0_31 = arith.constant 0 : index
    %90 = vector.load %arg2[%c0_30, %c0_31] : memref<128x512xbf16, #tpu.memory_space<vmem>>, vector<128x512xbf16>
    %cst_32 = arith.constant dense<0.000000e+00> : vector<8x512xf32>
    %91 = tpu.matmul %89, %90, %cst_32 {dimension_numbers = #tpu.dot_dimension_numbers<[1], [0], [0], [1], [0, 0, 1, 1], [], []>} : vector<8x128xbf16>, vector<128x512xbf16>, vector<8x512xf32> -> vector<8x512xf32>
    %92 = arith.addf %88, %91 : vector<8x512xf32>
    %93 = vector.extract_strided_slice %92 {offsets = [0, 0], sizes = [8, 384], strides = [1, 1]} : vector<8x512xf32> to vector<8x384xf32>
    %94 = arith.negf %93 : vector<8x384xf32>
    %95 = math.exp %94 : vector<8x384xf32>
    %cst_33 = arith.constant 1.000000e+00 : f32
    %96 = vector.broadcast %cst_33 : f32 to vector<8x384xf32>
    %97 = arith.addf %96, %95 : vector<8x384xf32>
    %98 = arith.divf %96, %97 : vector<8x384xf32>
    %99 = vector.extract_strided_slice %92 {offsets = [0, 384], sizes = [8, 128], strides = [1, 1]} : vector<8x512xf32> to vector<8x128xf32>
    %100 = math.tanh %99 : vector<8x128xf32>
    %101 = vector.extract_strided_slice %98 {offsets = [0, 0], sizes = [8, 128], strides = [1, 1]} : vector<8x384xf32> to vector<8x128xf32>
    %102 = vector.extract_strided_slice %98 {offsets = [0, 128], sizes = [8, 128], strides = [1, 1]} : vector<8x384xf32> to vector<8x128xf32>
    %103 = vector.extract_strided_slice %98 {offsets = [0, 256], sizes = [8, 128], strides = [1, 1]} : vector<8x384xf32> to vector<8x128xf32>
    %104 = arith.mulf %102, %79 : vector<8x128xf32>
    %105 = arith.mulf %101, %100 : vector<8x128xf32>
    %106 = arith.addf %104, %105 : vector<8x128xf32>
    %107 = math.tanh %106 : vector<8x128xf32>
    %108 = arith.mulf %103, %107 : vector<8x128xf32>
    %109 = arith.index_cast %c3_i32 : i32 to index
    %c0_34 = arith.constant 0 : index
    %c0_35 = arith.constant 0 : index
    %110 = vector.load %arg5[%109, %c0_34, %c0_35] : memref<7x8x128xf32, #tpu.memory_space<vmem>>, vector<1x8x128xf32>
    %111 = vector.shape_cast %110 : vector<1x8x128xf32> to vector<8x128xf32>
    %112 = vector.shape_cast %108 : vector<8x128xf32> to vector<1x8x128xf32>
    tpu.vector_store %arg5[%109, %c0_34, %c0_35], %112 {strides = array<i32>} : memref<7x8x128xf32, #tpu.memory_space<vmem>>, vector<1x8x128xf32>,
    %c4_i32 = arith.constant 4 : i32
    %113 = arith.index_cast %c4_i32 : i32 to index
    %c0_36 = arith.constant 0 : index
    %c0_37 = arith.constant 0 : index
    %114 = vector.load %arg1[%113, %c0_36, %c0_37] : memref<7x8x512xf32, #tpu.memory_space<vmem>>, vector<1x8x512xf32>
    %115 = vector.shape_cast %114 : vector<1x8x512xf32> to vector<8x512xf32>
    %116 = arith.truncf %108 : vector<8x128xf32> to vector<8x128xbf16>
    %c0_38 = arith.constant 0 : index
    %c0_39 = arith.constant 0 : index
    %117 = vector.load %arg2[%c0_38, %c0_39] : memref<128x512xbf16, #tpu.memory_space<vmem>>, vector<128x512xbf16>
    %cst_40 = arith.constant dense<0.000000e+00> : vector<8x512xf32>
    %118 = tpu.matmul %116, %117, %cst_40 {dimension_numbers = #tpu.dot_dimension_numbers<[1], [0], [0], [1], [0, 0, 1, 1], [], []>} : vector<8x128xbf16>, vector<128x512xbf16>, vector<8x512xf32> -> vector<8x512xf32>
    %119 = arith.addf %115, %118 : vector<8x512xf32>
    %120 = vector.extract_strided_slice %119 {offsets = [0, 0], sizes = [8, 384], strides = [1, 1]} : vector<8x512xf32> to vector<8x384xf32>
    %121 = arith.negf %120 : vector<8x384xf32>
    %122 = math.exp %121 : vector<8x384xf32>
    %cst_41 = arith.constant 1.000000e+00 : f32
    %123 = vector.broadcast %cst_41 : f32 to vector<8x384xf32>
    %124 = arith.addf %123, %122 : vector<8x384xf32>
    %125 = arith.divf %123, %124 : vector<8x384xf32>
    %126 = vector.extract_strided_slice %119 {offsets = [0, 384], sizes = [8, 128], strides = [1, 1]} : vector<8x512xf32> to vector<8x128xf32>
    %127 = math.tanh %126 : vector<8x128xf32>
    %128 = vector.extract_strided_slice %125 {offsets = [0, 0], sizes = [8, 128], strides = [1, 1]} : vector<8x384xf32> to vector<8x128xf32>
    %129 = vector.extract_strided_slice %125 {offsets = [0, 128], sizes = [8, 128], strides = [1, 1]} : vector<8x384xf32> to vector<8x128xf32>
    %130 = vector.extract_strided_slice %125 {offsets = [0, 256], sizes = [8, 128], strides = [1, 1]} : vector<8x384xf32> to vector<8x128xf32>
    %131 = arith.mulf %129, %106 : vector<8x128xf32>
    %132 = arith.mulf %128, %127 : vector<8x128xf32>
    %133 = arith.addf %131, %132 : vector<8x128xf32>
    %134 = math.tanh %133 : vector<8x128xf32>
    %135 = arith.mulf %130, %134 : vector<8x128xf32>
    %136 = arith.index_cast %c4_i32 : i32 to index
    %c0_42 = arith.constant 0 : index
    %c0_43 = arith.constant 0 : index
    %137 = vector.load %arg5[%136, %c0_42, %c0_43] : memref<7x8x128xf32, #tpu.memory_space<vmem>>, vector<1x8x128xf32>
    %138 = vector.shape_cast %137 : vector<1x8x128xf32> to vector<8x128xf32>
    %139 = vector.shape_cast %135 : vector<8x128xf32> to vector<1x8x128xf32>
    tpu.vector_store %arg5[%136, %c0_42, %c0_43], %139 {strides = array<i32>} : memref<7x8x128xf32, #tpu.memory_space<vmem>>, vector<1x8x128xf32>,
    %c5_i32 = arith.constant 5 : i32
    %140 = arith.index_cast %c5_i32 : i32 to index
    %c0_44 = arith.constant 0 : index
    %c0_45 = arith.constant 0 : index
    %141 = vector.load %arg1[%140, %c0_44, %c0_45] : memref<7x8x512xf32, #tpu.memory_space<vmem>>, vector<1x8x512xf32>
    %142 = vector.shape_cast %141 : vector<1x8x512xf32> to vector<8x512xf32>
    %143 = arith.truncf %135 : vector<8x128xf32> to vector<8x128xbf16>
    %c0_46 = arith.constant 0 : index
    %c0_47 = arith.constant 0 : index
    %144 = vector.load %arg2[%c0_46, %c0_47] : memref<128x512xbf16, #tpu.memory_space<vmem>>, vector<128x512xbf16>
    %cst_48 = arith.constant dense<0.000000e+00> : vector<8x512xf32>
    %145 = tpu.matmul %143, %144, %cst_48 {dimension_numbers = #tpu.dot_dimension_numbers<[1], [0], [0], [1], [0, 0, 1, 1], [], []>} : vector<8x128xbf16>, vector<128x512xbf16>, vector<8x512xf32> -> vector<8x512xf32>
    %146 = arith.addf %142, %145 : vector<8x512xf32>
    %147 = vector.extract_strided_slice %146 {offsets = [0, 0], sizes = [8, 384], strides = [1, 1]} : vector<8x512xf32> to vector<8x384xf32>
    %148 = arith.negf %147 : vector<8x384xf32>
    %149 = math.exp %148 : vector<8x384xf32>
    %cst_49 = arith.constant 1.000000e+00 : f32
    %150 = vector.broadcast %cst_49 : f32 to vector<8x384xf32>
    %151 = arith.addf %150, %149 : vector<8x384xf32>
    %152 = arith.divf %150, %151 : vector<8x384xf32>
    %153 = vector.extract_strided_slice %146 {offsets = [0, 384], sizes = [8, 128], strides = [1, 1]} : vector<8x512xf32> to vector<8x128xf32>
    %154 = math.tanh %153 : vector<8x128xf32>
    %155 = vector.extract_strided_slice %152 {offsets = [0, 0], sizes = [8, 128], strides = [1, 1]} : vector<8x384xf32> to vector<8x128xf32>
    %156 = vector.extract_strided_slice %152 {offsets = [0, 128], sizes = [8, 128], strides = [1, 1]} : vector<8x384xf32> to vector<8x128xf32>
    %157 = vector.extract_strided_slice %152 {offsets = [0, 256], sizes = [8, 128], strides = [1, 1]} : vector<8x384xf32> to vector<8x128xf32>
    %158 = arith.mulf %156, %133 : vector<8x128xf32>
    %159 = arith.mulf %155, %154 : vector<8x128xf32>
    %160 = arith.addf %158, %159 : vector<8x128xf32>
    %161 = math.tanh %160 : vector<8x128xf32>
    %162 = arith.mulf %157, %161 : vector<8x128xf32>
    %163 = arith.index_cast %c5_i32 : i32 to index
    %c0_50 = arith.constant 0 : index
    %c0_51 = arith.constant 0 : index
    %164 = vector.load %arg5[%163, %c0_50, %c0_51] : memref<7x8x128xf32, #tpu.memory_space<vmem>>, vector<1x8x128xf32>
    %165 = vector.shape_cast %164 : vector<1x8x128xf32> to vector<8x128xf32>
    %166 = vector.shape_cast %162 : vector<8x128xf32> to vector<1x8x128xf32>
    tpu.vector_store %arg5[%163, %c0_50, %c0_51], %166 {strides = array<i32>} : memref<7x8x128xf32, #tpu.memory_space<vmem>>, vector<1x8x128xf32>,
    %c6_i32 = arith.constant 6 : i32
    %167 = arith.index_cast %c6_i32 : i32 to index
    %c0_52 = arith.constant 0 : index
    %c0_53 = arith.constant 0 : index
    %168 = vector.load %arg1[%167, %c0_52, %c0_53] : memref<7x8x512xf32, #tpu.memory_space<vmem>>, vector<1x8x512xf32>
    %169 = vector.shape_cast %168 : vector<1x8x512xf32> to vector<8x512xf32>
    %170 = arith.truncf %162 : vector<8x128xf32> to vector<8x128xbf16>
    %c0_54 = arith.constant 0 : index
    %c0_55 = arith.constant 0 : index
    %171 = vector.load %arg2[%c0_54, %c0_55] : memref<128x512xbf16, #tpu.memory_space<vmem>>, vector<128x512xbf16>
    %cst_56 = arith.constant dense<0.000000e+00> : vector<8x512xf32>
    %172 = tpu.matmul %170, %171, %cst_56 {dimension_numbers = #tpu.dot_dimension_numbers<[1], [0], [0], [1], [0, 0, 1, 1], [], []>} : vector<8x128xbf16>, vector<128x512xbf16>, vector<8x512xf32> -> vector<8x512xf32>
    %173 = arith.addf %169, %172 : vector<8x512xf32>
    %174 = vector.extract_strided_slice %173 {offsets = [0, 0], sizes = [8, 384], strides = [1, 1]} : vector<8x512xf32> to vector<8x384xf32>
    %175 = arith.negf %174 : vector<8x384xf32>
    %176 = math.exp %175 : vector<8x384xf32>
    %cst_57 = arith.constant 1.000000e+00 : f32
    %177 = vector.broadcast %cst_57 : f32 to vector<8x384xf32>
    %178 = arith.addf %177, %176 : vector<8x384xf32>
    %179 = arith.divf %177, %178 : vector<8x384xf32>
    %180 = vector.extract_strided_slice %173 {offsets = [0, 384], sizes = [8, 128], strides = [1, 1]} : vector<8x512xf32> to vector<8x128xf32>
    %181 = math.tanh %180 : vector<8x128xf32>
    %182 = vector.extract_strided_slice %179 {offsets = [0, 0], sizes = [8, 128], strides = [1, 1]} : vector<8x384xf32> to vector<8x128xf32>
    %183 = vector.extract_strided_slice %179 {offsets = [0, 128], sizes = [8, 128], strides = [1, 1]} : vector<8x384xf32> to vector<8x128xf32>
    %184 = vector.extract_strided_slice %179 {offsets = [0, 256], sizes = [8, 128], strides = [1, 1]} : vector<8x384xf32> to vector<8x128xf32>
    %185 = arith.mulf %183, %160 : vector<8x128xf32>
    %186 = arith.mulf %182, %181 : vector<8x128xf32>
    %187 = arith.addf %185, %186 : vector<8x128xf32>
    %188 = math.tanh %187 : vector<8x128xf32>
    %189 = arith.mulf %184, %188 : vector<8x128xf32>
    %190 = arith.index_cast %c6_i32 : i32 to index
    %c0_58 = arith.constant 0 : index
    %c0_59 = arith.constant 0 : index
    %191 = vector.load %arg5[%190, %c0_58, %c0_59] : memref<7x8x128xf32, #tpu.memory_space<vmem>>, vector<1x8x128xf32>
    %192 = vector.shape_cast %191 : vector<1x8x128xf32> to vector<8x128xf32>
    %193 = vector.shape_cast %189 : vector<8x128xf32> to vector<1x8x128xf32>
    tpu.vector_store %arg5[%190, %c0_58, %c0_59], %193 {strides = array<i32>} : memref<7x8x128xf32, #tpu.memory_space<vmem>>, vector<1x8x128xf32>,
    %c7_i32 = arith.constant 7 : i32
    %c0_60 = arith.constant 0 : index
    %c0_61 = arith.constant 0 : index
    %194 = vector.load %arg6[%c0_60, %c0_61] : memref<8x128xf32, #tpu.memory_space<vmem>>, vector<8x128xf32>
    tpu.vector_store %arg6[%c0_60, %c0_61], %189 {strides = array<i32>} : memref<8x128xf32, #tpu.memory_space<vmem>>, vector<8x128xf32>,
    %c0_62 = arith.constant 0 : index
    %c0_63 = arith.constant 0 : index
    %195 = vector.load %arg7[%c0_62, %c0_63] : memref<8x128xf32, #tpu.memory_space<vmem>>, vector<8x128xf32>
    tpu.vector_store %arg7[%c0_62, %c0_63], %187 {strides = array<i32>} : memref<8x128xf32, #tpu.memory_space<vmem>>, vector<8x128xf32>,
    return
  }
  func.func @transform_0(%arg0: i32) -> (i32, i32, i32) {
    %c0_i32 = arith.constant 0 : i32
    %c0_i32_0 = arith.constant 0 : i32
    %c0_i32_1 = arith.constant 0 : i32
    return %arg0, %c0_i32, %c0_i32_0 : i32, i32, i32
  }
  func.func @transform_1(%arg0: i32) -> (i32, i32) {
    %c0_i32 = arith.constant 0 : i32
    %c0_i32_0 = arith.constant 0 : i32
    %c0_i32_1 = arith.constant 0 : i32
    return %c0_i32, %c0_i32_0 : i32, i32
  }
  func.func @transform_2(%arg0: i32) -> (i32, i32) {
    %c0_i32 = arith.constant 0 : i32
    %c0_i32_0 = arith.constant 0 : i32
    %c0_i32_1 = arith.constant 0 : i32
    return %c0_i32, %c0_i32_0 : i32, i32
  }
  func.func @transform_3(%arg0: i32) -> (i32, i32) {
    %c0_i32 = arith.constant 0 : i32
    %c0_i32_0 = arith.constant 0 : i32
    %c0_i32_1 = arith.constant 0 : i32
    return %c0_i32, %c0_i32_0 : i32, i32
  }
  func.func @transform_4(%arg0: i32) -> (i32, i32, i32) {
    %c0_i32 = arith.constant 0 : i32
    %c0_i32_0 = arith.constant 0 : i32
    %c0_i32_1 = arith.constant 0 : i32
    return %arg0, %c0_i32, %c0_i32_0 : i32, i32, i32
  }
}

module attributes {stable_mosaic.version = 11 : i64} {
  func.func @_head_kernel(%arg0: i32, %arg1: i32, %arg2: memref<7x8x128xf32, #tpu.memory_space<vmem>>, %arg3: memref<128x128xbf16, #tpu.memory_space<vmem>>, %arg4: memref<1x128xf32, #tpu.memory_space<vmem>>, %arg5: memref<1x128xf32, #tpu.memory_space<vmem>>, %arg6: memref<1x1xf32, #tpu.memory_space<vmem>>, %arg7: memref<8x128xf32, #tpu.memory_space<vmem>>, %arg8: memref<7x8x128xf32, #tpu.memory_space<vmem>>) attributes {dimension_semantics = [#tpu.dimension_semantics<parallel>, #tpu.dimension_semantics<parallel>], iteration_bounds = array<i64: 1, 1>, scalar_prefetch = 0 : i64, scratch_operands = 0 : i64, tpu.core_type = #tpu.core_type<tc>, window_params = [{transform_indices = @transform_0, window_bounds = array<i64: 7, 8, 128>}, {transform_indices = @transform_1, window_bounds = array<i64: 128, 128>}, {transform_indices = @transform_2, window_bounds = array<i64: 1, 128>}, {pipeline_mode = #tpu.pipeline_mode<synchronous>, transform_indices = @transform_3, window_bounds = array<i64: 1, 128>}, {pipeline_mode = #tpu.pipeline_mode<synchronous>, transform_indices = @transform_4, window_bounds = array<i64: 1, 1>}, {transform_indices = @transform_5, window_bounds = array<i64: 8, 128>}, {transform_indices = @transform_6, window_bounds = array<i64: 7, 8, 128>}]} {
    %c0 = arith.constant 0 : index
    %c0_0 = arith.constant 0 : index
    %c0_1 = arith.constant 0 : index
    %0 = vector.load %arg2[%c0, %c0_0, %c0_1] : memref<7x8x128xf32, #tpu.memory_space<vmem>>, vector<7x8x128xf32>
    %1 = vector.shape_cast %0 : vector<7x8x128xf32> to vector<56x128xf32>
    %c0_2 = arith.constant 0 : index
    %c0_3 = arith.constant 0 : index
    %2 = vector.load %arg5[%c0_2, %c0_3] : memref<1x128xf32, #tpu.memory_space<vmem>>, vector<1x128xf32>
    %3 = vector.broadcast %2 : vector<1x128xf32> to vector<56x128xf32>
    %4 = arith.mulf %1, %3 : vector<56x128xf32>
    %cst = arith.constant dense<0.000000e+00> : vector<56xf32>
    %5 = vector.multi_reduction <add>, %4, %cst [1] : vector<56x128xf32> to vector<56xf32>
    %6 = vector.shape_cast %5 : vector<56xf32> to vector<56x1xf32>
    %c0_4 = arith.constant 0 : index
    %c0_5 = arith.constant 0 : index
    %7 = vector.load %arg6[%c0_4, %c0_5] : memref<1x1xf32, #tpu.memory_space<vmem>>, vector<1x1xf32>
    %8 = vector.broadcast %7 : vector<1x1xf32> to vector<56x1xf32>
    %9 = arith.addf %6, %8 : vector<56x1xf32>
    %10 = arith.negf %9 : vector<56x1xf32>
    %11 = math.exp %10 : vector<56x1xf32>
    %cst_6 = arith.constant 1.000000e+00 : f32
    %12 = vector.broadcast %cst_6 : f32 to vector<56x1xf32>
    %13 = arith.addf %12, %11 : vector<56x1xf32>
    %14 = arith.divf %12, %13 : vector<56x1xf32>
    %15 = arith.truncf %1 : vector<56x128xf32> to vector<56x128xbf16>
    %c0_7 = arith.constant 0 : index
    %c0_8 = arith.constant 0 : index
    %16 = vector.load %arg3[%c0_7, %c0_8] : memref<128x128xbf16, #tpu.memory_space<vmem>>, vector<128x128xbf16>
    %cst_9 = arith.constant dense<0.000000e+00> : vector<56x128xf32>
    %17 = tpu.matmul %15, %16, %cst_9 {dimension_numbers = #tpu.dot_dimension_numbers<[1], [0], [0], [1], [0, 0, 1, 1], [], []>} : vector<56x128xbf16>, vector<128x128xbf16>, vector<56x128xf32> -> vector<56x128xf32>
    %c0_10 = arith.constant 0 : index
    %c0_11 = arith.constant 0 : index
    %18 = vector.load %arg4[%c0_10, %c0_11] : memref<1x128xf32, #tpu.memory_space<vmem>>, vector<1x128xf32>
    %19 = vector.broadcast %18 : vector<1x128xf32> to vector<56x128xf32>
    %20 = arith.addf %17, %19 : vector<56x128xf32>
    %21 = vector.shape_cast %20 : vector<56x128xf32> to vector<7x8x128xf32>
    %22 = vector.shape_cast %14 : vector<56x1xf32> to vector<7x8x1xf32>
    %cst_12 = arith.constant 1.000000e+00 : f32
    %23 = vector.broadcast %cst_12 : f32 to vector<7x8x1xf32>
    %24 = arith.subf %23, %22 : vector<7x8x1xf32>
    %25 = vector.broadcast %24 : vector<7x8x1xf32> to vector<7x8x128xf32>
    %26 = arith.mulf %25, %21 : vector<7x8x128xf32>
    %c0_13 = arith.constant 0 : index
    %c0_14 = arith.constant 0 : index
    %27 = vector.load %arg7[%c0_13, %c0_14] : memref<8x128xf32, #tpu.memory_space<vmem>>, vector<8x128xf32>
    %28 = vector.shape_cast %27 : vector<8x128xf32> to vector<1x8x128xf32>
    %29 = vector.broadcast %22 : vector<7x8x1xf32> to vector<7x8x128xf32>
    %30 = vector.broadcast %28 : vector<1x8x128xf32> to vector<7x8x128xf32>
    %31 = arith.mulf %29, %30 : vector<7x8x128xf32>
    %32 = arith.addf %26, %31 : vector<7x8x128xf32>
    %c0_15 = arith.constant 0 : index
    %c0_16 = arith.constant 0 : index
    %c0_17 = arith.constant 0 : index
    %33 = vector.load %arg8[%c0_15, %c0_16, %c0_17] : memref<7x8x128xf32, #tpu.memory_space<vmem>>, vector<7x8x128xf32>
    tpu.vector_store %arg8[%c0_15, %c0_16, %c0_17], %32 {strides = array<i32>} : memref<7x8x128xf32, #tpu.memory_space<vmem>>, vector<7x8x128xf32>,
    return
  }
  func.func @transform_0(%arg0: i32, %arg1: i32) -> (i32, i32, i32) {
    %c0_i32 = arith.constant 0 : i32
    %c0_i32_0 = arith.constant 0 : i32
    %c0_i32_1 = arith.constant 0 : i32
    return %arg0, %c0_i32, %c0_i32_0 : i32, i32, i32
  }
  func.func @transform_1(%arg0: i32, %arg1: i32) -> (i32, i32) {
    %c0_i32 = arith.constant 0 : i32
    %c0_i32_0 = arith.constant 0 : i32
    return %c0_i32, %arg1 : i32, i32
  }
  func.func @transform_2(%arg0: i32, %arg1: i32) -> (i32, i32) {
    %c0_i32 = arith.constant 0 : i32
    %c0_i32_0 = arith.constant 0 : i32
    return %c0_i32, %arg1 : i32, i32
  }
  func.func @transform_3(%arg0: i32, %arg1: i32) -> (i32, i32) {
    %c0_i32 = arith.constant 0 : i32
    %c0_i32_0 = arith.constant 0 : i32
    %c0_i32_1 = arith.constant 0 : i32
    return %c0_i32, %c0_i32_0 : i32, i32
  }
  func.func @transform_4(%arg0: i32, %arg1: i32) -> (i32, i32) {
    %c0_i32 = arith.constant 0 : i32
    %c0_i32_0 = arith.constant 0 : i32
    %c0_i32_1 = arith.constant 0 : i32
    return %c0_i32, %c0_i32_0 : i32, i32
  }
  func.func @transform_5(%arg0: i32, %arg1: i32) -> (i32, i32) {
    %c0_i32 = arith.constant 0 : i32
    %c0_i32_0 = arith.constant 0 : i32
    return %c0_i32, %arg1 : i32, i32
  }
  func.func @transform_6(%arg0: i32, %arg1: i32) -> (i32, i32, i32) {
    %c0_i32 = arith.constant 0 : i32
    %c0_i32_0 = arith.constant 0 : i32
    return %arg0, %c0_i32, %arg1 : i32, i32, i32
  }
}

module attributes {stable_mosaic.version = 11 : i64} {
  func.func @_dense_kernel(%arg0: i32, %arg1: i32, %arg2: memref<8x128xf32, #tpu.memory_space<vmem>>, %arg3: memref<128x128xbf16, #tpu.memory_space<vmem>>, %arg4: memref<1x128xf32, #tpu.memory_space<vmem>>, %arg5: memref<8x128xf32, #tpu.memory_space<vmem>>) attributes {dimension_semantics = [#tpu.dimension_semantics<parallel>, #tpu.dimension_semantics<parallel>], iteration_bounds = array<i64: 1, 1>, scalar_prefetch = 0 : i64, scratch_operands = 0 : i64, tpu.core_type = #tpu.core_type<tc>, window_params = [{transform_indices = @transform_0, window_bounds = array<i64: 8, 128>}, {transform_indices = @transform_1, window_bounds = array<i64: 128, 128>}, {transform_indices = @transform_2, window_bounds = array<i64: 1, 128>}, {transform_indices = @transform_3, window_bounds = array<i64: 8, 128>}]} {
    %c0 = arith.constant 0 : index
    %c0_0 = arith.constant 0 : index
    %0 = vector.load %arg2[%c0, %c0_0] : memref<8x128xf32, #tpu.memory_space<vmem>>, vector<8x128xf32>
    %1 = arith.truncf %0 : vector<8x128xf32> to vector<8x128xbf16>
    %c0_1 = arith.constant 0 : index
    %c0_2 = arith.constant 0 : index
    %2 = vector.load %arg3[%c0_1, %c0_2] : memref<128x128xbf16, #tpu.memory_space<vmem>>, vector<128x128xbf16>
    %cst = arith.constant dense<0.000000e+00> : vector<8x128xf32>
    %3 = tpu.matmul %1, %2, %cst {dimension_numbers = #tpu.dot_dimension_numbers<[1], [0], [0], [1], [0, 0, 1, 1], [], []>} : vector<8x128xbf16>, vector<128x128xbf16>, vector<8x128xf32> -> vector<8x128xf32>
    %c0_3 = arith.constant 0 : index
    %c0_4 = arith.constant 0 : index
    %4 = vector.load %arg4[%c0_3, %c0_4] : memref<1x128xf32, #tpu.memory_space<vmem>>, vector<1x128xf32>
    %5 = vector.broadcast %4 : vector<1x128xf32> to vector<8x128xf32>
    %6 = arith.addf %3, %5 : vector<8x128xf32>
    %c0_5 = arith.constant 0 : index
    %c0_6 = arith.constant 0 : index
    %7 = vector.load %arg5[%c0_5, %c0_6] : memref<8x128xf32, #tpu.memory_space<vmem>>, vector<8x128xf32>
    tpu.vector_store %arg5[%c0_5, %c0_6], %6 {strides = array<i32>} : memref<8x128xf32, #tpu.memory_space<vmem>>, vector<8x128xf32>,
    return
  }
  func.func @transform_0(%arg0: i32, %arg1: i32) -> (i32, i32) {
    %c0_i32 = arith.constant 0 : i32
    %c0_i32_0 = arith.constant 0 : i32
    return %arg0, %c0_i32 : i32, i32
  }
  func.func @transform_1(%arg0: i32, %arg1: i32) -> (i32, i32) {
    %c0_i32 = arith.constant 0 : i32
    %c0_i32_0 = arith.constant 0 : i32
    return %c0_i32, %arg1 : i32, i32
  }
  func.func @transform_2(%arg0: i32, %arg1: i32) -> (i32, i32) {
    %c0_i32 = arith.constant 0 : i32
    %c0_i32_0 = arith.constant 0 : i32
    return %c0_i32, %arg1 : i32, i32
  }
  func.func @transform_3(%arg0: i32, %arg1: i32) -> (i32, i32) {
    %c0_i32 = arith.constant 0 : i32
    return %arg0, %arg1 : i32, i32
  }
}

</mosaic_0001>

<llo_original>
// kernel: forward.9
$region0: #{forward.9}
  #allocation0 [shape = 'u32[]', space=smem, size = 0x4, offset = 0x4, fixed_abs, tag = 'smem constant byte address 0x4 - core index']
  #allocation1 [shape = 'u32[144,128]{1,0:T(1,128)}', space=vmem, size = 0x12000, scoped, tag = 'internal scratch']
  %s0 = inlined_call_operand.vmem [shape: bf16[56,128], index: 0, kind: input, shape index: {}]
  %s1 = inlined_call_operand.vmem [shape: bf16[128,512], index: 1, kind: input, shape index: {}]
  %s2 = inlined_call_operand.vmem [shape: f32[1,512], index: 2, kind: input, shape index: {}]
  %s3 = inlined_call_operand.vmem [shape: f32[56,512], index: 3, kind: output, shape index: {}]
  %s4 = sld [smem:[#allocation0]]
  $region22: #{forward.9} parent=0
    _
  %s6 = ssub.s32 1, %s4
  %s7 = scalar_select 0, %s6, %s4
  // Predicated region
  $region2: #{forward.9} parent=0 // pred_check
    _
  $region3: #{forward.9} parent=0 // pred_check_branch
    %9 = sbr.rel (0) target = $region5
  $region4: #{forward.9} parent=0 // pred_region
    _
  $region5: #{forward.9} parent=0 // pred_fallthru
    _
  // Predicated region
  $region6: #{forward.9} parent=0 // pred_check
    _
  $region7: #{forward.9} parent=0 // pred_check_branch
    %11 = sbr.rel (0) target = $region9
  $region8: #{forward.9} parent=0 // pred_region
    _
  $region9: #{forward.9} parent=0 // pred_fallthru
    _
  // Predicated region
  $region10: #{forward.9} parent=0 // pred_check
    _
  $region11: #{forward.9} parent=0 // pred_check_branch
    %13 = sbr.rel (0) target = $region13
  $region12: #{forward.9} parent=0 // pred_region
    _
  $region13: #{forward.9} parent=0 // pred_fallthru
    _
  %v15 = vld [vmem:[%s0] sm:$0xf]
  %v16 = vld [vmem:[%s0 + $0x4] sm:$0xf]
  %v17 = vld [vmem:[%s0 + $0x8] sm:$0xf]
  %v18 = vld [vmem:[%s0 + $0xc] sm:$0xf]
  %v19 = vld [vmem:[%s0 + $0x10] sm:$0xf]
  %v20 = vld [vmem:[%s0 + $0x14] sm:$0xf]
  %v21 = vld [vmem:[%s0 + $0x18] sm:$0xf]
  %v22 = vld [vmem:[%s1] sm:$0xff]
  %v23 = vld [vmem:[%s1 + $0x8] sm:$0xff]
  %v24 = vld [vmem:[%s1 + $0x10] sm:$0xff]
  %v25 = vld [vmem:[%s1 + $0x18] sm:$0xff]
  %v26 = vld [vmem:[%s1 + $0x20] sm:$0xff]
  %v27 = vld [vmem:[%s1 + $0x28] sm:$0xff]
  %v28 = vld [vmem:[%s1 + $0x30] sm:$0xff]
  %v29 = vld [vmem:[%s1 + $0x38] sm:$0xff]
  %v30 = vld [vmem:[%s1 + $0x40] sm:$0xff]
  %v31 = vld [vmem:[%s1 + $0x48] sm:$0xff]
  %v32 = vld [vmem:[%s1 + $0x50] sm:$0xff]
  %v33 = vld [vmem:[%s1 + $0x58] sm:$0xff]
  %v34 = vld [vmem:[%s1 + $0x60] sm:$0xff]
  %v35 = vld [vmem:[%s1 + $0x68] sm:$0xff]
  %v36 = vld [vmem:[%s1 + $0x70] sm:$0xff]
  %v37 = vld [vmem:[%s1 + $0x78] sm:$0xff]
  %v38 = vld [vmem:[%s1 + $0x80] sm:$0xff]
  %v39 = vld [vmem:[%s1 + $0x88] sm:$0xff]
  %v40 = vld [vmem:[%s1 + $0x90] sm:$0xff]
  %v41 = vld [vmem:[%s1 + $0x98] sm:$0xff]
  %v42 = vld [vmem:[%s1 + $0xa0] sm:$0xff]
  %v43 = vld [vmem:[%s1 + $0xa8] sm:$0xff]
  %v44 = vld [vmem:[%s1 + $0xb0] sm:$0xff]
  %v45 = vld [vmem:[%s1 + $0xb8] sm:$0xff]
  %v46 = vld [vmem:[%s1 + $0xc0] sm:$0xff]
  %v47 = vld [vmem:[%s1 + $0xc8] sm:$0xff]
  %v48 = vld [vmem:[%s1 + $0xd0] sm:$0xff]
  %v49 = vld [vmem:[%s1 + $0xd8] sm:$0xff]
  %v50 = vld [vmem:[%s1 + $0xe0] sm:$0xff]
  %v51 = vld [vmem:[%s1 + $0xe8] sm:$0xff]
  %v52 = vld [vmem:[%s1 + $0xf0] sm:$0xff]
  %v53 = vld [vmem:[%s1 + $0xf8] sm:$0xff]
  %v54 = vld [vmem:[%s2] sm:$0xf]
  %v56 = vlaneseq
  %v57 = vshrl.u32 %v56, 7
  %v58 = vsub.s32 0, %v57
  %v59 = vrot.slane %v54, %v58
  %v60 = vlaneseq
  %v61 = vshrl.u32 %v60, 7
  %v62 = vsub.s32 1, %v61
  %v63 = vrot.slane %v54, %v62
  %v64 = vlaneseq
  %v65 = vshrl.u32 %v64, 7
  %v66 = vsub.s32 2, %v65
  %v67 = vrot.slane %v54, %v66
  %v68 = vlaneseq
  %v69 = vshrl.u32 %v68, 7
  %v70 = vsub.s32 3, %v69
  %v71 = vrot.slane %v54, %v70
  %v83 = vunpack.c.l.b16 %v15
  %v84 = vunpack.c.l.b16 %v16
  %v85 = vunpack.c.l.b16 %v17
  %v86 = vunpack.c.l.b16 %v18
  %v87 = vunpack.c.l.b16 %v19
  %v88 = vunpack.c.l.b16 %v20
  %v89 = vunpack.c.l.b16 %v21
  %v90 = vpack.c.b16 %v84, %v83
  %v91 = vpack.c.b16 %v86, %v85
  %v92 = vpack.c.b16 %v88, %v87
  %v93 = vpack.c.b16 %v89, %v89
  %v130 = vunpack.c.l.b16 %v22
  %v131 = vunpack.c.h.b16 %v22
  %v132 = vunpack.c.l.b16 %v23
  %v133 = vunpack.c.h.b16 %v23
  %v134 = vunpack.c.l.b16 %v24
  %v135 = vunpack.c.h.b16 %v24
  %v136 = vunpack.c.l.b16 %v25
  %v137 = vunpack.c.h.b16 %v25
  %v138 = vunpack.c.l.b16 %v26
  %v139 = vunpack.c.h.b16 %v26
  %v140 = vunpack.c.l.b16 %v27
  %v141 = vunpack.c.h.b16 %v27
  %v142 = vunpack.c.l.b16 %v28
  %v143 = vunpack.c.h.b16 %v28
  %v144 = vunpack.c.l.b16 %v29
  %v145 = vunpack.c.h.b16 %v29
  %v146 = vunpack.c.l.b16 %v30
  %v147 = vunpack.c.h.b16 %v30
  %v148 = vunpack.c.l.b16 %v31
  %v149 = vunpack.c.h.b16 %v31
  %v150 = vunpack.c.l.b16 %v32
  %v151 = vunpack.c.h.b16 %v32
  %v152 = vunpack.c.l.b16 %v33
  %v153 = vunpack.c.h.b16 %v33
  %v154 = vunpack.c.l.b16 %v34
  %v155 = vunpack.c.h.b16 %v34
  %v156 = vunpack.c.l.b16 %v35
  %v157 = vunpack.c.h.b16 %v35
  %v158 = vunpack.c.l.b16 %v36
  %v159 = vunpack.c.h.b16 %v36
  %v160 = vunpack.c.l.b16 %v37
  %v161 = vunpack.c.h.b16 %v37
  %v162 = vunpack.c.l.b16 %v38
  %v163 = vunpack.c.h.b16 %v38
  %v164 = vunpack.c.l.b16 %v39
  %v165 = vunpack.c.h.b16 %v39
  %v166 = vunpack.c.l.b16 %v40
  %v167 = vunpack.c.h.b16 %v40
  %v168 = vunpack.c.l.b16 %v41
  %v169 = vunpack.c.h.b16 %v41
  %v170 = vunpack.c.l.b16 %v42
  %v171 = vunpack.c.h.b16 %v42
  %v172 = vunpack.c.l.b16 %v43
  %v173 = vunpack.c.h.b16 %v43
  %v174 = vunpack.c.l.b16 %v44
  %v175 = vunpack.c.h.b16 %v44
  %v176 = vunpack.c.l.b16 %v45
  %v177 = vunpack.c.h.b16 %v45
  %v178 = vunpack.c.l.b16 %v46
  %v179 = vunpack.c.h.b16 %v46
  %v180 = vunpack.c.l.b16 %v47
  %v181 = vunpack.c.h.b16 %v47
  %v182 = vunpack.c.l.b16 %v48
  %v183 = vunpack.c.h.b16 %v48
  %v184 = vunpack.c.l.b16 %v49
  %v185 = vunpack.c.h.b16 %v49
  %v186 = vunpack.c.l.b16 %v50
  %v187 = vunpack.c.h.b16 %v50
  %v188 = vunpack.c.l.b16 %v51
  %v189 = vunpack.c.h.b16 %v51
  %v190 = vunpack.c.l.b16 %v52
  %v191 = vunpack.c.h.b16 %v52
  %v192 = vunpack.c.l.b16 %v53
  %v193 = vunpack.c.h.b16 %v53
  %v194 = vpack.c.b16 %v134, %v130
  %v195 = vpack.c.b16 %v135, %v131
  %v196 = vpack.c.b16 %v136, %v132
  %v197 = vpack.c.b16 %v137, %v133
  %v198 = vpack.c.b16 %v142, %v138
  %v199 = vpack.c.b16 %v143, %v139
  %v200 = vpack.c.b16 %v144, %v140
  %v201 = vpack.c.b16 %v145, %v141
  %v202 = vpack.c.b16 %v150, %v146
  %v203 = vpack.c.b16 %v151, %v147
  %v204 = vpack.c.b16 %v152, %v148
  %v205 = vpack.c.b16 %v153, %v149
  %v206 = vpack.c.b16 %v158, %v154
  %v207 = vpack.c.b16 %v159, %v155
  %v208 = vpack.c.b16 %v160, %v156
  %v209 = vpack.c.b16 %v161, %v157
  %v210 = vpack.c.b16 %v166, %v162
  %v211 = vpack.c.b16 %v167, %v163
  %v212 = vpack.c.b16 %v168, %v164
  %v213 = vpack.c.b16 %v169, %v165
  %v214 = vpack.c.b16 %v174, %v170
  %v215 = vpack.c.b16 %v175, %v171
  %v216 = vpack.c.b16 %v176, %v172
  %v217 = vpack.c.b16 %v177, %v173
  %v218 = vpack.c.b16 %v182, %v178
  %v219 = vpack.c.b16 %v183, %v179
  %v220 = vpack.c.b16 %v184, %v180
  %v221 = vpack.c.b16 %v185, %v181
  %v222 = vpack.c.b16 %v190, %v186
  %v223 = vpack.c.b16 %v191, %v187
  %v224 = vpack.c.b16 %v192, %v188
  %v225 = vpack.c.b16 %v193, %v189
  %258 = vmatprep.subr.bf16.mxu0 %v195
  %259 = vmatpush1.bf16.msra.mxu0 %v194
  %260 = vmatprep.subr.bf16.mxu0 %v199
  %261 = vmatpush1.bf16.msra.mxu0 %v198
  %262 = vmatprep.subr.bf16.mxu0 %v203
  %263 = vmatpush1.bf16.msra.mxu0 %v202
  %264 = vmatprep.subr.bf16.mxu0 %v207
  %265 = vmatpush1.bf16.msra.mxu0 %v206
  %266 = vmatprep.subr.bf16.mxu0 %v211
  %267 = vmatpush1.bf16.msra.mxu0 %v210
  %268 = vmatprep.subr.bf16.mxu0 %v215
  %269 = vmatpush1.bf16.msra.mxu0 %v214
  %270 = vmatprep.subr.bf16.mxu0 %v219
  %271 = vmatpush1.bf16.msra.mxu0 %v218
  %272 = vmatprep.subr.bf16.mxu0 %v223
  %273 = vmatpush1.bf16.msra.mxu0 %v222
  %274 = vmatprep.subr.bf16.mxu0 0
  %275 = vmatpush1.bf16.msra.mxu0 0
  %276 = vmatprep.subr.bf16.mxu0 0
  %277 = vmatpush1.bf16.msra.mxu0 0
  %278 = vmatprep.subr.bf16.mxu0 0
  %279 = vmatpush1.bf16.msra.mxu0 0
  %280 = vmatprep.subr.bf16.mxu0 0
  %281 = vmatpush1.bf16.msra.mxu0 0
  %282 = vmatprep.subr.bf16.mxu0 0
  %283 = vmatpush1.bf16.msra.mxu0 0
  %284 = vmatprep.subr.bf16.mxu0 0
  %285 = vmatpush1.bf16.msra.mxu0 0
  %286 = vmatprep.subr.bf16.mxu0 0
  %287 = vmatpush1.bf16.msra.mxu0 0
  %288 = vmatprep.subr.bf16.mxu0 0
  %289 = vmatpush1.bf16.msra.mxu0 0
  %290 = vmatprep.mubr.bf16.mxu0 0
  %291 = vmatmul.mubr.bf16.gmra.mrb[0].mxu0 %v90
  %v292 = vpop.f32.mrb[0].mxu0
  %v293 = vadd.f32 %v59, %v292
  %v294 = vpop.f32.mrb[0].mxu0
  %v295 = vadd.f32 %v63, %v294
  %v296 = vpop.f32.mrb[0].mxu0
  %v297 = vadd.f32 %v59, %v296
  %v298 = vpop.f32.mrb[0].mxu0
  %v299 = vadd.f32 %v63, %v298
  %300 = vmatprep.mubr.bf16.mxu0 0
  %301 = vmatmul.mubr.bf16.gmra.mrb[0].mxu0 %v91
  %v302 = vpop.f32.mrb[0].mxu0
  %v303 = vadd.f32 %v59, %v302
  %v304 = vpop.f32.mrb[0].mxu0
  %v305 = vadd.f32 %v63, %v304
  %v306 = vpop.f32.mrb[0].mxu0
  %v307 = vadd.f32 %v59, %v306
  %v308 = vpop.f32.mrb[0].mxu0
  %v309 = vadd.f32 %v63, %v308
  %310 = vmatprep.mubr.bf16.mxu0 0
  %311 = vmatmul.mubr.bf16.gmra.mrb[0].mxu0 %v92
  %v312 = vpop.f32.mrb[0].mxu0
  %v313 = vadd.f32 %v59, %v312
  %v314 = vpop.f32.mrb[0].mxu0
  %v315 = vadd.f32 %v63, %v314
  %v316 = vpop.f32.mrb[0].mxu0
  %v317 = vadd.f32 %v59, %v316
  %v318 = vpop.f32.mrb[0].mxu0
  %v319 = vadd.f32 %v63, %v318
  %320 = vmatprep.mubr.bf16.mxu0 0
  %321 = vmatmul.mubr.bf16.gmra.mrb[0].mxu0 %v93
  %v322 = vpop.f32.mrb[0].mxu0
  %v323 = vadd.f32 %v59, %v322
  %v324 = vpop.f32.mrb[0].mxu0
  %v325 = vadd.f32 %v63, %v324
  %v326 = vpop.f32.mrb[0].mxu0
  %v327 = vpop.f32.mrb[0].mxu0
  %328 = vdwg.mxu0
  %329 = vmatprep.subr.bf16.mxu0 %v197
  %330 = vmatpush1.bf16.msra.mxu0 %v196
  %331 = vmatprep.subr.bf16.mxu0 %v201
  %332 = vmatpush1.bf16.msra.mxu0 %v200
  %333 = vmatprep.subr.bf16.mxu0 %v205
  %334 = vmatpush1.bf16.msra.mxu0 %v204
  %335 = vmatprep.subr.bf16.mxu0 %v209
  %336 = vmatpush1.bf16.msra.mxu0 %v208
  %337 = vmatprep.subr.bf16.mxu0 %v213
  %338 = vmatpush1.bf16.msra.mxu0 %v212
  %339 = vmatprep.subr.bf16.mxu0 %v217
  %340 = vmatpush1.bf16.msra.mxu0 %v216
  %341 = vmatprep.subr.bf16.mxu0 %v221
  %342 = vmatpush1.bf16.msra.mxu0 %v220
  %343 = vmatprep.subr.bf16.mxu0 %v225
  %344 = vmatpush1.bf16.msra.mxu0 %v224
  %345 = vmatprep.subr.bf16.mxu0 0
  %346 = vmatpush1.bf16.msra.mxu0 0
  %347 = vmatprep.subr.bf16.mxu0 0
  %348 = vmatpush1.bf16.msra.mxu0 0
  %349 = vmatprep.subr.bf16.mxu0 0
  %350 = vmatpush1.bf16.msra.mxu0 0
  %351 = vmatprep.subr.bf16.mxu0 0
  %352 = vmatpush1.bf16.msra.mxu0 0
  %353 = vmatprep.subr.bf16.mxu0 0
  %354 = vmatpush1.bf16.msra.mxu0 0
  %355 = vmatprep.subr.bf16.mxu0 0
  %356 = vmatpush1.bf16.msra.mxu0 0
  %357 = vmatprep.subr.bf16.mxu0 0
  %358 = vmatpush1.bf16.msra.mxu0 0
  %359 = vmatprep.subr.bf16.mxu0 0
  %360 = vmatpush1.bf16.msra.mxu0 0
  %361 = vmatprep.mubr.bf16.mxu0 0
  %362 = vmatmul.mubr.bf16.gmra.mrb[0].mxu0 %v90
  %v363 = vpop.f32.mrb[0].mxu0
  %v364 = vadd.f32 %v67, %v363
  %v365 = vpop.f32.mrb[0].mxu0
  %v366 = vadd.f32 %v71, %v365
  %v367 = vpop.f32.mrb[0].mxu0
  %v368 = vadd.f32 %v67, %v367
  %v369 = vpop.f32.mrb[0].mxu0
  %v370 = vadd.f32 %v71, %v369
  %371 = vmatprep.mubr.bf16.mxu0 0
  %372 = vmatmul.mubr.bf16.gmra.mrb[0].mxu0 %v91
  %v373 = vpop.f32.mrb[0].mxu0
  %v374 = vadd.f32 %v67, %v373
  %v375 = vpop.f32.mrb[0].mxu0
  %v376 = vadd.f32 %v71, %v375
  %v377 = vpop.f32.mrb[0].mxu0
  %v378 = vadd.f32 %v67, %v377
  %v379 = vpop.f32.mrb[0].mxu0
  %v380 = vadd.f32 %v71, %v379
  %381 = vmatprep.mubr.bf16.mxu0 0
  %382 = vmatmul.mubr.bf16.gmra.mrb[0].mxu0 %v92
  %v383 = vpop.f32.mrb[0].mxu0
  %v384 = vadd.f32 %v67, %v383
  %v385 = vpop.f32.mrb[0].mxu0
  %v386 = vadd.f32 %v71, %v385
  %v387 = vpop.f32.mrb[0].mxu0
  %v388 = vadd.f32 %v67, %v387
  %v389 = vpop.f32.mrb[0].mxu0
  %v390 = vadd.f32 %v71, %v389
  %391 = vmatprep.mubr.bf16.mxu0 0
  %392 = vmatmul.mubr.bf16.gmra.mrb[0].mxu0 %v93
  %v393 = vpop.f32.mrb[0].mxu0
  %v394 = vadd.f32 %v67, %v393
  %v395 = vpop.f32.mrb[0].mxu0
  %v396 = vadd.f32 %v71, %v395
  %v397 = vpop.f32.mrb[0].mxu0
  %v398 = vpop.f32.mrb[0].mxu0
  %399 = vdwg.mxu0
  %400 = vst [vmem:[%s3] sm:$0xff] %v293
  %401 = vst [vmem:[%s3 + $0x8] sm:$0xff] %v295
  %402 = vst [vmem:[%s3 + $0x10] sm:$0xff] %v364
  %403 = vst [vmem:[%s3 + $0x18] sm:$0xff] %v366
  %404 = vst [vmem:[%s3 + $0x20] sm:$0xff] %v297
  %405 = vst [vmem:[%s3 + $0x28] sm:$0xff] %v299
  %406 = vst [vmem:[%s3 + $0x30] sm:$0xff] %v368
  %407 = vst [vmem:[%s3 + $0x38] sm:$0xff] %v370
  %408 = vst [vmem:[%s3 + $0x40] sm:$0xff] %v303
  %409 = vst [vmem:[%s3 + $0x48] sm:$0xff] %v305
  %410 = vst [vmem:[%s3 + $0x50] sm:$0xff] %v374
  %411 = vst [vmem:[%s3 + $0x58] sm:$0xff] %v376
  %412 = vst [vmem:[%s3 + $0x60] sm:$0xff] %v307
  %413 = vst [vmem:[%s3 + $0x68] sm:$0xff] %v309
  %414 = vst [vmem:[%s3 + $0x70] sm:$0xff] %v378
  %415 = vst [vmem:[%s3 + $0x78] sm:$0xff] %v380
  %416 = vst [vmem:[%s3 + $0x80] sm:$0xff] %v313
  %417 = vst [vmem:[%s3 + $0x88] sm:$0xff] %v315
  %418 = vst [vmem:[%s3 + $0x90] sm:$0xff] %v384
  %419 = vst [vmem:[%s3 + $0x98] sm:$0xff] %v386
  %420 = vst [vmem:[%s3 + $0xa0] sm:$0xff] %v317
  %421 = vst [vmem:[%s3 + $0xa8] sm:$0xff] %v319
  %422 = vst [vmem:[%s3 + $0xb0] sm:$0xff] %v388
  %423 = vst [vmem:[%s3 + $0xb8] sm:$0xff] %v390
  %424 = vst [vmem:[%s3 + $0xc0] sm:$0xff] %v323
  %425 = vst [vmem:[%s3 + $0xc8] sm:$0xff] %v325
  %426 = vst [vmem:[%s3 + $0xd0] sm:$0xff] %v394
  %427 = vst [vmem:[%s3 + $0xd8] sm:$0xff] %v396
  // Predicated region
  $region14: #{forward.9} parent=0 // pred_check
    _
  $region15: #{forward.9} parent=0 // pred_check_branch
    %429 = sbr.rel (0) target = $region17
  $region16: #{forward.9} parent=0 // pred_region
    _
  $region17: #{forward.9} parent=0 // pred_fallthru
    _
  // Predicated region
  $region18: #{forward.9} parent=0 // pred_check
    _
  $region19: #{forward.9} parent=0 // pred_check_branch
    %431 = sbr.rel (0) target = $region21
  $region20: #{forward.9} parent=0 // pred_region
    _
  $region21: #{forward.9} parent=0 // pred_fallthru
    _

// kernel: forward.6
$region0: #{forward.6}
  #allocation0 [shape = 'u32[]', space=smem, size = 0x4, offset = 0x4, fixed_abs, tag = 'smem constant byte address 0x4 - core index']
  #allocation1 [shape = 'u32[144,128]{1,0:T(1,128)}', space=vmem, size = 0x12000, scoped, tag = 'internal scratch']
  %s0 = inlined_call_operand.vmem [shape: bf16[64,128], index: 0, kind: input, shape index: {}]
  %s1 = inlined_call_operand.vmem [shape: bf16[128,512], index: 1, kind: input, shape index: {}]
  %s2 = inlined_call_operand.vmem [shape: f32[1,512], index: 2, kind: input, shape index: {}]
  %s3 = inlined_call_operand.vmem [shape: f32[64,512], index: 3, kind: output, shape index: {}]
  %s4 = sld [smem:[#allocation0]]
  $region22: #{forward.6} parent=0
    _
  %s6 = ssub.s32 1, %s4
  %s7 = scalar_select 0, %s6, %s4
  // Predicated region
  $region2: #{forward.6} parent=0 // pred_check
    _
  $region3: #{forward.6} parent=0 // pred_check_branch
    %9 = sbr.rel (0) target = $region5
  $region4: #{forward.6} parent=0 // pred_region
    _
  $region5: #{forward.6} parent=0 // pred_fallthru
    _
  // Predicated region
  $region6: #{forward.6} parent=0 // pred_check
    _
  $region7: #{forward.6} parent=0 // pred_check_branch
    %11 = sbr.rel (0) target = $region9
  $region8: #{forward.6} parent=0 // pred_region
    _
  $region9: #{forward.6} parent=0 // pred_fallthru
    _
  // Predicated region
  $region10: #{forward.6} parent=0 // pred_check
    _
  $region11: #{forward.6} parent=0 // pred_check_branch
    %13 = sbr.rel (0) target = $region13
  $region12: #{forward.6} parent=0 // pred_region
    _
  $region13: #{forward.6} parent=0 // pred_fallthru
    _
  %v15 = vld [vmem:[%s0] sm:$0xf]
  %v16 = vld [vmem:[%s0 + $0x4] sm:$0xf]
  %v17 = vld [vmem:[%s0 + $0x8] sm:$0xf]
  %v18 = vld [vmem:[%s0 + $0xc] sm:$0xf]
  %v19 = vld [vmem:[%s0 + $0x10] sm:$0xf]
  %v20 = vld [vmem:[%s0 + $0x14] sm:$0xf]
  %v21 = vld [vmem:[%s0 + $0x18] sm:$0xf]
  %v22 = vld [vmem:[%s0 + $0x1c] sm:$0xf]
  %v23 = vld [vmem:[%s1] sm:$0xff]
  %v24 = vld [vmem:[%s1 + $0x8] sm:$0xff]
  %v25 = vld [vmem:[%s1 + $0x10] sm:$0xff]
  %v26 = vld [vmem:[%s1 + $0x18] sm:$0xff]
  %v27 = vld [vmem:[%s1 + $0x20] sm:$0xff]
  %v28 = vld [vmem:[%s1 + $0x28] sm:$0xff]
  %v29 = vld [vmem:[%s1 + $0x30] sm:$0xff]
  %v30 = vld [vmem:[%s1 + $0x38] sm:$0xff]
  %v31 = vld [vmem:[%s1 + $0x40] sm:$0xff]
  %v32 = vld [vmem:[%s1 + $0x48] sm:$0xff]
  %v33 = vld [vmem:[%s1 + $0x50] sm:$0xff]
  %v34 = vld [vmem:[%s1 + $0x58] sm:$0xff]
  %v35 = vld [vmem:[%s1 + $0x60] sm:$0xff]
  %v36 = vld [vmem:[%s1 + $0x68] sm:$0xff]
  %v37 = vld [vmem:[%s1 + $0x70] sm:$0xff]
  %v38 = vld [vmem:[%s1 + $0x78] sm:$0xff]
  %v39 = vld [vmem:[%s1 + $0x80] sm:$0xff]
  %v40 = vld [vmem:[%s1 + $0x88] sm:$0xff]
  %v41 = vld [vmem:[%s1 + $0x90] sm:$0xff]
  %v42 = vld [vmem:[%s1 + $0x98] sm:$0xff]
  %v43 = vld [vmem:[%s1 + $0xa0] sm:$0xff]
  %v44 = vld [vmem:[%s1 + $0xa8] sm:$0xff]
  %v45 = vld [vmem:[%s1 + $0xb0] sm:$0xff]
  %v46 = vld [vmem:[%s1 + $0xb8] sm:$0xff]
  %v47 = vld [vmem:[%s1 + $0xc0] sm:$0xff]
  %v48 = vld [vmem:[%s1 + $0xc8] sm:$0xff]
  %v49 = vld [vmem:[%s1 + $0xd0] sm:$0xff]
  %v50 = vld [vmem:[%s1 + $0xd8] sm:$0xff]
  %v51 = vld [vmem:[%s1 + $0xe0] sm:$0xff]
  %v52 = vld [vmem:[%s1 + $0xe8] sm:$0xff]
  %v53 = vld [vmem:[%s1 + $0xf0] sm:$0xff]
  %v54 = vld [vmem:[%s1 + $0xf8] sm:$0xff]
  %v55 = vld [vmem:[%s2] sm:$0xf]
  %v57 = vlaneseq
  %v58 = vshrl.u32 %v57, 7
  %v59 = vsub.s32 0, %v58
  %v60 = vrot.slane %v55, %v59
  %v61 = vlaneseq
  %v62 = vshrl.u32 %v61, 7
  %v63 = vsub.s32 1, %v62
  %v64 = vrot.slane %v55, %v63
  %v65 = vlaneseq
  %v66 = vshrl.u32 %v65, 7
  %v67 = vsub.s32 2, %v66
  %v68 = vrot.slane %v55, %v67
  %v69 = vlaneseq
  %v70 = vshrl.u32 %v69, 7
  %v71 = vsub.s32 3, %v70
  %v72 = vrot.slane %v55, %v71
  %v85 = vunpack.c.l.b16 %v15
  %v86 = vunpack.c.l.b16 %v16
  %v87 = vunpack.c.l.b16 %v17
  %v88 = vunpack.c.l.b16 %v18
  %v89 = vunpack.c.l.b16 %v19
  %v90 = vunpack.c.l.b16 %v20
  %v91 = vunpack.c.l.b16 %v21
  %v92 = vunpack.c.l.b16 %v22
  %v93 = vpack.c.b16 %v86, %v85
  %v94 = vpack.c.b16 %v88, %v87
  %v95 = vpack.c.b16 %v90, %v89
  %v96 = vpack.c.b16 %v92, %v91
  %v133 = vunpack.c.l.b16 %v23
  %v134 = vunpack.c.h.b16 %v23
  %v135 = vunpack.c.l.b16 %v24
  %v136 = vunpack.c.h.b16 %v24
  %v137 = vunpack.c.l.b16 %v25
  %v138 = vunpack.c.h.b16 %v25
  %v139 = vunpack.c.l.b16 %v26
  %v140 = vunpack.c.h.b16 %v26
  %v141 = vunpack.c.l.b16 %v27
  %v142 = vunpack.c.h.b16 %v27
  %v143 = vunpack.c.l.b16 %v28
  %v144 = vunpack.c.h.b16 %v28
  %v145 = vunpack.c.l.b16 %v29
  %v146 = vunpack.c.h.b16 %v29
  %v147 = vunpack.c.l.b16 %v30
  %v148 = vunpack.c.h.b16 %v30
  %v149 = vunpack.c.l.b16 %v31
  %v150 = vunpack.c.h.b16 %v31
  %v151 = vunpack.c.l.b16 %v32
  %v152 = vunpack.c.h.b16 %v32
  %v153 = vunpack.c.l.b16 %v33
  %v154 = vunpack.c.h.b16 %v33
  %v155 = vunpack.c.l.b16 %v34
  %v156 = vunpack.c.h.b16 %v34
  %v157 = vunpack.c.l.b16 %v35
  %v158 = vunpack.c.h.b16 %v35
  %v159 = vunpack.c.l.b16 %v36
  %v160 = vunpack.c.h.b16 %v36
  %v161 = vunpack.c.l.b16 %v37
  %v162 = vunpack.c.h.b16 %v37
  %v163 = vunpack.c.l.b16 %v38
  %v164 = vunpack.c.h.b16 %v38
  %v165 = vunpack.c.l.b16 %v39
  %v166 = vunpack.c.h.b16 %v39
  %v167 = vunpack.c.l.b16 %v40
  %v168 = vunpack.c.h.b16 %v40
  %v169 = vunpack.c.l.b16 %v41
  %v170 = vunpack.c.h.b16 %v41
  %v171 = vunpack.c.l.b16 %v42
  %v172 = vunpack.c.h.b16 %v42
  %v173 = vunpack.c.l.b16 %v43
  %v174 = vunpack.c.h.b16 %v43
  %v175 = vunpack.c.l.b16 %v44
  %v176 = vunpack.c.h.b16 %v44
  %v177 = vunpack.c.l.b16 %v45
  %v178 = vunpack.c.h.b16 %v45
  %v179 = vunpack.c.l.b16 %v46
  %v180 = vunpack.c.h.b16 %v46
  %v181 = vunpack.c.l.b16 %v47
  %v182 = vunpack.c.h.b16 %v47
  %v183 = vunpack.c.l.b16 %v48
  %v184 = vunpack.c.h.b16 %v48
  %v185 = vunpack.c.l.b16 %v49
  %v186 = vunpack.c.h.b16 %v49
  %v187 = vunpack.c.l.b16 %v50
  %v188 = vunpack.c.h.b16 %v50
  %v189 = vunpack.c.l.b16 %v51
  %v190 = vunpack.c.h.b16 %v51
  %v191 = vunpack.c.l.b16 %v52
  %v192 = vunpack.c.h.b16 %v52
  %v193 = vunpack.c.l.b16 %v53
  %v194 = vunpack.c.h.b16 %v53
  %v195 = vunpack.c.l.b16 %v54
  %v196 = vunpack.c.h.b16 %v54
  %v197 = vpack.c.b16 %v137, %v133
  %v198 = vpack.c.b16 %v138, %v134
  %v199 = vpack.c.b16 %v139, %v135
  %v200 = vpack.c.b16 %v140, %v136
  %v201 = vpack.c.b16 %v145, %v141
  %v202 = vpack.c.b16 %v146, %v142
  %v203 = vpack.c.b16 %v147, %v143
  %v204 = vpack.c.b16 %v148, %v144
  %v205 = vpack.c.b16 %v153, %v149
  %v206 = vpack.c.b16 %v154, %v150
  %v207 = vpack.c.b16 %v155, %v151
  %v208 = vpack.c.b16 %v156, %v152
  %v209 = vpack.c.b16 %v161, %v157
  %v210 = vpack.c.b16 %v162, %v158
  %v211 = vpack.c.b16 %v163, %v159
  %v212 = vpack.c.b16 %v164, %v160
  %v213 = vpack.c.b16 %v169, %v165
  %v214 = vpack.c.b16 %v170, %v166
  %v215 = vpack.c.b16 %v171, %v167
  %v216 = vpack.c.b16 %v172, %v168
  %v217 = vpack.c.b16 %v177, %v173
  %v218 = vpack.c.b16 %v178, %v174
  %v219 = vpack.c.b16 %v179, %v175
  %v220 = vpack.c.b16 %v180, %v176
  %v221 = vpack.c.b16 %v185, %v181
  %v222 = vpack.c.b16 %v186, %v182
  %v223 = vpack.c.b16 %v187, %v183
  %v224 = vpack.c.b16 %v188, %v184
  %v225 = vpack.c.b16 %v193, %v189
  %v226 = vpack.c.b16 %v194, %v190
  %v227 = vpack.c.b16 %v195, %v191
  %v228 = vpack.c.b16 %v196, %v192
  %261 = vmatprep.subr.bf16.mxu0 %v198
  %262 = vmatpush1.bf16.msra.mxu0 %v197
  %263 = vmatprep.subr.bf16.mxu0 %v202
  %264 = vmatpush1.bf16.msra.mxu0 %v201
  %265 = vmatprep.subr.bf16.mxu0 %v206
  %266 = vmatpush1.bf16.msra.mxu0 %v205
  %267 = vmatprep.subr.bf16.mxu0 %v210
  %268 = vmatpush1.bf16.msra.mxu0 %v209
  %269 = vmatprep.subr.bf16.mxu0 %v214
  %270 = vmatpush1.bf16.msra.mxu0 %v213
  %271 = vmatprep.subr.bf16.mxu0 %v218
  %272 = vmatpush1.bf16.msra.mxu0 %v217
  %273 = vmatprep.subr.bf16.mxu0 %v222
  %274 = vmatpush1.bf16.msra.mxu0 %v221
  %275 = vmatprep.subr.bf16.mxu0 %v226
  %276 = vmatpush1.bf16.msra.mxu0 %v225
  %277 = vmatprep.subr.bf16.mxu0 0
  %278 = vmatpush1.bf16.msra.mxu0 0
  %279 = vmatprep.subr.bf16.mxu0 0
  %280 = vmatpush1.bf16.msra.mxu0 0
  %281 = vmatprep.subr.bf16.mxu0 0
  %282 = vmatpush1.bf16.msra.mxu0 0
  %283 = vmatprep.subr.bf16.mxu0 0
  %284 = vmatpush1.bf16.msra.mxu0 0
  %285 = vmatprep.subr.bf16.mxu0 0
  %286 = vmatpush1.bf16.msra.mxu0 0
  %287 = vmatprep.subr.bf16.mxu0 0
  %288 = vmatpush1.bf16.msra.mxu0 0
  %289 = vmatprep.subr.bf16.mxu0 0
  %290 = vmatpush1.bf16.msra.mxu0 0
  %291 = vmatprep.subr.bf16.mxu0 0
  %292 = vmatpush1.bf16.msra.mxu0 0
  %293 = vmatprep.mubr.bf16.mxu0 0
  %294 = vmatmul.mubr.bf16.gmra.mrb[0].mxu0 %v93
  %v295 = vpop.f32.mrb[0].mxu0
  %v296 = vadd.f32 %v60, %v295
  %v297 = vpop.f32.mrb[0].mxu0
  %v298 = vadd.f32 %v64, %v297
  %v299 = vpop.f32.mrb[0].mxu0
  %v300 = vadd.f32 %v60, %v299
  %v301 = vpop.f32.mrb[0].mxu0
  %v302 = vadd.f32 %v64, %v301
  %303 = vmatprep.mubr.bf16.mxu0 0
  %304 = vmatmul.mubr.bf16.gmra.mrb[0].mxu0 %v94
  %v305 = vpop.f32.mrb[0].mxu0
  %v306 = vadd.f32 %v60, %v305
  %v307 = vpop.f32.mrb[0].mxu0
  %v308 = vadd.f32 %v64, %v307
  %v309 = vpop.f32.mrb[0].mxu0
  %v310 = vadd.f32 %v60, %v309
  %v311 = vpop.f32.mrb[0].mxu0
  %v312 = vadd.f32 %v64, %v311
  %313 = vmatprep.mubr.bf16.mxu0 0
  %314 = vmatmul.mubr.bf16.gmra.mrb[0].mxu0 %v95
  %v315 = vpop.f32.mrb[0].mxu0
  %v316 = vadd.f32 %v60, %v315
  %v317 = vpop.f32.mrb[0].mxu0
  %v318 = vadd.f32 %v64, %v317
  %v319 = vpop.f32.mrb[0].mxu0
  %v320 = vadd.f32 %v60, %v319
  %v321 = vpop.f32.mrb[0].mxu0
  %v322 = vadd.f32 %v64, %v321
  %323 = vmatprep.mubr.bf16.mxu0 0
  %324 = vmatmul.mubr.bf16.gmra.mrb[0].mxu0 %v96
  %v325 = vpop.f32.mrb[0].mxu0
  %v326 = vadd.f32 %v60, %v325
  %v327 = vpop.f32.mrb[0].mxu0
  %v328 = vadd.f32 %v64, %v327
  %v329 = vpop.f32.mrb[0].mxu0
  %v330 = vadd.f32 %v60, %v329
  %v331 = vpop.f32.mrb[0].mxu0
  %v332 = vadd.f32 %v64, %v331
  %333 = vdwg.mxu0
  %334 = vmatprep.subr.bf16.mxu0 %v200
  %335 = vmatpush1.bf16.msra.mxu0 %v199
  %336 = vmatprep.subr.bf16.mxu0 %v204
  %337 = vmatpush1.bf16.msra.mxu0 %v203
  %338 = vmatprep.subr.bf16.mxu0 %v208
  %339 = vmatpush1.bf16.msra.mxu0 %v207
  %340 = vmatprep.subr.bf16.mxu0 %v212
  %341 = vmatpush1.bf16.msra.mxu0 %v211
  %342 = vmatprep.subr.bf16.mxu0 %v216
  %343 = vmatpush1.bf16.msra.mxu0 %v215
  %344 = vmatprep.subr.bf16.mxu0 %v220
  %345 = vmatpush1.bf16.msra.mxu0 %v219
  %346 = vmatprep.subr.bf16.mxu0 %v224
  %347 = vmatpush1.bf16.msra.mxu0 %v223
  %348 = vmatprep.subr.bf16.mxu0 %v228
  %349 = vmatpush1.bf16.msra.mxu0 %v227
  %350 = vmatprep.subr.bf16.mxu0 0
  %351 = vmatpush1.bf16.msra.mxu0 0
  %352 = vmatprep.subr.bf16.mxu0 0
  %353 = vmatpush1.bf16.msra.mxu0 0
  %354 = vmatprep.subr.bf16.mxu0 0
  %355 = vmatpush1.bf16.msra.mxu0 0
  %356 = vmatprep.subr.bf16.mxu0 0
  %357 = vmatpush1.bf16.msra.mxu0 0
  %358 = vmatprep.subr.bf16.mxu0 0
  %359 = vmatpush1.bf16.msra.mxu0 0
  %360 = vmatprep.subr.bf16.mxu0 0
  %361 = vmatpush1.bf16.msra.mxu0 0
  %362 = vmatprep.subr.bf16.mxu0 0
  %363 = vmatpush1.bf16.msra.mxu0 0
  %364 = vmatprep.subr.bf16.mxu0 0
  %365 = vmatpush1.bf16.msra.mxu0 0
  %366 = vmatprep.mubr.bf16.mxu0 0
  %367 = vmatmul.mubr.bf16.gmra.mrb[0].mxu0 %v93
  %v368 = vpop.f32.mrb[0].mxu0
  %v369 = vadd.f32 %v68, %v368
  %v370 = vpop.f32.mrb[0].mxu0
  %v371 = vadd.f32 %v72, %v370
  %v372 = vpop.f32.mrb[0].mxu0
  %v373 = vadd.f32 %v68, %v372
  %v374 = vpop.f32.mrb[0].mxu0
  %v375 = vadd.f32 %v72, %v374
  %376 = vmatprep.mubr.bf16.mxu0 0
  %377 = vmatmul.mubr.bf16.gmra.mrb[0].mxu0 %v94
  %v378 = vpop.f32.mrb[0].mxu0
  %v379 = vadd.f32 %v68, %v378
  %v380 = vpop.f32.mrb[0].mxu0
  %v381 = vadd.f32 %v72, %v380
  %v382 = vpop.f32.mrb[0].mxu0
  %v383 = vadd.f32 %v68, %v382
  %v384 = vpop.f32.mrb[0].mxu0
  %v385 = vadd.f32 %v72, %v384
  %386 = vmatprep.mubr.bf16.mxu0 0
  %387 = vmatmul.mubr.bf16.gmra.mrb[0].mxu0 %v95
  %v388 = vpop.f32.mrb[0].mxu0
  %v389 = vadd.f32 %v68, %v388
  %v390 = vpop.f32.mrb[0].mxu0
  %v391 = vadd.f32 %v72, %v390
  %v392 = vpop.f32.mrb[0].mxu0
  %v393 = vadd.f32 %v68, %v392
  %v394 = vpop.f32.mrb[0].mxu0
  %v395 = vadd.f32 %v72, %v394
  %396 = vmatprep.mubr.bf16.mxu0 0
  %397 = vmatmul.mubr.bf16.gmra.mrb[0].mxu0 %v96
  %v398 = vpop.f32.mrb[0].mxu0
  %v399 = vadd.f32 %v68, %v398
  %v400 = vpop.f32.mrb[0].mxu0
  %v401 = vadd.f32 %v72, %v400
  %v402 = vpop.f32.mrb[0].mxu0
  %v403 = vadd.f32 %v68, %v402
  %v404 = vpop.f32.mrb[0].mxu0
  %v405 = vadd.f32 %v72, %v404
  %406 = vdwg.mxu0
  %407 = vst [vmem:[%s3] sm:$0xff] %v296
  %408 = vst [vmem:[%s3 + $0x8] sm:$0xff] %v298
  %409 = vst [vmem:[%s3 + $0x10] sm:$0xff] %v369
  %410 = vst [vmem:[%s3 + $0x18] sm:$0xff] %v371
  %411 = vst [vmem:[%s3 + $0x20] sm:$0xff] %v300
  %412 = vst [vmem:[%s3 + $0x28] sm:$0xff] %v302
  %413 = vst [vmem:[%s3 + $0x30] sm:$0xff] %v373
  %414 = vst [vmem:[%s3 + $0x38] sm:$0xff] %v375
  %415 = vst [vmem:[%s3 + $0x40] sm:$0xff] %v306
  %416 = vst [vmem:[%s3 + $0x48] sm:$0xff] %v308
  %417 = vst [vmem:[%s3 + $0x50] sm:$0xff] %v379
  %418 = vst [vmem:[%s3 + $0x58] sm:$0xff] %v381
  %419 = vst [vmem:[%s3 + $0x60] sm:$0xff] %v310
  %420 = vst [vmem:[%s3 + $0x68] sm:$0xff] %v312
  %421 = vst [vmem:[%s3 + $0x70] sm:$0xff] %v383
  %422 = vst [vmem:[%s3 + $0x78] sm:$0xff] %v385
  %423 = vst [vmem:[%s3 + $0x80] sm:$0xff] %v316
  %424 = vst [vmem:[%s3 + $0x88] sm:$0xff] %v318
  %425 = vst [vmem:[%s3 + $0x90] sm:$0xff] %v389
  %426 = vst [vmem:[%s3 + $0x98] sm:$0xff] %v391
  %427 = vst [vmem:[%s3 + $0xa0] sm:$0xff] %v320
  %428 = vst [vmem:[%s3 + $0xa8] sm:$0xff] %v322
  %429 = vst [vmem:[%s3 + $0xb0] sm:$0xff] %v393
  %430 = vst [vmem:[%s3 + $0xb8] sm:$0xff] %v395
  %431 = vst [vmem:[%s3 + $0xc0] sm:$0xff] %v326
  %432 = vst [vmem:[%s3 + $0xc8] sm:$0xff] %v328
  %433 = vst [vmem:[%s3 + $0xd0] sm:$0xff] %v399
  %434 = vst [vmem:[%s3 + $0xd8] sm:$0xff] %v401
  %435 = vst [vmem:[%s3 + $0xe0] sm:$0xff] %v330
  %436 = vst [vmem:[%s3 + $0xe8] sm:$0xff] %v332
  %437 = vst [vmem:[%s3 + $0xf0] sm:$0xff] %v403
  %438 = vst [vmem:[%s3 + $0xf8] sm:$0xff] %v405
  // Predicated region
  $region14: #{forward.6} parent=0 // pred_check
    _
  $region15: #{forward.6} parent=0 // pred_check_branch
    %440 = sbr.rel (0) target = $region17
  $region16: #{forward.6} parent=0 // pred_region
    _
  $region17: #{forward.6} parent=0 // pred_fallthru
    _
  // Predicated region
  $region18: #{forward.6} parent=0 // pred_check
    _
  $region19: #{forward.6} parent=0 // pred_check_branch
    %442 = sbr.rel (0) target = $region21
  $region20: #{forward.6} parent=0 // pred_region
    _
  $region21: #{forward.6} parent=0 // pred_fallthru
    _

// kernel: forward.7
$region0: #{forward.7}
  #allocation0 [shape = 'u32[]', space=smem, size = 0x4, offset = 0x4, fixed_abs, tag = 'smem constant byte address 0x4 - core index']
  #allocation1 [shape = 'u32[144,128]{1,0:T(1,128)}', space=vmem, size = 0x12000, scoped, tag = 'internal scratch']
  #allocation2 [shape = 'f32[8,128]{1,0:T(8,128)}', space=vmem, size = 0x1000, scoped, tag = 'scratch operand']
  #allocation3 [shape = 'f32[8,128]{1,0:T(8,128)}', space=vmem, size = 0x1000, scoped, tag = 'scratch operand']
  %s0 = inlined_call_operand.vmem [shape: f32[8,8,512], index: 0, kind: input, shape index: {}]
  %s1 = inlined_call_operand.vmem [shape: bf16[128,512], index: 1, kind: input, shape index: {}]
  %s2 = inlined_call_operand.vmem [shape: f32[8,128], index: 2, kind: output, shape index: {0}]
  %s3 = inlined_call_operand.vmem [shape: f32[8,128], index: 3, kind: output, shape index: {1}]
  %4 = xla_tuple %s2, %s3
  %s5 = sld [smem:[#allocation0]]
  $region34: #{forward.7} parent=0
    _
  %s7 = ssub.s32 1, %s5
  %s8 = scalar_select 0, %s7, %s5
  // Predicated region
  $region2: #{forward.7} parent=0 // pred_check
    _
  $region3: #{forward.7} parent=0 // pred_check_branch
    %10 = sbr.rel (0) target = $region5
  $region4: #{forward.7} parent=0 // pred_region
    _
  $region5: #{forward.7} parent=0 // pred_fallthru
    _
  // Predicated region
  $region6: #{forward.7} parent=0 // pred_check
    _
  $region7: #{forward.7} parent=0 // pred_check_branch
    %12 = sbr.rel (0) target = $region9
  $region8: #{forward.7} parent=0 // pred_region
    _
  $region9: #{forward.7} parent=0 // pred_fallthru
    _
  %p14 = scmp.eq.s32.totalorder 0, 0
  // Predicated region
  $region10: #{forward.7} parent=0 // pred_check
    %p15 = pneg %p14
  $region11: #{forward.7} parent=0 // pred_check_branch
    %17 = sbr.rel (%p15) target = $region13
  $region12: #{forward.7} parent=0 // pred_region
    %18 = vst [vmem:[#allocation2] sm:$0xff] 0.0
    %19 = vst [vmem:[#allocation3] sm:$0xff] 0.0
  $region13: #{forward.7} parent=0 // pred_fallthru
    _
  %v20 = vld [vmem:[#allocation2] sm:$0xff]
  %v21 = vld [vmem:[#allocation3] sm:$0xff]
  %v22 = vld [vmem:[%s0] sm:$0xff]
  %v23 = vld [vmem:[%s0 + $0x8] sm:$0xff]
  %v24 = vld [vmem:[%s0 + $0x10] sm:$0xff]
  %v25 = vld [vmem:[%s0 + $0x18] sm:$0xff]
  %v26 = vpack.c.bf16 %v20, %v20
  %v27 = vld [vmem:[%s1] sm:$0xff]
  %v28 = vld [vmem:[%s1 + $0x8] sm:$0xff]
  %v29 = vld [vmem:[%s1 + $0x10] sm:$0xff]
  %v30 = vld [vmem:[%s1 + $0x18] sm:$0xff]
  %v31 = vld [vmem:[%s1 + $0x20] sm:$0xff]
  %v32 = vld [vmem:[%s1 + $0x28] sm:$0xff]
  %v33 = vld [vmem:[%s1 + $0x30] sm:$0xff]
  %v34 = vld [vmem:[%s1 + $0x38] sm:$0xff]
  %v35 = vld [vmem:[%s1 + $0x40] sm:$0xff]
  %v36 = vld [vmem:[%s1 + $0x48] sm:$0xff]
  %v37 = vld [vmem:[%s1 + $0x50] sm:$0xff]
  %v38 = vld [vmem:[%s1 + $0x58] sm:$0xff]
  %v39 = vld [vmem:[%s1 + $0x60] sm:$0xff]
  %v40 = vld [vmem:[%s1 + $0x68] sm:$0xff]
  %v41 = vld [vmem:[%s1 + $0x70] sm:$0xff]
  %v42 = vld [vmem:[%s1 + $0x78] sm:$0xff]
  %v43 = vld [vmem:[%s1 + $0x80] sm:$0xff]
  %v44 = vld [vmem:[%s1 + $0x88] sm:$0xff]
  %v45 = vld [vmem:[%s1 + $0x90] sm:$0xff]
  %v46 = vld [vmem:[%s1 + $0x98] sm:$0xff]
  %v47 = vld [vmem:[%s1 + $0xa0] sm:$0xff]
  %v48 = vld [vmem:[%s1 + $0xa8] sm:$0xff]
  %v49 = vld [vmem:[%s1 + $0xb0] sm:$0xff]
  %v50 = vld [vmem:[%s1 + $0xb8] sm:$0xff]
  %v51 = vld [vmem:[%s1 + $0xc0] sm:$0xff]
  %v52 = vld [vmem:[%s1 + $0xc8] sm:$0xff]
  %v53 = vld [vmem:[%s1 + $0xd0] sm:$0xff]
  %v54 = vld [vmem:[%s1 + $0xd8] sm:$0xff]
  %v55 = vld [vmem:[%s1 + $0xe0] sm:$0xff]
  %v56 = vld [vmem:[%s1 + $0xe8] sm:$0xff]
  %v57 = vld [vmem:[%s1 + $0xf0] sm:$0xff]
  %v58 = vld [vmem:[%s1 + $0xf8] sm:$0xff]
  %v91 = vunpack.c.l.b16 %v27
  %v92 = vunpack.c.h.b16 %v27
  %v93 = vunpack.c.l.b16 %v28
  %v94 = vunpack.c.h.b16 %v28
  %v95 = vunpack.c.l.b16 %v29
  %v96 = vunpack.c.h.b16 %v29
  %v97 = vunpack.c.l.b16 %v30
  %v98 = vunpack.c.h.b16 %v30
  %v99 = vunpack.c.l.b16 %v31
  %v100 = vunpack.c.h.b16 %v31
  %v101 = vunpack.c.l.b16 %v32
  %v102 = vunpack.c.h.b16 %v32
  %v103 = vunpack.c.l.b16 %v33
  %v104 = vunpack.c.h.b16 %v33
  %v105 = vunpack.c.l.b16 %v34
  %v106 = vunpack.c.h.b16 %v34
  %v107 = vunpack.c.l.b16 %v35
  %v108 = vunpack.c.h.b16 %v35
  %v109 = vunpack.c.l.b16 %v36
  %v110 = vunpack.c.h.b16 %v36
  %v111 = vunpack.c.l.b16 %v37
  %v112 = vunpack.c.h.b16 %v37
  %v113 = vunpack.c.l.b16 %v38
  %v114 = vunpack.c.h.b16 %v38
  %v115 = vunpack.c.l.b16 %v39
  %v116 = vunpack.c.h.b16 %v39
  %v117 = vunpack.c.l.b16 %v40
  %v118 = vunpack.c.h.b16 %v40
  %v119 = vunpack.c.l.b16 %v41
  %v120 = vunpack.c.h.b16 %v41
  %v121 = vunpack.c.l.b16 %v42
  %v122 = vunpack.c.h.b16 %v42
  %v123 = vunpack.c.l.b16 %v43
  %v124 = vunpack.c.h.b16 %v43
  %v125 = vunpack.c.l.b16 %v44
  %v126 = vunpack.c.h.b16 %v44
  %v127 = vunpack.c.l.b16 %v45
  %v128 = vunpack.c.h.b16 %v45
  %v129 = vunpack.c.l.b16 %v46
  %v130 = vunpack.c.h.b16 %v46
  %v131 = vunpack.c.l.b16 %v47
  %v132 = vunpack.c.h.b16 %v47
  %v133 = vunpack.c.l.b16 %v48
  %v134 = vunpack.c.h.b16 %v48
  %v135 = vunpack.c.l.b16 %v49
  %v136 = vunpack.c.h.b16 %v49
  %v137 = vunpack.c.l.b16 %v50
  %v138 = vunpack.c.h.b16 %v50
  %v139 = vunpack.c.l.b16 %v51
  %v140 = vunpack.c.h.b16 %v51
  %v141 = vunpack.c.l.b16 %v52
  %v142 = vunpack.c.h.b16 %v52
  %v143 = vunpack.c.l.b16 %v53
  %v144 = vunpack.c.h.b16 %v53
  %v145 = vunpack.c.l.b16 %v54
  %v146 = vunpack.c.h.b16 %v54
  %v147 = vunpack.c.l.b16 %v55
  %v148 = vunpack.c.h.b16 %v55
  %v149 = vunpack.c.l.b16 %v56
  %v150 = vunpack.c.h.b16 %v56
  %v151 = vunpack.c.l.b16 %v57
  %v152 = vunpack.c.h.b16 %v57
  %v153 = vunpack.c.l.b16 %v58
  %v154 = vunpack.c.h.b16 %v58
  %v155 = vpack.c.b16 %v95, %v91
  %v156 = vpack.c.b16 %v96, %v92
  %v157 = vpack.c.b16 %v97, %v93
  %v158 = vpack.c.b16 %v98, %v94
  %v159 = vpack.c.b16 %v103, %v99
  %v160 = vpack.c.b16 %v104, %v100
  %v161 = vpack.c.b16 %v105, %v101
  %v162 = vpack.c.b16 %v106, %v102
  %v163 = vpack.c.b16 %v111, %v107
  %v164 = vpack.c.b16 %v112, %v108
  %v165 = vpack.c.b16 %v113, %v109
  %v166 = vpack.c.b16 %v114, %v110
  %v167 = vpack.c.b16 %v119, %v115
  %v168 = vpack.c.b16 %v120, %v116
  %v169 = vpack.c.b16 %v121, %v117
  %v170 = vpack.c.b16 %v122, %v118
  %v171 = vpack.c.b16 %v127, %v123
  %v172 = vpack.c.b16 %v128, %v124
  %v173 = vpack.c.b16 %v129, %v125
  %v174 = vpack.c.b16 %v130, %v126
  %v175 = vpack.c.b16 %v135, %v131
  %v176 = vpack.c.b16 %v136, %v132
  %v177 = vpack.c.b16 %v137, %v133
  %v178 = vpack.c.b16 %v138, %v134
  %v179 = vpack.c.b16 %v143, %v139
  %v180 = vpack.c.b16 %v144, %v140
  %v181 = vpack.c.b16 %v145, %v141
  %v182 = vpack.c.b16 %v146, %v142
  %v183 = vpack.c.b16 %v151, %v147
  %v184 = vpack.c.b16 %v152, %v148
  %v185 = vpack.c.b16 %v153, %v149
  %v186 = vpack.c.b16 %v154, %v150
  %219 = vmatprep.subr.bf16.mxu0 %v156
  %220 = vmatpush1.bf16.msra.mxu0 %v155
  %221 = vmatprep.subr.bf16.mxu0 %v160
  %222 = vmatpush1.bf16.msra.mxu0 %v159
  %223 = vmatprep.subr.bf16.mxu0 %v164
  %224 = vmatpush1.bf16.msra.mxu0 %v163
  %225 = vmatprep.subr.bf16.mxu0 %v168
  %226 = vmatpush1.bf16.msra.mxu0 %v167
  %227 = vmatprep.subr.bf16.mxu0 %v172
  %228 = vmatpush1.bf16.msra.mxu0 %v171
  %229 = vmatprep.subr.bf16.mxu0 %v176
  %230 = vmatpush1.bf16.msra.mxu0 %v175
  %231 = vmatprep.subr.bf16.mxu0 %v180
  %232 = vmatpush1.bf16.msra.mxu0 %v179
  %233 = vmatprep.subr.bf16.mxu0 %v184
  %234 = vmatpush1.bf16.msra.mxu0 %v183
  %235 = vmatprep.subr.bf16.mxu0 0
  %236 = vmatpush1.bf16.msra.mxu0 0
  %237 = vmatprep.subr.bf16.mxu0 0
  %238 = vmatpush1.bf16.msra.mxu0 0
  %239 = vmatprep.subr.bf16.mxu0 0
  %240 = vmatpush1.bf16.msra.mxu0 0
  %241 = vmatprep.subr.bf16.mxu0 0
  %242 = vmatpush1.bf16.msra.mxu0 0
  %243 = vmatprep.subr.bf16.mxu0 0
  %244 = vmatpush1.bf16.msra.mxu0 0
  %245 = vmatprep.subr.bf16.mxu0 0
  %246 = vmatpush1.bf16.msra.mxu0 0
  %247 = vmatprep.subr.bf16.mxu0 0
  %248 = vmatpush1.bf16.msra.mxu0 0
  %249 = vmatprep.subr.bf16.mxu0 0
  %250 = vmatpush1.bf16.msra.mxu0 0
  %251 = vmatprep.mubr.bf16.mxu0 0
  %252 = vmatmul.mubr.bf16.gmra.mrb[0].mxu0 %v26
  %v253 = vpop.f32.mrb[0].mxu0
  %v254 = vadd.f32 0.0, %v253
  %v255 = vpop.f32.mrb[0].mxu0
  %v256 = vadd.f32 0.0, %v255
  %v257 = vpop.f32.mrb[0].mxu0
  %v258 = vpop.f32.mrb[0].mxu0
  %259 = vdwg.mxu0
  %260 = vmatprep.subr.bf16.mxu0 %v158
  %261 = vmatpush1.bf16.msra.mxu0 %v157
  %262 = vmatprep.subr.bf16.mxu0 %v162
  %263 = vmatpush1.bf16.msra.mxu0 %v161
  %264 = vmatprep.subr.bf16.mxu0 %v166
  %265 = vmatpush1.bf16.msra.mxu0 %v165
  %266 = vmatprep.subr.bf16.mxu0 %v170
  %267 = vmatpush1.bf16.msra.mxu0 %v169
  %268 = vmatprep.subr.bf16.mxu0 %v174
  %269 = vmatpush1.bf16.msra.mxu0 %v173
  %270 = vmatprep.subr.bf16.mxu0 %v178
  %271 = vmatpush1.bf16.msra.mxu0 %v177
  %272 = vmatprep.subr.bf16.mxu0 %v182
  %273 = vmatpush1.bf16.msra.mxu0 %v181
  %274 = vmatprep.subr.bf16.mxu0 %v186
  %275 = vmatpush1.bf16.msra.mxu0 %v185
  %276 = vmatprep.subr.bf16.mxu0 0
  %277 = vmatpush1.bf16.msra.mxu0 0
  %278 = vmatprep.subr.bf16.mxu0 0
  %279 = vmatpush1.bf16.msra.mxu0 0
  %280 = vmatprep.subr.bf16.mxu0 0
  %281 = vmatpush1.bf16.msra.mxu0 0
  %282 = vmatprep.subr.bf16.mxu0 0
  %283 = vmatpush1.bf16.msra.mxu0 0
  %284 = vmatprep.subr.bf16.mxu0 0
  %285 = vmatpush1.bf16.msra.mxu0 0
  %286 = vmatprep.subr.bf16.mxu0 0
  %287 = vmatpush1.bf16.msra.mxu0 0
  %288 = vmatprep.subr.bf16.mxu0 0
  %289 = vmatpush1.bf16.msra.mxu0 0
  %290 = vmatprep.subr.bf16.mxu0 0
  %291 = vmatpush1.bf16.msra.mxu0 0
  %292 = vmatprep.mubr.bf16.mxu0 0
  %293 = vmatmul.mubr.bf16.gmra.mrb[0].mxu0 %v26
  %v294 = vpop.f32.mrb[0].mxu0
  %v295 = vadd.f32 0.0, %v294
  %v296 = vpop.f32.mrb[0].mxu0
  %v297 = vadd.f32 0.0, %v296
  %v298 = vpop.f32.mrb[0].mxu0
  %v299 = vpop.f32.mrb[0].mxu0
  %300 = vdwg.mxu0
  %v301 = vadd.f32 %v22, %v254
  %v302 = vadd.f32 %v23, %v256
  %v303 = vadd.f32 %v24, %v295
  %v304 = vadd.f32 %v25, %v297
  %v305 = vxor.u32 %v301, 2147483648
  %v306 = vxor.u32 %v302, 2147483648
  %v307 = vxor.u32 %v303, 2147483648
  %v308 = vmul.f32 %v305, 1.442695
  %v309 = vpow.pop %v308
  %v310 = vmul.f32 %v306, 1.442695
  %v311 = vpow.pop %v310
  %v312 = vmul.f32 %v307, 1.442695
  %v313 = vpow.pop %v312
  %v314 = vadd.f32 %v309, 1.0
  %v315 = vadd.f32 %v311, 1.0
  %v316 = vadd.f32 %v313, 1.0
  %v317 = vrcp.pop %v314
  %v318 = vmul.f32 1.0, %v317
  %v319 = vrcp.pop %v315
  %v320 = vmul.f32 1.0, %v319
  %v321 = vrcp.pop %v316
  %v322 = vmul.f32 1.0, %v321
  %v323 = vtanh.pop %v304
  %v324 = vmul.f32 %v320, %v21
  %v325 = vmul.f32 %v318, %v323
  %v326 = vadd.f32 %v324, %v325
  %v327 = vtanh.pop %v326
  %v328 = vmul.f32 %v322, %v327
  %s329 = scalar_lea.vmem %s0, 32
  %v330 = vld [vmem:[%s329] sm:$0xff]
  %v331 = vld [vmem:[%s329 + $0x8] sm:$0xff]
  %v332 = vld [vmem:[%s329 + $0x10] sm:$0xff]
  %v333 = vld [vmem:[%s329 + $0x18] sm:$0xff]
  %v334 = vpack.c.bf16 %v328, %v328
  %335 = vmatprep.subr.bf16.mxu0 %v156
  %336 = vmatpush1.bf16.msra.mxu0 %v155
  %337 = vmatprep.subr.bf16.mxu0 %v160
  %338 = vmatpush1.bf16.msra.mxu0 %v159
  %339 = vmatprep.subr.bf16.mxu0 %v164
  %340 = vmatpush1.bf16.msra.mxu0 %v163
  %341 = vmatprep.subr.bf16.mxu0 %v168
  %342 = vmatpush1.bf16.msra.mxu0 %v167
  %343 = vmatprep.subr.bf16.mxu0 %v172
  %344 = vmatpush1.bf16.msra.mxu0 %v171
  %345 = vmatprep.subr.bf16.mxu0 %v176
  %346 = vmatpush1.bf16.msra.mxu0 %v175
  %347 = vmatprep.subr.bf16.mxu0 %v180
  %348 = vmatpush1.bf16.msra.mxu0 %v179
  %349 = vmatprep.subr.bf16.mxu0 %v184
  %350 = vmatpush1.bf16.msra.mxu0 %v183
  %351 = vmatprep.subr.bf16.mxu0 0
  %352 = vmatpush1.bf16.msra.mxu0 0
  %353 = vmatprep.subr.bf16.mxu0 0
  %354 = vmatpush1.bf16.msra.mxu0 0
  %355 = vmatprep.subr.bf16.mxu0 0
  %356 = vmatpush1.bf16.msra.mxu0 0
  %357 = vmatprep.subr.bf16.mxu0 0
  %358 = vmatpush1.bf16.msra.mxu0 0
  %359 = vmatprep.subr.bf16.mxu0 0
  %360 = vmatpush1.bf16.msra.mxu0 0
  %361 = vmatprep.subr.bf16.mxu0 0
  %362 = vmatpush1.bf16.msra.mxu0 0
  %363 = vmatprep.subr.bf16.mxu0 0
  %364 = vmatpush1.bf16.msra.mxu0 0
  %365 = vmatprep.subr.bf16.mxu0 0
  %366 = vmatpush1.bf16.msra.mxu0 0
  %367 = vmatprep.mubr.bf16.mxu0 0
  %368 = vmatmul.mubr.bf16.gmra.mrb[0].mxu0 %v334
  %v369 = vpop.f32.mrb[0].mxu0
  %v370 = vadd.f32 0.0, %v369
  %v371 = vpop.f32.mrb[0].mxu0
  %v372 = vadd.f32 0.0, %v371
  %v373 = vpop.f32.mrb[0].mxu0
  %v374 = vpop.f32.mrb[0].mxu0
  %375 = vdwg.mxu0
  %376 = vmatprep.subr.bf16.mxu0 %v158
  %377 = vmatpush1.bf16.msra.mxu0 %v157
  %378 = vmatprep.subr.bf16.mxu0 %v162
  %379 = vmatpush1.bf16.msra.mxu0 %v161
  %380 = vmatprep.subr.bf16.mxu0 %v166
  %381 = vmatpush1.bf16.msra.mxu0 %v165
  %382 = vmatprep.subr.bf16.mxu0 %v170
  %383 = vmatpush1.bf16.msra.mxu0 %v169
  %384 = vmatprep.subr.bf16.mxu0 %v174
  %385 = vmatpush1.bf16.msra.mxu0 %v173
  %386 = vmatprep.subr.bf16.mxu0 %v178
  %387 = vmatpush1.bf16.msra.mxu0 %v177
  %388 = vmatprep.subr.bf16.mxu0 %v182
  %389 = vmatpush1.bf16.msra.mxu0 %v181
  %390 = vmatprep.subr.bf16.mxu0 %v186
  %391 = vmatpush1.bf16.msra.mxu0 %v185
  %392 = vmatprep.subr.bf16.mxu0 0
  %393 = vmatpush1.bf16.msra.mxu0 0
  %394 = vmatprep.subr.bf16.mxu0 0
  %395 = vmatpush1.bf16.msra.mxu0 0
  %396 = vmatprep.subr.bf16.mxu0 0
  %397 = vmatpush1.bf16.msra.mxu0 0
  %398 = vmatprep.subr.bf16.mxu0 0
  %399 = vmatpush1.bf16.msra.mxu0 0
  %400 = vmatprep.subr.bf16.mxu0 0
  %401 = vmatpush1.bf16.msra.mxu0 0
  %402 = vmatprep.subr.bf16.mxu0 0
  %403 = vmatpush1.bf16.msra.mxu0 0
  %404 = vmatprep.subr.bf16.mxu0 0
  %405 = vmatpush1.bf16.msra.mxu0 0
  %406 = vmatprep.subr.bf16.mxu0 0
  %407 = vmatpush1.bf16.msra.mxu0 0
  %408 = vmatprep.mubr.bf16.mxu0 0
  %409 = vmatmul.mubr.bf16.gmra.mrb[0].mxu0 %v334
  %v410 = vpop.f32.mrb[0].mxu0
  %v411 = vadd.f32 0.0, %v410
  %v412 = vpop.f32.mrb[0].mxu0
  %v413 = vadd.f32 0.0, %v412
  %v414 = vpop.f32.mrb[0].mxu0
  %v415 = vpop.f32.mrb[0].mxu0
  %416 = vdwg.mxu0
  %v417 = vadd.f32 %v330, %v370
  %v418 = vadd.f32 %v331, %v372
  %v419 = vadd.f32 %v332, %v411
  %v420 = vadd.f32 %v333, %v413
  %v421 = vxor.u32 %v417, 2147483648
  %v422 = vxor.u32 %v418, 2147483648
  %v423 = vxor.u32 %v419, 2147483648
  %v424 = vmul.f32 %v421, 1.442695
  %v425 = vpow.pop %v424
  %v426 = vmul.f32 %v422, 1.442695
  %v427 = vpow.pop %v426
  %v428 = vmul.f32 %v423, 1.442695
  %v429 = vpow.pop %v428
  %v430 = vadd.f32 %v425, 1.0
  %v431 = vadd.f32 %v427, 1.0
  %v432 = vadd.f32 %v429, 1.0
  %v433 = vrcp.pop %v430
  %v434 = vmul.f32 1.0, %v433
  %v435 = vrcp.pop %v431
  %v436 = vmul.f32 1.0, %v435
  %v437 = vrcp.pop %v432
  %v438 = vmul.f32 1.0, %v437
  %v439 = vtanh.pop %v420
  %v440 = vmul.f32 %v436, %v326
  %v441 = vmul.f32 %v434, %v439
  %v442 = vadd.f32 %v440, %v441
  %v443 = vtanh.pop %v442
  %v444 = vmul.f32 %v438, %v443
  %s445 = scalar_lea.vmem %s0, 64
  %v446 = vld [vmem:[%s445] sm:$0xff]
  %v447 = vld [vmem:[%s445 + $0x8] sm:$0xff]
  %v448 = vld [vmem:[%s445 + $0x10] sm:$0xff]
  %v449 = vld [vmem:[%s445 + $0x18] sm:$0xff]
  %v450 = vpack.c.bf16 %v444, %v444
  %451 = vmatprep.subr.bf16.mxu0 %v156
  %452 = vmatpush1.bf16.msra.mxu0 %v155
  %453 = vmatprep.subr.bf16.mxu0 %v160
  %454 = vmatpush1.bf16.msra.mxu0 %v159
  %455 = vmatprep.subr.bf16.mxu0 %v164
  %456 = vmatpush1.bf16.msra.mxu0 %v163
  %457 = vmatprep.subr.bf16.mxu0 %v168
  %458 = vmatpush1.bf16.msra.mxu0 %v167
  %459 = vmatprep.subr.bf16.mxu0 %v172
  %460 = vmatpush1.bf16.msra.mxu0 %v171
  %461 = vmatprep.subr.bf16.mxu0 %v176
  %462 = vmatpush1.bf16.msra.mxu0 %v175
  %463 = vmatprep.subr.bf16.mxu0 %v180
  %464 = vmatpush1.bf16.msra.mxu0 %v179
  %465 = vmatprep.subr.bf16.mxu0 %v184
  %466 = vmatpush1.bf16.msra.mxu0 %v183
  %467 = vmatprep.subr.bf16.mxu0 0
  %468 = vmatpush1.bf16.msra.mxu0 0
  %469 = vmatprep.subr.bf16.mxu0 0
  %470 = vmatpush1.bf16.msra.mxu0 0
  %471 = vmatprep.subr.bf16.mxu0 0
  %472 = vmatpush1.bf16.msra.mxu0 0
  %473 = vmatprep.subr.bf16.mxu0 0
  %474 = vmatpush1.bf16.msra.mxu0 0
  %475 = vmatprep.subr.bf16.mxu0 0
  %476 = vmatpush1.bf16.msra.mxu0 0
  %477 = vmatprep.subr.bf16.mxu0 0
  %478 = vmatpush1.bf16.msra.mxu0 0
  %479 = vmatprep.subr.bf16.mxu0 0
  %480 = vmatpush1.bf16.msra.mxu0 0
  %481 = vmatprep.subr.bf16.mxu0 0
  %482 = vmatpush1.bf16.msra.mxu0 0
  %483 = vmatprep.mubr.bf16.mxu0 0
  %484 = vmatmul.mubr.bf16.gmra.mrb[0].mxu0 %v450
  %v485 = vpop.f32.mrb[0].mxu0
  %v486 = vadd.f32 0.0, %v485
  %v487 = vpop.f32.mrb[0].mxu0
  %v488 = vadd.f32 0.0, %v487
  %v489 = vpop.f32.mrb[0].mxu0
  %v490 = vpop.f32.mrb[0].mxu0
  %491 = vdwg.mxu0
  %492 = vmatprep.subr.bf16.mxu0 %v158
  %493 = vmatpush1.bf16.msra.mxu0 %v157
  %494 = vmatprep.subr.bf16.mxu0 %v162
  %495 = vmatpush1.bf16.msra.mxu0 %v161
  %496 = vmatprep.subr.bf16.mxu0 %v166
  %497 = vmatpush1.bf16.msra.mxu0 %v165
  %498 = vmatprep.subr.bf16.mxu0 %v170
  %499 = vmatpush1.bf16.msra.mxu0 %v169
  %500 = vmatprep.subr.bf16.mxu0 %v174
  %501 = vmatpush1.bf16.msra.mxu0 %v173
  %502 = vmatprep.subr.bf16.mxu0 %v178
  %503 = vmatpush1.bf16.msra.mxu0 %v177
  %504 = vmatprep.subr.bf16.mxu0 %v182
  %505 = vmatpush1.bf16.msra.mxu0 %v181
  %506 = vmatprep.subr.bf16.mxu0 %v186
  %507 = vmatpush1.bf16.msra.mxu0 %v185
  %508 = vmatprep.subr.bf16.mxu0 0
  %509 = vmatpush1.bf16.msra.mxu0 0
  %510 = vmatprep.subr.bf16.mxu0 0
  %511 = vmatpush1.bf16.msra.mxu0 0
  %512 = vmatprep.subr.bf16.mxu0 0
  %513 = vmatpush1.bf16.msra.mxu0 0
  %514 = vmatprep.subr.bf16.mxu0 0
  %515 = vmatpush1.bf16.msra.mxu0 0
  %516 = vmatprep.subr.bf16.mxu0 0
  %517 = vmatpush1.bf16.msra.mxu0 0
  %518 = vmatprep.subr.bf16.mxu0 0
  %519 = vmatpush1.bf16.msra.mxu0 0
  %520 = vmatprep.subr.bf16.mxu0 0
  %521 = vmatpush1.bf16.msra.mxu0 0
  %522 = vmatprep.subr.bf16.mxu0 0
  %523 = vmatpush1.bf16.msra.mxu0 0
  %524 = vmatprep.mubr.bf16.mxu0 0
  %525 = vmatmul.mubr.bf16.gmra.mrb[0].mxu0 %v450
  %v526 = vpop.f32.mrb[0].mxu0
  %v527 = vadd.f32 0.0, %v526
  %v528 = vpop.f32.mrb[0].mxu0
  %v529 = vadd.f32 0.0, %v528
  %v530 = vpop.f32.mrb[0].mxu0
  %v531 = vpop.f32.mrb[0].mxu0
  %532 = vdwg.mxu0
  %v533 = vadd.f32 %v446, %v486
  %v534 = vadd.f32 %v447, %v488
  %v535 = vadd.f32 %v448, %v527
  %v536 = vadd.f32 %v449, %v529
  %v537 = vxor.u32 %v533, 2147483648
  %v538 = vxor.u32 %v534, 2147483648
  %v539 = vxor.u32 %v535, 2147483648
  %v540 = vmul.f32 %v537, 1.442695
  %v541 = vpow.pop %v540
  %v542 = vmul.f32 %v538, 1.442695
  %v543 = vpow.pop %v542
  %v544 = vmul.f32 %v539, 1.442695
  %v545 = vpow.pop %v544
  %v546 = vadd.f32 %v541, 1.0
  %v547 = vadd.f32 %v543, 1.0
  %v548 = vadd.f32 %v545, 1.0
  %v549 = vrcp.pop %v546
  %v550 = vmul.f32 1.0, %v549
  %v551 = vrcp.pop %v547
  %v552 = vmul.f32 1.0, %v551
  %v553 = vrcp.pop %v548
  %v554 = vmul.f32 1.0, %v553
  %v555 = vtanh.pop %v536
  %v556 = vmul.f32 %v552, %v442
  %v557 = vmul.f32 %v550, %v555
  %v558 = vadd.f32 %v556, %v557
  %v559 = vtanh.pop %v558
  %v560 = vmul.f32 %v554, %v559
  %s561 = scalar_lea.vmem %s0, 96
  %v562 = vld [vmem:[%s561] sm:$0xff]
  %v563 = vld [vmem:[%s561 + $0x8] sm:$0xff]
  %v564 = vld [vmem:[%s561 + $0x10] sm:$0xff]
  %v565 = vld [vmem:[%s561 + $0x18] sm:$0xff]
  %v566 = vpack.c.bf16 %v560, %v560
  %567 = vmatprep.subr.bf16.mxu0 %v156
  %568 = vmatpush1.bf16.msra.mxu0 %v155
  %569 = vmatprep.subr.bf16.mxu0 %v160
  %570 = vmatpush1.bf16.msra.mxu0 %v159
  %571 = vmatprep.subr.bf16.mxu0 %v164
  %572 = vmatpush1.bf16.msra.mxu0 %v163
  %573 = vmatprep.subr.bf16.mxu0 %v168
  %574 = vmatpush1.bf16.msra.mxu0 %v167
  %575 = vmatprep.subr.bf16.mxu0 %v172
  %576 = vmatpush1.bf16.msra.mxu0 %v171
  %577 = vmatprep.subr.bf16.mxu0 %v176
  %578 = vmatpush1.bf16.msra.mxu0 %v175
  %579 = vmatprep.subr.bf16.mxu0 %v180
  %580 = vmatpush1.bf16.msra.mxu0 %v179
  %581 = vmatprep.subr.bf16.mxu0 %v184
  %582 = vmatpush1.bf16.msra.mxu0 %v183
  %583 = vmatprep.subr.bf16.mxu0 0
  %584 = vmatpush1.bf16.msra.mxu0 0
  %585 = vmatprep.subr.bf16.mxu0 0
  %586 = vmatpush1.bf16.msra.mxu0 0
  %587 = vmatprep.subr.bf16.mxu0 0
  %588 = vmatpush1.bf16.msra.mxu0 0
  %589 = vmatprep.subr.bf16.mxu0 0
  %590 = vmatpush1.bf16.msra.mxu0 0
  %591 = vmatprep.subr.bf16.mxu0 0
  %592 = vmatpush1.bf16.msra.mxu0 0
  %593 = vmatprep.subr.bf16.mxu0 0
  %594 = vmatpush1.bf16.msra.mxu0 0
  %595 = vmatprep.subr.bf16.mxu0 0
  %596 = vmatpush1.bf16.msra.mxu0 0
  %597 = vmatprep.subr.bf16.mxu0 0
  %598 = vmatpush1.bf16.msra.mxu0 0
  %599 = vmatprep.mubr.bf16.mxu0 0
  %600 = vmatmul.mubr.bf16.gmra.mrb[0].mxu0 %v566
  %v601 = vpop.f32.mrb[0].mxu0
  %v602 = vadd.f32 0.0, %v601
  %v603 = vpop.f32.mrb[0].mxu0
  %v604 = vadd.f32 0.0, %v603
  %v605 = vpop.f32.mrb[0].mxu0
  %v606 = vpop.f32.mrb[0].mxu0
  %607 = vdwg.mxu0
  %608 = vmatprep.subr.bf16.mxu0 %v158
  %609 = vmatpush1.bf16.msra.mxu0 %v157
  %610 = vmatprep.subr.bf16.mxu0 %v162
  %611 = vmatpush1.bf16.msra.mxu0 %v161
  %612 = vmatprep.subr.bf16.mxu0 %v166
  %613 = vmatpush1.bf16.msra.mxu0 %v165
  %614 = vmatprep.subr.bf16.mxu0 %v170
  %615 = vmatpush1.bf16.msra.mxu0 %v169
  %616 = vmatprep.subr.bf16.mxu0 %v174
  %617 = vmatpush1.bf16.msra.mxu0 %v173
  %618 = vmatprep.subr.bf16.mxu0 %v178
  %619 = vmatpush1.bf16.msra.mxu0 %v177
  %620 = vmatprep.subr.bf16.mxu0 %v182
  %621 = vmatpush1.bf16.msra.mxu0 %v181
  %622 = vmatprep.subr.bf16.mxu0 %v186
  %623 = vmatpush1.bf16.msra.mxu0 %v185
  %624 = vmatprep.subr.bf16.mxu0 0
  %625 = vmatpush1.bf16.msra.mxu0 0
  %626 = vmatprep.subr.bf16.mxu0 0
  %627 = vmatpush1.bf16.msra.mxu0 0
  %628 = vmatprep.subr.bf16.mxu0 0
  %629 = vmatpush1.bf16.msra.mxu0 0
  %630 = vmatprep.subr.bf16.mxu0 0
  %631 = vmatpush1.bf16.msra.mxu0 0
  %632 = vmatprep.subr.bf16.mxu0 0
  %633 = vmatpush1.bf16.msra.mxu0 0
  %634 = vmatprep.subr.bf16.mxu0 0
  %635 = vmatpush1.bf16.msra.mxu0 0
  %636 = vmatprep.subr.bf16.mxu0 0
  %637 = vmatpush1.bf16.msra.mxu0 0
  %638 = vmatprep.subr.bf16.mxu0 0
  %639 = vmatpush1.bf16.msra.mxu0 0
  %640 = vmatprep.mubr.bf16.mxu0 0
  %641 = vmatmul.mubr.bf16.gmra.mrb[0].mxu0 %v566
  %v642 = vpop.f32.mrb[0].mxu0
  %v643 = vadd.f32 0.0, %v642
  %v644 = vpop.f32.mrb[0].mxu0
  %v645 = vadd.f32 0.0, %v644
  %v646 = vpop.f32.mrb[0].mxu0
  %v647 = vpop.f32.mrb[0].mxu0
  %648 = vdwg.mxu0
  %v649 = vadd.f32 %v562, %v602
  %v650 = vadd.f32 %v563, %v604
  %v651 = vadd.f32 %v564, %v643
  %v652 = vadd.f32 %v565, %v645
  %v653 = vxor.u32 %v649, 2147483648
  %v654 = vxor.u32 %v650, 2147483648
  %v655 = vxor.u32 %v651, 2147483648
  %v656 = vmul.f32 %v653, 1.442695
  %v657 = vpow.pop %v656
  %v658 = vmul.f32 %v654, 1.442695
  %v659 = vpow.pop %v658
  %v660 = vmul.f32 %v655, 1.442695
  %v661 = vpow.pop %v660
  %v662 = vadd.f32 %v657, 1.0
  %v663 = vadd.f32 %v659, 1.0
  %v664 = vadd.f32 %v661, 1.0
  %v665 = vrcp.pop %v662
  %v666 = vmul.f32 1.0, %v665
  %v667 = vrcp.pop %v663
  %v668 = vmul.f32 1.0, %v667
  %v669 = vrcp.pop %v664
  %v670 = vmul.f32 1.0, %v669
  %v671 = vtanh.pop %v652
  %v672 = vmul.f32 %v668, %v558
  %v673 = vmul.f32 %v666, %v671
  %v674 = vadd.f32 %v672, %v673
  %v675 = vtanh.pop %v674
  %v676 = vmul.f32 %v670, %v675
  %s677 = scalar_lea.vmem %s0, 128
  %v678 = vld [vmem:[%s677] sm:$0xff]
  %v679 = vld [vmem:[%s677 + $0x8] sm:$0xff]
  %v680 = vld [vmem:[%s677 + $0x10] sm:$0xff]
  %v681 = vld [vmem:[%s677 + $0x18] sm:$0xff]
  %v682 = vpack.c.bf16 %v676, %v676
  %683 = vmatprep.subr.bf16.mxu0 %v156
  %684 = vmatpush1.bf16.msra.mxu0 %v155
  %685 = vmatprep.subr.bf16.mxu0 %v160
  %686 = vmatpush1.bf16.msra.mxu0 %v159
  %687 = vmatprep.subr.bf16.mxu0 %v164
  %688 = vmatpush1.bf16.msra.mxu0 %v163
  %689 = vmatprep.subr.bf16.mxu0 %v168
  %690 = vmatpush1.bf16.msra.mxu0 %v167
  %691 = vmatprep.subr.bf16.mxu0 %v172
  %692 = vmatpush1.bf16.msra.mxu0 %v171
  %693 = vmatprep.subr.bf16.mxu0 %v176
  %694 = vmatpush1.bf16.msra.mxu0 %v175
  %695 = vmatprep.subr.bf16.mxu0 %v180
  %696 = vmatpush1.bf16.msra.mxu0 %v179
  %697 = vmatprep.subr.bf16.mxu0 %v184
  %698 = vmatpush1.bf16.msra.mxu0 %v183
  %699 = vmatprep.subr.bf16.mxu0 0
  %700 = vmatpush1.bf16.msra.mxu0 0
  %701 = vmatprep.subr.bf16.mxu0 0
  %702 = vmatpush1.bf16.msra.mxu0 0
  %703 = vmatprep.subr.bf16.mxu0 0
  %704 = vmatpush1.bf16.msra.mxu0 0
  %705 = vmatprep.subr.bf16.mxu0 0
  %706 = vmatpush1.bf16.msra.mxu0 0
  %707 = vmatprep.subr.bf16.mxu0 0
  %708 = vmatpush1.bf16.msra.mxu0 0
  %709 = vmatprep.subr.bf16.mxu0 0
  %710 = vmatpush1.bf16.msra.mxu0 0
  %711 = vmatprep.subr.bf16.mxu0 0
  %712 = vmatpush1.bf16.msra.mxu0 0
  %713 = vmatprep.subr.bf16.mxu0 0
  %714 = vmatpush1.bf16.msra.mxu0 0
  %715 = vmatprep.mubr.bf16.mxu0 0
  %716 = vmatmul.mubr.bf16.gmra.mrb[0].mxu0 %v682
  %v717 = vpop.f32.mrb[0].mxu0
  %v718 = vadd.f32 0.0, %v717
  %v719 = vpop.f32.mrb[0].mxu0
  %v720 = vadd.f32 0.0, %v719
  %v721 = vpop.f32.mrb[0].mxu0
  %v722 = vpop.f32.mrb[0].mxu0
  %723 = vdwg.mxu0
  %724 = vmatprep.subr.bf16.mxu0 %v158
  %725 = vmatpush1.bf16.msra.mxu0 %v157
  %726 = vmatprep.subr.bf16.mxu0 %v162
  %727 = vmatpush1.bf16.msra.mxu0 %v161
  %728 = vmatprep.subr.bf16.mxu0 %v166
  %729 = vmatpush1.bf16.msra.mxu0 %v165
  %730 = vmatprep.subr.bf16.mxu0 %v170
  %731 = vmatpush1.bf16.msra.mxu0 %v169
  %732 = vmatprep.subr.bf16.mxu0 %v174
  %733 = vmatpush1.bf16.msra.mxu0 %v173
  %734 = vmatprep.subr.bf16.mxu0 %v178
  %735 = vmatpush1.bf16.msra.mxu0 %v177
  %736 = vmatprep.subr.bf16.mxu0 %v182
  %737 = vmatpush1.bf16.msra.mxu0 %v181
  %738 = vmatprep.subr.bf16.mxu0 %v186
  %739 = vmatpush1.bf16.msra.mxu0 %v185
  %740 = vmatprep.subr.bf16.mxu0 0
  %741 = vmatpush1.bf16.msra.mxu0 0
  %742 = vmatprep.subr.bf16.mxu0 0
  %743 = vmatpush1.bf16.msra.mxu0 0
  %744 = vmatprep.subr.bf16.mxu0 0
  %745 = vmatpush1.bf16.msra.mxu0 0
  %746 = vmatprep.subr.bf16.mxu0 0
  %747 = vmatpush1.bf16.msra.mxu0 0
  %748 = vmatprep.subr.bf16.mxu0 0
  %749 = vmatpush1.bf16.msra.mxu0 0
  %750 = vmatprep.subr.bf16.mxu0 0
  %751 = vmatpush1.bf16.msra.mxu0 0
  %752 = vmatprep.subr.bf16.mxu0 0
  %753 = vmatpush1.bf16.msra.mxu0 0
  %754 = vmatprep.subr.bf16.mxu0 0
  %755 = vmatpush1.bf16.msra.mxu0 0
  %756 = vmatprep.mubr.bf16.mxu0 0
  %757 = vmatmul.mubr.bf16.gmra.mrb[0].mxu0 %v682
  %v758 = vpop.f32.mrb[0].mxu0
  %v759 = vadd.f32 0.0, %v758
  %v760 = vpop.f32.mrb[0].mxu0
  %v761 = vadd.f32 0.0, %v760
  %v762 = vpop.f32.mrb[0].mxu0
  %v763 = vpop.f32.mrb[0].mxu0
  %764 = vdwg.mxu0
  %v765 = vadd.f32 %v678, %v718
  %v766 = vadd.f32 %v679, %v720
  %v767 = vadd.f32 %v680, %v759
  %v768 = vadd.f32 %v681, %v761
  %v769 = vxor.u32 %v765, 2147483648
  %v770 = vxor.u32 %v766, 2147483648
  %v771 = vxor.u32 %v767, 2147483648
  %v772 = vmul.f32 %v769, 1.442695
  %v773 = vpow.pop %v772
  %v774 = vmul.f32 %v770, 1.442695
  %v775 = vpow.pop %v774
  %v776 = vmul.f32 %v771, 1.442695
  %v777 = vpow.pop %v776
  %v778 = vadd.f32 %v773, 1.0
  %v779 = vadd.f32 %v775, 1.0
  %v780 = vadd.f32 %v777, 1.0
  %v781 = vrcp.pop %v778
  %v782 = vmul.f32 1.0, %v781
  %v783 = vrcp.pop %v779
  %v784 = vmul.f32 1.0, %v783
  %v785 = vrcp.pop %v780
  %v786 = vmul.f32 1.0, %v785
  %v787 = vtanh.pop %v768
  %v788 = vmul.f32 %v784, %v674
  %v789 = vmul.f32 %v782, %v787
  %v790 = vadd.f32 %v788, %v789
  %v791 = vtanh.pop %v790
  %v792 = vmul.f32 %v786, %v791
  %s793 = scalar_lea.vmem %s0, 160
  %v794 = vld [vmem:[%s793] sm:$0xff]
  %v795 = vld [vmem:[%s793 + $0x8] sm:$0xff]
  %v796 = vld [vmem:[%s793 + $0x10] sm:$0xff]
  %v797 = vld [vmem:[%s793 + $0x18] sm:$0xff]
  %v798 = vpack.c.bf16 %v792, %v792
  %799 = vmatprep.subr.bf16.mxu0 %v156
  %800 = vmatpush1.bf16.msra.mxu0 %v155
  %801 = vmatprep.subr.bf16.mxu0 %v160
  %802 = vmatpush1.bf16.msra.mxu0 %v159
  %803 = vmatprep.subr.bf16.mxu0 %v164
  %804 = vmatpush1.bf16.msra.mxu0 %v163
  %805 = vmatprep.subr.bf16.mxu0 %v168
  %806 = vmatpush1.bf16.msra.mxu0 %v167
  %807 = vmatprep.subr.bf16.mxu0 %v172
  %808 = vmatpush1.bf16.msra.mxu0 %v171
  %809 = vmatprep.subr.bf16.mxu0 %v176
  %810 = vmatpush1.bf16.msra.mxu0 %v175
  %811 = vmatprep.subr.bf16.mxu0 %v180
  %812 = vmatpush1.bf16.msra.mxu0 %v179
  %813 = vmatprep.subr.bf16.mxu0 %v184
  %814 = vmatpush1.bf16.msra.mxu0 %v183
  %815 = vmatprep.subr.bf16.mxu0 0
  %816 = vmatpush1.bf16.msra.mxu0 0
  %817 = vmatprep.subr.bf16.mxu0 0
  %818 = vmatpush1.bf16.msra.mxu0 0
  %819 = vmatprep.subr.bf16.mxu0 0
  %820 = vmatpush1.bf16.msra.mxu0 0
  %821 = vmatprep.subr.bf16.mxu0 0
  %822 = vmatpush1.bf16.msra.mxu0 0
  %823 = vmatprep.subr.bf16.mxu0 0
  %824 = vmatpush1.bf16.msra.mxu0 0
  %825 = vmatprep.subr.bf16.mxu0 0
  %826 = vmatpush1.bf16.msra.mxu0 0
  %827 = vmatprep.subr.bf16.mxu0 0
  %828 = vmatpush1.bf16.msra.mxu0 0
  %829 = vmatprep.subr.bf16.mxu0 0
  %830 = vmatpush1.bf16.msra.mxu0 0
  %831 = vmatprep.mubr.bf16.mxu0 0
  %832 = vmatmul.mubr.bf16.gmra.mrb[0].mxu0 %v798
  %v833 = vpop.f32.mrb[0].mxu0
  %v834 = vadd.f32 0.0, %v833
  %v835 = vpop.f32.mrb[0].mxu0
  %v836 = vadd.f32 0.0, %v835
  %v837 = vpop.f32.mrb[0].mxu0
  %v838 = vpop.f32.mrb[0].mxu0
  %839 = vdwg.mxu0
  %840 = vmatprep.subr.bf16.mxu0 %v158
  %841 = vmatpush1.bf16.msra.mxu0 %v157
  %842 = vmatprep.subr.bf16.mxu0 %v162
  %843 = vmatpush1.bf16.msra.mxu0 %v161
  %844 = vmatprep.subr.bf16.mxu0 %v166
  %845 = vmatpush1.bf16.msra.mxu0 %v165
  %846 = vmatprep.subr.bf16.mxu0 %v170
  %847 = vmatpush1.bf16.msra.mxu0 %v169
  %848 = vmatprep.subr.bf16.mxu0 %v174
  %849 = vmatpush1.bf16.msra.mxu0 %v173
  %850 = vmatprep.subr.bf16.mxu0 %v178
  %851 = vmatpush1.bf16.msra.mxu0 %v177
  %852 = vmatprep.subr.bf16.mxu0 %v182
  %853 = vmatpush1.bf16.msra.mxu0 %v181
  %854 = vmatprep.subr.bf16.mxu0 %v186
  %855 = vmatpush1.bf16.msra.mxu0 %v185
  %856 = vmatprep.subr.bf16.mxu0 0
  %857 = vmatpush1.bf16.msra.mxu0 0
  %858 = vmatprep.subr.bf16.mxu0 0
  %859 = vmatpush1.bf16.msra.mxu0 0
  %860 = vmatprep.subr.bf16.mxu0 0
  %861 = vmatpush1.bf16.msra.mxu0 0
  %862 = vmatprep.subr.bf16.mxu0 0
  %863 = vmatpush1.bf16.msra.mxu0 0
  %864 = vmatprep.subr.bf16.mxu0 0
  %865 = vmatpush1.bf16.msra.mxu0 0
  %866 = vmatprep.subr.bf16.mxu0 0
  %867 = vmatpush1.bf16.msra.mxu0 0
  %868 = vmatprep.subr.bf16.mxu0 0
  %869 = vmatpush1.bf16.msra.mxu0 0
  %870 = vmatprep.subr.bf16.mxu0 0
  %871 = vmatpush1.bf16.msra.mxu0 0
  %872 = vmatprep.mubr.bf16.mxu0 0
  %873 = vmatmul.mubr.bf16.gmra.mrb[0].mxu0 %v798
  %v874 = vpop.f32.mrb[0].mxu0
  %v875 = vadd.f32 0.0, %v874
  %v876 = vpop.f32.mrb[0].mxu0
  %v877 = vadd.f32 0.0, %v876
  %v878 = vpop.f32.mrb[0].mxu0
  %v879 = vpop.f32.mrb[0].mxu0
  %880 = vdwg.mxu0
  %v881 = vadd.f32 %v794, %v834
  %v882 = vadd.f32 %v795, %v836
  %v883 = vadd.f32 %v796, %v875
  %v884 = vadd.f32 %v797, %v877
  %v885 = vxor.u32 %v881, 2147483648
  %v886 = vxor.u32 %v882, 2147483648
  %v887 = vxor.u32 %v883, 2147483648
  %v888 = vmul.f32 %v885, 1.442695
  %v889 = vpow.pop %v888
  %v890 = vmul.f32 %v886, 1.442695
  %v891 = vpow.pop %v890
  %v892 = vmul.f32 %v887, 1.442695
  %v893 = vpow.pop %v892
  %v894 = vadd.f32 %v889, 1.0
  %v895 = vadd.f32 %v891, 1.0
  %v896 = vadd.f32 %v893, 1.0
  %v897 = vrcp.pop %v894
  %v898 = vmul.f32 1.0, %v897
  %v899 = vrcp.pop %v895
  %v900 = vmul.f32 1.0, %v899
  %v901 = vrcp.pop %v896
  %v902 = vmul.f32 1.0, %v901
  %v903 = vtanh.pop %v884
  %v904 = vmul.f32 %v900, %v790
  %v905 = vmul.f32 %v898, %v903
  %v906 = vadd.f32 %v904, %v905
  %v907 = vtanh.pop %v906
  %v908 = vmul.f32 %v902, %v907
  %s909 = scalar_lea.vmem %s0, 192
  %v910 = vld [vmem:[%s909] sm:$0xff]
  %v911 = vld [vmem:[%s909 + $0x8] sm:$0xff]
  %v912 = vld [vmem:[%s909 + $0x10] sm:$0xff]
  %v913 = vld [vmem:[%s909 + $0x18] sm:$0xff]
  %v914 = vpack.c.bf16 %v908, %v908
  %915 = vmatprep.subr.bf16.mxu0 %v156
  %916 = vmatpush1.bf16.msra.mxu0 %v155
  %917 = vmatprep.subr.bf16.mxu0 %v160
  %918 = vmatpush1.bf16.msra.mxu0 %v159
  %919 = vmatprep.subr.bf16.mxu0 %v164
  %920 = vmatpush1.bf16.msra.mxu0 %v163
  %921 = vmatprep.subr.bf16.mxu0 %v168
  %922 = vmatpush1.bf16.msra.mxu0 %v167
  %923 = vmatprep.subr.bf16.mxu0 %v172
  %924 = vmatpush1.bf16.msra.mxu0 %v171
  %925 = vmatprep.subr.bf16.mxu0 %v176
  %926 = vmatpush1.bf16.msra.mxu0 %v175
  %927 = vmatprep.subr.bf16.mxu0 %v180
  %928 = vmatpush1.bf16.msra.mxu0 %v179
  %929 = vmatprep.subr.bf16.mxu0 %v184
  %930 = vmatpush1.bf16.msra.mxu0 %v183
  %931 = vmatprep.subr.bf16.mxu0 0
  %932 = vmatpush1.bf16.msra.mxu0 0
  %933 = vmatprep.subr.bf16.mxu0 0
  %934 = vmatpush1.bf16.msra.mxu0 0
  %935 = vmatprep.subr.bf16.mxu0 0
  %936 = vmatpush1.bf16.msra.mxu0 0
  %937 = vmatprep.subr.bf16.mxu0 0
  %938 = vmatpush1.bf16.msra.mxu0 0
  %939 = vmatprep.subr.bf16.mxu0 0
  %940 = vmatpush1.bf16.msra.mxu0 0
  %941 = vmatprep.subr.bf16.mxu0 0
  %942 = vmatpush1.bf16.msra.mxu0 0
  %943 = vmatprep.subr.bf16.mxu0 0
  %944 = vmatpush1.bf16.msra.mxu0 0
  %945 = vmatprep.subr.bf16.mxu0 0
  %946 = vmatpush1.bf16.msra.mxu0 0
  %947 = vmatprep.mubr.bf16.mxu0 0
  %948 = vmatmul.mubr.bf16.gmra.mrb[0].mxu0 %v914
  %v949 = vpop.f32.mrb[0].mxu0
  %v950 = vadd.f32 0.0, %v949
  %v951 = vpop.f32.mrb[0].mxu0
  %v952 = vadd.f32 0.0, %v951
  %v953 = vpop.f32.mrb[0].mxu0
  %v954 = vpop.f32.mrb[0].mxu0
  %955 = vdwg.mxu0
  %956 = vmatprep.subr.bf16.mxu0 %v158
  %957 = vmatpush1.bf16.msra.mxu0 %v157
  %958 = vmatprep.subr.bf16.mxu0 %v162
  %959 = vmatpush1.bf16.msra.mxu0 %v161
  %960 = vmatprep.subr.bf16.mxu0 %v166
  %961 = vmatpush1.bf16.msra.mxu0 %v165
  %962 = vmatprep.subr.bf16.mxu0 %v170
  %963 = vmatpush1.bf16.msra.mxu0 %v169
  %964 = vmatprep.subr.bf16.mxu0 %v174
  %965 = vmatpush1.bf16.msra.mxu0 %v173
  %966 = vmatprep.subr.bf16.mxu0 %v178
  %967 = vmatpush1.bf16.msra.mxu0 %v177
  %968 = vmatprep.subr.bf16.mxu0 %v182
  %969 = vmatpush1.bf16.msra.mxu0 %v181
  %970 = vmatprep.subr.bf16.mxu0 %v186
  %971 = vmatpush1.bf16.msra.mxu0 %v185
  %972 = vmatprep.subr.bf16.mxu0 0
  %973 = vmatpush1.bf16.msra.mxu0 0
  %974 = vmatprep.subr.bf16.mxu0 0
  %975 = vmatpush1.bf16.msra.mxu0 0
  %976 = vmatprep.subr.bf16.mxu0 0
  %977 = vmatpush1.bf16.msra.mxu0 0
  %978 = vmatprep.subr.bf16.mxu0 0
  %979 = vmatpush1.bf16.msra.mxu0 0
  %980 = vmatprep.subr.bf16.mxu0 0
  %981 = vmatpush1.bf16.msra.mxu0 0
  %982 = vmatprep.subr.bf16.mxu0 0
  %983 = vmatpush1.bf16.msra.mxu0 0
  %984 = vmatprep.subr.bf16.mxu0 0
  %985 = vmatpush1.bf16.msra.mxu0 0
  %986 = vmatprep.subr.bf16.mxu0 0
  %987 = vmatpush1.bf16.msra.mxu0 0
  %988 = vmatprep.mubr.bf16.mxu0 0
  %989 = vmatmul.mubr.bf16.gmra.mrb[0].mxu0 %v914
  %v990 = vpop.f32.mrb[0].mxu0
  %v991 = vadd.f32 0.0, %v990
  %v992 = vpop.f32.mrb[0].mxu0
  %v993 = vadd.f32 0.0, %v992
  %v994 = vpop.f32.mrb[0].mxu0
  %v995 = vpop.f32.mrb[0].mxu0
  %996 = vdwg.mxu0
  %v997 = vadd.f32 %v910, %v950
  %v998 = vadd.f32 %v911, %v952
  %v999 = vadd.f32 %v912, %v991
  %v1000 = vadd.f32 %v913, %v993
  %v1001 = vxor.u32 %v997, 2147483648
  %v1002 = vxor.u32 %v998, 2147483648
  %v1003 = vxor.u32 %v999, 2147483648
  %v1004 = vmul.f32 %v1001, 1.442695
  %v1005 = vpow.pop %v1004
  %v1006 = vmul.f32 %v1002, 1.442695
  %v1007 = vpow.pop %v1006
  %v1008 = vmul.f32 %v1003, 1.442695
  %v1009 = vpow.pop %v1008
  %v1010 = vadd.f32 %v1005, 1.0
  %v1011 = vadd.f32 %v1007, 1.0
  %v1012 = vadd.f32 %v1009, 1.0
  %v1013 = vrcp.pop %v1010
  %v1014 = vmul.f32 1.0, %v1013
  %v1015 = vrcp.pop %v1011
  %v1016 = vmul.f32 1.0, %v1015
  %v1017 = vrcp.pop %v1012
  %v1018 = vmul.f32 1.0, %v1017
  %v1019 = vtanh.pop %v1000
  %v1020 = vmul.f32 %v1016, %v906
  %v1021 = vmul.f32 %v1014, %v1019
  %v1022 = vadd.f32 %v1020, %v1021
  %v1023 = vtanh.pop %v1022
  %v1024 = vmul.f32 %v1018, %v1023
  %s1025 = scalar_lea.vmem %s0, 224
  %v1026 = vld [vmem:[%s1025] sm:$0xff]
  %v1027 = vld [vmem:[%s1025 + $0x8] sm:$0xff]
  %v1028 = vld [vmem:[%s1025 + $0x10] sm:$0xff]
  %v1029 = vld [vmem:[%s1025 + $0x18] sm:$0xff]
  %v1030 = vpack.c.bf16 %v1024, %v1024
  %1031 = vmatprep.subr.bf16.mxu0 %v156
  %1032 = vmatpush1.bf16.msra.mxu0 %v155
  %1033 = vmatprep.subr.bf16.mxu0 %v160
  %1034 = vmatpush1.bf16.msra.mxu0 %v159
  %1035 = vmatprep.subr.bf16.mxu0 %v164
  %1036 = vmatpush1.bf16.msra.mxu0 %v163
  %1037 = vmatprep.subr.bf16.mxu0 %v168
  %1038 = vmatpush1.bf16.msra.mxu0 %v167
  %1039 = vmatprep.subr.bf16.mxu0 %v172
  %1040 = vmatpush1.bf16.msra.mxu0 %v171
  %1041 = vmatprep.subr.bf16.mxu0 %v176
  %1042 = vmatpush1.bf16.msra.mxu0 %v175
  %1043 = vmatprep.subr.bf16.mxu0 %v180
  %1044 = vmatpush1.bf16.msra.mxu0 %v179
  %1045 = vmatprep.subr.bf16.mxu0 %v184
  %1046 = vmatpush1.bf16.msra.mxu0 %v183
  %1047 = vmatprep.subr.bf16.mxu0 0
  %1048 = vmatpush1.bf16.msra.mxu0 0
  %1049 = vmatprep.subr.bf16.mxu0 0
  %1050 = vmatpush1.bf16.msra.mxu0 0
  %1051 = vmatprep.subr.bf16.mxu0 0
  %1052 = vmatpush1.bf16.msra.mxu0 0
  %1053 = vmatprep.subr.bf16.mxu0 0
  %1054 = vmatpush1.bf16.msra.mxu0 0
  %1055 = vmatprep.subr.bf16.mxu0 0
  %1056 = vmatpush1.bf16.msra.mxu0 0
  %1057 = vmatprep.subr.bf16.mxu0 0
  %1058 = vmatpush1.bf16.msra.mxu0 0
  %1059 = vmatprep.subr.bf16.mxu0 0
  %1060 = vmatpush1.bf16.msra.mxu0 0
  %1061 = vmatprep.subr.bf16.mxu0 0
  %1062 = vmatpush1.bf16.msra.mxu0 0
  %1063 = vmatprep.mubr.bf16.mxu0 0
  %1064 = vmatmul.mubr.bf16.gmra.mrb[0].mxu0 %v1030
  %v1065 = vpop.f32.mrb[0].mxu0
  %v1066 = vadd.f32 0.0, %v1065
  %v1067 = vpop.f32.mrb[0].mxu0
  %v1068 = vadd.f32 0.0, %v1067
  %v1069 = vpop.f32.mrb[0].mxu0
  %v1070 = vpop.f32.mrb[0].mxu0
  %1071 = vdwg.mxu0
  %1072 = vmatprep.subr.bf16.mxu0 %v158
  %1073 = vmatpush1.bf16.msra.mxu0 %v157
  %1074 = vmatprep.subr.bf16.mxu0 %v162
  %1075 = vmatpush1.bf16.msra.mxu0 %v161
  %1076 = vmatprep.subr.bf16.mxu0 %v166
  %1077 = vmatpush1.bf16.msra.mxu0 %v165
  %1078 = vmatprep.subr.bf16.mxu0 %v170
  %1079 = vmatpush1.bf16.msra.mxu0 %v169
  %1080 = vmatprep.subr.bf16.mxu0 %v174
  %1081 = vmatpush1.bf16.msra.mxu0 %v173
  %1082 = vmatprep.subr.bf16.mxu0 %v178
  %1083 = vmatpush1.bf16.msra.mxu0 %v177
  %1084 = vmatprep.subr.bf16.mxu0 %v182
  %1085 = vmatpush1.bf16.msra.mxu0 %v181
  %1086 = vmatprep.subr.bf16.mxu0 %v186
  %1087 = vmatpush1.bf16.msra.mxu0 %v185
  %1088 = vmatprep.subr.bf16.mxu0 0
  %1089 = vmatpush1.bf16.msra.mxu0 0
  %1090 = vmatprep.subr.bf16.mxu0 0
  %1091 = vmatpush1.bf16.msra.mxu0 0
  %1092 = vmatprep.subr.bf16.mxu0 0
  %1093 = vmatpush1.bf16.msra.mxu0 0
  %1094 = vmatprep.subr.bf16.mxu0 0
  %1095 = vmatpush1.bf16.msra.mxu0 0
  %1096 = vmatprep.subr.bf16.mxu0 0
  %1097 = vmatpush1.bf16.msra.mxu0 0
  %1098 = vmatprep.subr.bf16.mxu0 0
  %1099 = vmatpush1.bf16.msra.mxu0 0
  %1100 = vmatprep.subr.bf16.mxu0 0
  %1101 = vmatpush1.bf16.msra.mxu0 0
  %1102 = vmatprep.subr.bf16.mxu0 0
  %1103 = vmatpush1.bf16.msra.mxu0 0
  %1104 = vmatprep.mubr.bf16.mxu0 0
  %1105 = vmatmul.mubr.bf16.gmra.mrb[0].mxu0 %v1030
  %v1106 = vpop.f32.mrb[0].mxu0
  %v1107 = vadd.f32 0.0, %v1106
  %v1108 = vpop.f32.mrb[0].mxu0
  %v1109 = vadd.f32 0.0, %v1108
  %v1110 = vpop.f32.mrb[0].mxu0
  %v1111 = vpop.f32.mrb[0].mxu0
  %1112 = vdwg.mxu0
  %v1113 = vadd.f32 %v1026, %v1066
  %v1114 = vadd.f32 %v1027, %v1068
  %v1115 = vadd.f32 %v1028, %v1107
  %v1116 = vadd.f32 %v1029, %v1109
  %v1117 = vxor.u32 %v1113, 2147483648
  %v1118 = vxor.u32 %v1114, 2147483648
  %v1119 = vxor.u32 %v1115, 2147483648
  %v1120 = vmul.f32 %v1117, 1.442695
  %v1121 = vpow.pop %v1120
  %v1122 = vmul.f32 %v1118, 1.442695
  %v1123 = vpow.pop %v1122
  %v1124 = vmul.f32 %v1119, 1.442695
  %v1125 = vpow.pop %v1124
  %v1126 = vadd.f32 %v1121, 1.0
  %v1127 = vadd.f32 %v1123, 1.0
  %v1128 = vadd.f32 %v1125, 1.0
  %v1129 = vrcp.pop %v1126
  %v1130 = vmul.f32 1.0, %v1129
  %v1131 = vrcp.pop %v1127
  %v1132 = vmul.f32 1.0, %v1131
  %v1133 = vrcp.pop %v1128
  %v1134 = vmul.f32 1.0, %v1133
  %v1135 = vtanh.pop %v1116
  %v1136 = vmul.f32 %v1132, %v1022
  %v1137 = vmul.f32 %v1130, %v1135
  %v1138 = vadd.f32 %v1136, %v1137
  %v1139 = vtanh.pop %v1138
  %v1140 = vmul.f32 %v1134, %v1139
  %1141 = vst [vmem:[#allocation2] sm:$0xff] %v1140
  %1142 = vst [vmem:[#allocation3] sm:$0xff] %v1138
  // Predicated region
  $region14: #{forward.7} parent=0 // pred_check
    %p1143 = pneg %p14
  $region15: #{forward.7} parent=0 // pred_check_branch
    %1145 = sbr.rel (%p1143) target = $region17
  $region16: #{forward.7} parent=0 // pred_region
    %1146 = vst [vmem:[%s2] sm:$0xff] %v1140
    %1147 = vst [vmem:[%s3] sm:$0xff] %v1138
  $region17: #{forward.7} parent=0 // pred_fallthru
    _
  // Predicated region
  $region18: #{forward.7} parent=0 // pred_check
    _
  $region19: #{forward.7} parent=0 // pred_check_branch
    %1149 = sbr.rel (0) target = $region21
  $region20: #{forward.7} parent=0 // pred_region
    _
  $region21: #{forward.7} parent=0 // pred_fallthru
    _
  // Predicated region
  $region22: #{forward.7} parent=0 // pred_check
    _
  $region23: #{forward.7} parent=0 // pred_check_branch
    %1151 = sbr.rel (0) target = $region25
  $region24: #{forward.7} parent=0 // pred_region
    _
  $region25: #{forward.7} parent=0 // pred_fallthru
    _
  // Predicated region
  $region26: #{forward.7} parent=0 // pred_check
    _
  $region27: #{forward.7} parent=0 // pred_check_branch
    %1153 = sbr.rel (0) target = $region29
  $region28: #{forward.7} parent=0 // pred_region
    _
  $region29: #{forward.7} parent=0 // pred_fallthru
    _
  // Predicated region
  $region30: #{forward.7} parent=0 // pred_check
    _
  $region31: #{forward.7} parent=0 // pred_check_branch
    %1155 = sbr.rel (0) target = $region33
  $region32: #{forward.7} parent=0 // pred_region
    _
  $region33: #{forward.7} parent=0 // pred_fallthru
    _

// kernel: forward.8
$region0: #{forward.8}
  #allocation0 [shape = 'u32[]', space=smem, size = 0x4, offset = 0x4, fixed_abs, tag = 'smem constant byte address 0x4 - core index']
  #allocation1 [shape = 'u32[144,128]{1,0:T(1,128)}', space=vmem, size = 0x12000, scoped, tag = 'internal scratch']
  %s0 = inlined_call_operand.vmem [shape: f32[8,128], index: 0, kind: input, shape index: {}]
  %s1 = inlined_call_operand.vmem [shape: bf16[128,128], index: 1, kind: input, shape index: {}]
  %s2 = inlined_call_operand.vmem [shape: f32[1,128], index: 2, kind: input, shape index: {}]
  %s3 = inlined_call_operand.hbm [shape: f32[8,128], index: 3, kind: output, shape index: {}]
  %s4 = sld [smem:[#allocation0]]
  $region22: #{forward.8} parent=0
    _
  %s6 = ssub.s32 1, %s4
  %s7 = scalar_select 0, %s6, %s4
  $region1: #{forward.8} parent=0
    #allocation2 [shape = 'u8[4096]{0}', space=vmem, size = 0x1000, scoped, tag = 'output window, operand 0, single buffered']
    #allocation3 [shape = 's32[1]{0}', space=sflag, size = 0x4, scoped, tag = 'scoped memory for forward.8']
    %8 = vsyncpa [#allocation3], 0
    // Predicated region
    $region2: #{forward.8} parent=1 // pred_check
      _
    $region3: #{forward.8} parent=1 // pred_check_branch
      %10 = sbr.rel (0) target = $region5
    $region4: #{forward.8} parent=1 // pred_region
      _
    $region5: #{forward.8} parent=1 // pred_fallthru
      _
    // Predicated region
    $region6: #{forward.8} parent=1 // pred_check
      _
    $region7: #{forward.8} parent=1 // pred_check_branch
      %12 = sbr.rel (0) target = $region9
    $region8: #{forward.8} parent=1 // pred_region
      _
    $region9: #{forward.8} parent=1 // pred_fallthru
      _
    // Predicated region
    $region10: #{forward.8} parent=1 // pred_check
      _
    $region11: #{forward.8} parent=1 // pred_check_branch
      %14 = sbr.rel (0) target = $region13
    $region12: #{forward.8} parent=1 // pred_region
      _
    $region13: #{forward.8} parent=1 // pred_fallthru
      _
    %v16 = vld [vmem:[%s0] sm:$0xff]
    %v17 = vpack.c.bf16 %v16, %v16
    %v18 = vld [vmem:[%s1] sm:$0xf]
    %v19 = vld [vmem:[%s1 + $0x4] sm:$0xf]
    %v20 = vld [vmem:[%s1 + $0x8] sm:$0xf]
    %v21 = vld [vmem:[%s1 + $0xc] sm:$0xf]
    %v22 = vld [vmem:[%s1 + $0x10] sm:$0xf]
    %v23 = vld [vmem:[%s1 + $0x14] sm:$0xf]
    %v24 = vld [vmem:[%s1 + $0x18] sm:$0xf]
    %v25 = vld [vmem:[%s1 + $0x1c] sm:$0xf]
    %v26 = vld [vmem:[%s1 + $0x20] sm:$0xf]
    %v27 = vld [vmem:[%s1 + $0x24] sm:$0xf]
    %v28 = vld [vmem:[%s1 + $0x28] sm:$0xf]
    %v29 = vld [vmem:[%s1 + $0x2c] sm:$0xf]
    %v30 = vld [vmem:[%s1 + $0x30] sm:$0xf]
    %v31 = vld [vmem:[%s1 + $0x34] sm:$0xf]
    %v32 = vld [vmem:[%s1 + $0x38] sm:$0xf]
    %v33 = vld [vmem:[%s1 + $0x3c] sm:$0xf]
    %v34 = vld [vmem:[%s2] sm:$0x1]
    %v36 = vlaneseq
    %v37 = vshrl.u32 %v36, 7
    %v38 = vsub.s32 0, %v37
    %v39 = vrot.slane %v34, %v38
    %v57 = vunpack.c.l.b16 %v18
    %v58 = vunpack.c.l.b16 %v19
    %v59 = vunpack.c.l.b16 %v20
    %v60 = vunpack.c.l.b16 %v21
    %v61 = vunpack.c.l.b16 %v22
    %v62 = vunpack.c.l.b16 %v23
    %v63 = vunpack.c.l.b16 %v24
    %v64 = vunpack.c.l.b16 %v25
    %v65 = vunpack.c.l.b16 %v26
    %v66 = vunpack.c.l.b16 %v27
    %v67 = vunpack.c.l.b16 %v28
    %v68 = vunpack.c.l.b16 %v29
    %v69 = vunpack.c.l.b16 %v30
    %v70 = vunpack.c.l.b16 %v31
    %v71 = vunpack.c.l.b16 %v32
    %v72 = vunpack.c.l.b16 %v33
    %v73 = vpack.c.b16 %v58, %v57
    %v74 = vpack.c.b16 %v60, %v59
    %v75 = vpack.c.b16 %v62, %v61
    %v76 = vpack.c.b16 %v64, %v63
    %v77 = vpack.c.b16 %v66, %v65
    %v78 = vpack.c.b16 %v68, %v67
    %v79 = vpack.c.b16 %v70, %v69
    %v80 = vpack.c.b16 %v72, %v71
    %89 = vmatprep.subr.bf16.mxu0 0
    %90 = vmatpush1.bf16.msra.mxu0 %v73
    %91 = vmatprep.subr.bf16.mxu0 0
    %92 = vmatpush1.bf16.msra.mxu0 %v74
    %93 = vmatprep.subr.bf16.mxu0 0
    %94 = vmatpush1.bf16.msra.mxu0 %v75
    %95 = vmatprep.subr.bf16.mxu0 0
    %96 = vmatpush1.bf16.msra.mxu0 %v76
    %97 = vmatprep.subr.bf16.mxu0 0
    %98 = vmatpush1.bf16.msra.mxu0 %v77
    %99 = vmatprep.subr.bf16.mxu0 0
    %100 = vmatpush1.bf16.msra.mxu0 %v78
    %101 = vmatprep.subr.bf16.mxu0 0
    %102 = vmatpush1.bf16.msra.mxu0 %v79
    %103 = vmatprep.subr.bf16.mxu0 0
    %104 = vmatpush1.bf16.msra.mxu0 %v80
    %105 = vmatprep.subr.bf16.mxu0 0
    %106 = vmatpush1.bf16.msra.mxu0 0
    %107 = vmatprep.subr.bf16.mxu0 0
    %108 = vmatpush1.bf16.msra.mxu0 0
    %109 = vmatprep.subr.bf16.mxu0 0
    %110 = vmatpush1.bf16.msra.mxu0 0
    %111 = vmatprep.subr.bf16.mxu0 0
    %112 = vmatpush1.bf16.msra.mxu0 0
    %113 = vmatprep.subr.bf16.mxu0 0
    %114 = vmatpush1.bf16.msra.mxu0 0
    %115 = vmatprep.subr.bf16.mxu0 0
    %116 = vmatpush1.bf16.msra.mxu0 0
    %117 = vmatprep.subr.bf16.mxu0 0
    %118 = vmatpush1.bf16.msra.mxu0 0
    %119 = vmatprep.subr.bf16.mxu0 0
    %120 = vmatpush1.bf16.msra.mxu0 0
    %121 = vmatprep.mubr.bf16.mxu0 0
    %122 = vmatmul.mubr.bf16.gmra.mrb[0].mxu0 %v17
    %v123 = vpop.f32.mrb[0].mxu0
    %v124 = vadd.f32 %v39, %v123
    %v125 = vpop.f32.mrb[0].mxu0
    %v126 = vpop.f32.mrb[0].mxu0
    %v127 = vpop.f32.mrb[0].mxu0
    %128 = vdwg.mxu0
    %129 = vst [vmem:[#allocation2] sm:$0xff] %v124
    // Predicated region
    $region14: #{forward.8} parent=1 // pred_check
      _
    $region15: #{forward.8} parent=1 // pred_check_branch
      %131 = sbr.rel (0) target = $region17
    $region16: #{forward.8} parent=1 // pred_region
      %s133 = ssub.s32 128, 128
      %134 = vsyncadd [#allocation3], %s133
      %s136 = sshll.u32 [#allocation2], 4
      %s137 = int_to_ptr.vmem [resolvable:$true] %s136
      %139 = dma.vmem_to_hbm [thread:$0]  %s137, 128, %s3, [#allocation3]
    $region17: #{forward.8} parent=1 // pred_fallthru
      _
    // Predicated region
    $region18: #{forward.8} parent=1 // pred_check
      _
    $region19: #{forward.8} parent=1 // pred_check_branch
      %141 = sbr.rel (0) target = $region21
    $region20: #{forward.8} parent=1 // pred_region
      %142 = dma.done [#allocation3], 128
    $region21: #{forward.8} parent=1 // pred_fallthru
      _
    %143 = vsyncpa [#allocation3], 1

// kernel: forward.11
$region0: #{forward.11}
  #allocation0 [shape = 'u32[]', space=smem, size = 0x4, offset = 0x4, fixed_abs, tag = 'smem constant byte address 0x4 - core index']
  #allocation1 [shape = 'u32[144,128]{1,0:T(1,128)}', space=vmem, size = 0x12000, scoped, tag = 'internal scratch']
  #allocation2 [shape = 'f32[1,1]{1,0:T(1,128)S(1)}', space=vmem, size = 0x200, scoped, tag = 'scoped memory for forward.11']
  %s0 = inlined_call_operand.vmem [shape: f32[7,8,128], index: 0, kind: input, shape index: {}]
  %s1 = inlined_call_operand.vmem [shape: bf16[128,128], index: 1, kind: input, shape index: {}]
  %s2 = inlined_call_operand.vmem [shape: f32[1,128], index: 2, kind: input, shape index: {}]
  %s3 = inlined_call_operand.vmem [shape: f32[1,128], index: 3, kind: input, shape index: {}]
  %s4 = inlined_call_operand.<no memory space> [shape: f32[1,1], index: 4, kind: input, shape index: {}]
  %s5 = inlined_call_operand.vmem [shape: f32[8,128], index: 5, kind: input, shape index: {}]
  %s6 = inlined_call_operand.vmem [shape: f32[7,8,128], index: 6, kind: output, shape index: {}]
  %s7 = sld [smem:[#allocation0]]
  $region34: #{forward.11} parent=0
    _
  %s9 = ssub.s32 1, %s7
  %s10 = scalar_select 0, %s9, %s7
  %v11 = vstv %s4
  %12 = vst [vmem:[#allocation2] sm:$0x1] %v11
  // Predicated region
  $region2: #{forward.11} parent=0 // pred_check
    _
  $region3: #{forward.11} parent=0 // pred_check_branch
    %14 = sbr.rel (0) target = $region5
  $region4: #{forward.11} parent=0 // pred_region
    _
  $region5: #{forward.11} parent=0 // pred_fallthru
    _
  // Predicated region
  $region6: #{forward.11} parent=0 // pred_check
    _
  $region7: #{forward.11} parent=0 // pred_check_branch
    %16 = sbr.rel (0) target = $region9
  $region8: #{forward.11} parent=0 // pred_region
    _
  $region9: #{forward.11} parent=0 // pred_fallthru
    _
  // Predicated region
  $region10: #{forward.11} parent=0 // pred_check
    _
  $region11: #{forward.11} parent=0 // pred_check_branch
    %18 = sbr.rel (0) target = $region13
  $region12: #{forward.11} parent=0 // pred_region
    _
  $region13: #{forward.11} parent=0 // pred_fallthru
    _
  // Predicated region
  $region14: #{forward.11} parent=0 // pred_check
    _
  $region15: #{forward.11} parent=0 // pred_check_branch
    %20 = sbr.rel (0) target = $region17
  $region16: #{forward.11} parent=0 // pred_region
    _
  $region17: #{forward.11} parent=0 // pred_fallthru
    _
  // Predicated region
  $region18: #{forward.11} parent=0 // pred_check
    _
  $region19: #{forward.11} parent=0 // pred_check_branch
    %22 = sbr.rel (0) target = $region21
  $region20: #{forward.11} parent=0 // pred_region
    _
  $region21: #{forward.11} parent=0 // pred_fallthru
    _
  // Predicated region
  $region22: #{forward.11} parent=0 // pred_check
    _
  $region23: #{forward.11} parent=0 // pred_check_branch
    %24 = sbr.rel (0) target = $region25
  $region24: #{forward.11} parent=0 // pred_region
    _
  $region25: #{forward.11} parent=0 // pred_fallthru
    _
  %v26 = vld [vmem:[%s0] sm:$0xff]
  %v27 = vld [vmem:[%s0 + $0x8] sm:$0xff]
  %v28 = vld [vmem:[%s0 + $0x10] sm:$0xff]
  %v29 = vld [vmem:[%s0 + $0x18] sm:$0xff]
  %v30 = vld [vmem:[%s0 + $0x20] sm:$0xff]
  %v31 = vld [vmem:[%s0 + $0x28] sm:$0xff]
  %v32 = vld [vmem:[%s0 + $0x30] sm:$0xff]
  %v33 = vld [vmem:[%s3] sm:$0x1]
  %v35 = vlaneseq
  %v36 = vshrl.u32 %v35, 7
  %v37 = vsub.s32 0, %v36
  %v38 = vrot.slane %v33, %v37
  %v40 = vmul.f32 %v26, %v38
  %v41 = vmul.f32 %v27, %v38
  %v42 = vmul.f32 %v28, %v38
  %v43 = vmul.f32 %v29, %v38
  %v44 = vmul.f32 %v30, %v38
  %v45 = vmul.f32 %v31, %v38
  %v46 = vmul.f32 %v32, %v38
  %47 = vadd.xlane.f32.xlu0 %v40
  %v48 = vpop.xlane.xlu0 %47
  %49 = vadd.xlane.f32.xlu0 %v41
  %v50 = vpop.xlane.xlu0 %49
  %51 = vadd.xlane.f32.xlu0 %v42
  %v52 = vpop.xlane.xlu0 %51
  %53 = vadd.xlane.f32.xlu0 %v43
  %v54 = vpop.xlane.xlu0 %53
  %55 = vadd.xlane.f32.xlu0 %v44
  %v56 = vpop.xlane.xlu0 %55
  %57 = vadd.xlane.f32.xlu0 %v45
  %v58 = vpop.xlane.xlu0 %57
  %59 = vadd.xlane.f32.xlu0 %v46
  %v60 = vpop.xlane.xlu0 %59
  %v61 = vld [vmem:[#allocation2] sm:$0x1]
  %v63 = vlaneseq
  %v64 = vshrl.u32 %v63, 7
  %v65 = vsub.s32 0, %v64
  %v66 = vrot.slane %v61, %v65
  %v68 = vadd.f32 %v48, %v66
  %v69 = vadd.f32 %v50, %v66
  %v70 = vadd.f32 %v52, %v66
  %v71 = vadd.f32 %v54, %v66
  %v72 = vadd.f32 %v56, %v66
  %v73 = vadd.f32 %v58, %v66
  %v74 = vadd.f32 %v60, %v66
  %v75 = vxor.u32 %v68, 2147483648
  %v76 = vxor.u32 %v69, 2147483648
  %v77 = vxor.u32 %v70, 2147483648
  %v78 = vxor.u32 %v71, 2147483648
  %v79 = vxor.u32 %v72, 2147483648
  %v80 = vxor.u32 %v73, 2147483648
  %v81 = vxor.u32 %v74, 2147483648
  %v82 = vmul.f32 %v75, 1.442695
  %v83 = vpow.pop %v82
  %v84 = vmul.f32 %v76, 1.442695
  %v85 = vpow.pop %v84
  %v86 = vmul.f32 %v77, 1.442695
  %v87 = vpow.pop %v86
  %v88 = vmul.f32 %v78, 1.442695
  %v89 = vpow.pop %v88
  %v90 = vmul.f32 %v79, 1.442695
  %v91 = vpow.pop %v90
  %v92 = vmul.f32 %v80, 1.442695
  %v93 = vpow.pop %v92
  %v94 = vmul.f32 %v81, 1.442695
  %v95 = vpow.pop %v94
  %v96 = vadd.f32 %v83, 1.0
  %v97 = vadd.f32 %v85, 1.0
  %v98 = vadd.f32 %v87, 1.0
  %v99 = vadd.f32 %v89, 1.0
  %v100 = vadd.f32 %v91, 1.0
  %v101 = vadd.f32 %v93, 1.0
  %v102 = vadd.f32 %v95, 1.0
  %v103 = vrcp.pop %v96
  %v104 = vmul.f32 1.0, %v103
  %v105 = vrcp.pop %v97
  %v106 = vmul.f32 1.0, %v105
  %v107 = vrcp.pop %v98
  %v108 = vmul.f32 1.0, %v107
  %v109 = vrcp.pop %v99
  %v110 = vmul.f32 1.0, %v109
  %v111 = vrcp.pop %v100
  %v112 = vmul.f32 1.0, %v111
  %v113 = vrcp.pop %v101
  %v114 = vmul.f32 1.0, %v113
  %v115 = vrcp.pop %v102
  %v116 = vmul.f32 1.0, %v115
  %v117 = vpack.c.bf16 %v27, %v26
  %v118 = vpack.c.bf16 %v29, %v28
  %v119 = vpack.c.bf16 %v31, %v30
  %v120 = vpack.c.bf16 %v32, %v32
  %v121 = vld [vmem:[%s1] sm:$0xf]
  %v122 = vld [vmem:[%s1 + $0x4] sm:$0xf]
  %v123 = vld [vmem:[%s1 + $0x8] sm:$0xf]
  %v124 = vld [vmem:[%s1 + $0xc] sm:$0xf]
  %v125 = vld [vmem:[%s1 + $0x10] sm:$0xf]
  %v126 = vld [vmem:[%s1 + $0x14] sm:$0xf]
  %v127 = vld [vmem:[%s1 + $0x18] sm:$0xf]
  %v128 = vld [vmem:[%s1 + $0x1c] sm:$0xf]
  %v129 = vld [vmem:[%s1 + $0x20] sm:$0xf]
  %v130 = vld [vmem:[%s1 + $0x24] sm:$0xf]
  %v131 = vld [vmem:[%s1 + $0x28] sm:$0xf]
  %v132 = vld [vmem:[%s1 + $0x2c] sm:$0xf]
  %v133 = vld [vmem:[%s1 + $0x30] sm:$0xf]
  %v134 = vld [vmem:[%s1 + $0x34] sm:$0xf]
  %v135 = vld [vmem:[%s1 + $0x38] sm:$0xf]
  %v136 = vld [vmem:[%s1 + $0x3c] sm:$0xf]
  %v137 = vld [vmem:[%s2] sm:$0x1]
  %v139 = vlaneseq
  %v140 = vshrl.u32 %v139, 7
  %v141 = vsub.s32 0, %v140
  %v142 = vrot.slane %v137, %v141
  %v160 = vunpack.c.l.b16 %v121
  %v161 = vunpack.c.l.b16 %v122
  %v162 = vunpack.c.l.b16 %v123
  %v163 = vunpack.c.l.b16 %v124
  %v164 = vunpack.c.l.b16 %v125
  %v165 = vunpack.c.l.b16 %v126
  %v166 = vunpack.c.l.b16 %v127
  %v167 = vunpack.c.l.b16 %v128
  %v168 = vunpack.c.l.b16 %v129
  %v169 = vunpack.c.l.b16 %v130
  %v170 = vunpack.c.l.b16 %v131
  %v171 = vunpack.c.l.b16 %v132
  %v172 = vunpack.c.l.b16 %v133
  %v173 = vunpack.c.l.b16 %v134
  %v174 = vunpack.c.l.b16 %v135
  %v175 = vunpack.c.l.b16 %v136
  %v176 = vpack.c.b16 %v161, %v160
  %v177 = vpack.c.b16 %v163, %v162
  %v178 = vpack.c.b16 %v165, %v164
  %v179 = vpack.c.b16 %v167, %v166
  %v180 = vpack.c.b16 %v169, %v168
  %v181 = vpack.c.b16 %v171, %v170
  %v182 = vpack.c.b16 %v173, %v172
  %v183 = vpack.c.b16 %v175, %v174
  %192 = vmatprep.subr.bf16.mxu0 0
  %193 = vmatpush1.bf16.msra.mxu0 %v176
  %194 = vmatprep.subr.bf16.mxu0 0
  %195 = vmatpush1.bf16.msra.mxu0 %v177
  %196 = vmatprep.subr.bf16.mxu0 0
  %197 = vmatpush1.bf16.msra.mxu0 %v178
  %198 = vmatprep.subr.bf16.mxu0 0
  %199 = vmatpush1.bf16.msra.mxu0 %v179
  %200 = vmatprep.subr.bf16.mxu0 0
  %201 = vmatpush1.bf16.msra.mxu0 %v180
  %202 = vmatprep.subr.bf16.mxu0 0
  %203 = vmatpush1.bf16.msra.mxu0 %v181
  %204 = vmatprep.subr.bf16.mxu0 0
  %205 = vmatpush1.bf16.msra.mxu0 %v182
  %206 = vmatprep.subr.bf16.mxu0 0
  %207 = vmatpush1.bf16.msra.mxu0 %v183
  %208 = vmatprep.subr.bf16.mxu0 0
  %209 = vmatpush1.bf16.msra.mxu0 0
  %210 = vmatprep.subr.bf16.mxu0 0
  %211 = vmatpush1.bf16.msra.mxu0 0
  %212 = vmatprep.subr.bf16.mxu0 0
  %213 = vmatpush1.bf16.msra.mxu0 0
  %214 = vmatprep.subr.bf16.mxu0 0
  %215 = vmatpush1.bf16.msra.mxu0 0
  %216 = vmatprep.subr.bf16.mxu0 0
  %217 = vmatpush1.bf16.msra.mxu0 0
  %218 = vmatprep.subr.bf16.mxu0 0
  %219 = vmatpush1.bf16.msra.mxu0 0
  %220 = vmatprep.subr.bf16.mxu0 0
  %221 = vmatpush1.bf16.msra.mxu0 0
  %222 = vmatprep.subr.bf16.mxu0 0
  %223 = vmatpush1.bf16.msra.mxu0 0
  %224 = vmatprep.mubr.bf16.mxu0 0
  %225 = vmatmul.mubr.bf16.gmra.mrb[0].mxu0 %v117
  %v226 = vpop.f32.mrb[0].mxu0
  %v227 = vadd.f32 %v142, %v226
  %v228 = vpop.f32.mrb[0].mxu0
  %v229 = vpop.f32.mrb[0].mxu0
  %v230 = vadd.f32 %v142, %v229
  %v231 = vpop.f32.mrb[0].mxu0
  %232 = vmatprep.mubr.bf16.mxu0 0
  %233 = vmatmul.mubr.bf16.gmra.mrb[0].mxu0 %v118
  %v234 = vpop.f32.mrb[0].mxu0
  %v235 = vadd.f32 %v142, %v234
  %v236 = vpop.f32.mrb[0].mxu0
  %v237 = vpop.f32.mrb[0].mxu0
  %v238 = vadd.f32 %v142, %v237
  %v239 = vpop.f32.mrb[0].mxu0
  %240 = vmatprep.mubr.bf16.mxu0 0
  %241 = vmatmul.mubr.bf16.gmra.mrb[0].mxu0 %v119
  %v242 = vpop.f32.mrb[0].mxu0
  %v243 = vadd.f32 %v142, %v242
  %v244 = vpop.f32.mrb[0].mxu0
  %v245 = vpop.f32.mrb[0].mxu0
  %v246 = vadd.f32 %v142, %v245
  %v247 = vpop.f32.mrb[0].mxu0
  %248 = vmatprep.mubr.bf16.mxu0 0
  %249 = vmatmul.mubr.bf16.gmra.mrb[0].mxu0 %v120
  %v250 = vpop.f32.mrb[0].mxu0
  %v251 = vadd.f32 %v142, %v250
  %v252 = vpop.f32.mrb[0].mxu0
  %v253 = vpop.f32.mrb[0].mxu0
  %v254 = vpop.f32.mrb[0].mxu0
  %255 = vdwg.mxu0
  %v256 = vsub.f32 1.0, %v104
  %v257 = vsub.f32 1.0, %v106
  %v258 = vsub.f32 1.0, %v108
  %v259 = vsub.f32 1.0, %v110
  %v260 = vsub.f32 1.0, %v112
  %v261 = vsub.f32 1.0, %v114
  %v262 = vsub.f32 1.0, %v116
  %264 = vset.pattern.permute.xlu0 0
  %265 = vperm.xlu0 %264, %v256
  %v266 = vpop.permute.xlu0 %265
  %269 = vset.pattern.permute.xlu0 0
  %270 = vperm.xlu0 %269, %v257
  %v271 = vpop.permute.xlu0 %270
  %274 = vset.pattern.permute.xlu0 0
  %275 = vperm.xlu0 %274, %v258
  %v276 = vpop.permute.xlu0 %275
  %279 = vset.pattern.permute.xlu0 0
  %280 = vperm.xlu0 %279, %v259
  %v281 = vpop.permute.xlu0 %280
  %284 = vset.pattern.permute.xlu0 0
  %285 = vperm.xlu0 %284, %v260
  %v286 = vpop.permute.xlu0 %285
  %289 = vset.pattern.permute.xlu0 0
  %290 = vperm.xlu0 %289, %v261
  %v291 = vpop.permute.xlu0 %290
  %294 = vset.pattern.permute.xlu0 0
  %295 = vperm.xlu0 %294, %v262
  %v296 = vpop.permute.xlu0 %295
  %v298 = vmul.f32 %v266, %v227
  %v299 = vmul.f32 %v271, %v230
  %v300 = vmul.f32 %v276, %v235
  %v301 = vmul.f32 %v281, %v238
  %v302 = vmul.f32 %v286, %v243
  %v303 = vmul.f32 %v291, %v246
  %v304 = vmul.f32 %v296, %v251
  %v305 = vld [vmem:[%s5] sm:$0xff]
  %307 = vset.pattern.permute.xlu0 0
  %308 = vperm.xlu0 %307, %v104
  %v309 = vpop.permute.xlu0 %308
  %312 = vset.pattern.permute.xlu0 0
  %313 = vperm.xlu0 %312, %v106
  %v314 = vpop.permute.xlu0 %313
  %317 = vset.pattern.permute.xlu0 0
  %318 = vperm.xlu0 %317, %v108
  %v319 = vpop.permute.xlu0 %318
  %322 = vset.pattern.permute.xlu0 0
  %323 = vperm.xlu0 %322, %v110
  %v324 = vpop.permute.xlu0 %323
  %327 = vset.pattern.permute.xlu0 0
  %328 = vperm.xlu0 %327, %v112
  %v329 = vpop.permute.xlu0 %328
  %332 = vset.pattern.permute.xlu0 0
  %333 = vperm.xlu0 %332, %v114
  %v334 = vpop.permute.xlu0 %333
  %337 = vset.pattern.permute.xlu0 0
  %338 = vperm.xlu0 %337, %v116
  %v339 = vpop.permute.xlu0 %338
  %v341 = vmul.f32 %v309, %v305
  %v342 = vmul.f32 %v314, %v305
  %v343 = vmul.f32 %v319, %v305
  %v344 = vmul.f32 %v324, %v305
  %v345 = vmul.f32 %v329, %v305
  %v346 = vmul.f32 %v334, %v305
  %v347 = vmul.f32 %v339, %v305
  %v348 = vadd.f32 %v298, %v341
  %v349 = vadd.f32 %v299, %v342
  %v350 = vadd.f32 %v300, %v343
  %v351 = vadd.f32 %v301, %v344
  %v352 = vadd.f32 %v302, %v345
  %v353 = vadd.f32 %v303, %v346
  %v354 = vadd.f32 %v304, %v347
  %355 = vst [vmem:[%s6] sm:$0xff] %v348
  %356 = vst [vmem:[%s6 + $0x8] sm:$0xff] %v349
  %357 = vst [vmem:[%s6 + $0x10] sm:$0xff] %v350
  %358 = vst [vmem:[%s6 + $0x18] sm:$0xff] %v351
  %359 = vst [vmem:[%s6 + $0x20] sm:$0xff] %v352
  %360 = vst [vmem:[%s6 + $0x28] sm:$0xff] %v353
  %361 = vst [vmem:[%s6 + $0x30] sm:$0xff] %v354
  // Predicated region
  $region26: #{forward.11} parent=0 // pred_check
    _
  $region27: #{forward.11} parent=0 // pred_check_branch
    %363 = sbr.rel (0) target = $region29
  $region28: #{forward.11} parent=0 // pred_region
    _
  $region29: #{forward.11} parent=0 // pred_fallthru
    _
  // Predicated region
  $region30: #{forward.11} parent=0 // pred_check
    _
  $region31: #{forward.11} parent=0 // pred_check_branch
    %365 = sbr.rel (0) target = $region33
  $region32: #{forward.11} parent=0 // pred_region
    _
  $region33: #{forward.11} parent=0 // pred_fallthru
    _

// kernel: forward.10
$region0: #{forward.10}
  #allocation0 [shape = 'u32[]', space=smem, size = 0x4, offset = 0x4, fixed_abs, tag = 'smem constant byte address 0x4 - core index']
  #allocation1 [shape = 'u32[144,128]{1,0:T(1,128)}', space=vmem, size = 0x12000, scoped, tag = 'internal scratch']
  #allocation2 [shape = 'f32[8,128]{1,0:T(8,128)}', space=vmem, size = 0x1000, scoped, tag = 'scratch operand']
  #allocation3 [shape = 'f32[8,128]{1,0:T(8,128)}', space=vmem, size = 0x1000, scoped, tag = 'scratch operand']
  %s0 = inlined_call_operand.vmem [shape: f32[7,8,512], index: 0, kind: input, shape index: {}]
  %s1 = inlined_call_operand.vmem [shape: bf16[128,512], index: 1, kind: input, shape index: {}]
  %s2 = inlined_call_operand.vmem [shape: f32[8,128], index: 2, kind: input, shape index: {}]
  %s3 = inlined_call_operand.vmem [shape: f32[8,128], index: 3, kind: input, shape index: {}]
  %s4 = inlined_call_operand.vmem [shape: f32[7,8,128], index: 4, kind: output, shape index: {}]
  %s5 = sld [smem:[#allocation0]]
  $region30: #{forward.10} parent=0
    _
  %s7 = ssub.s32 1, %s5
  %s8 = scalar_select 0, %s7, %s5
  // Predicated region
  $region2: #{forward.10} parent=0 // pred_check
    _
  $region3: #{forward.10} parent=0 // pred_check_branch
    %10 = sbr.rel (0) target = $region5
  $region4: #{forward.10} parent=0 // pred_region
    _
  $region5: #{forward.10} parent=0 // pred_fallthru
    _
  // Predicated region
  $region6: #{forward.10} parent=0 // pred_check
    _
  $region7: #{forward.10} parent=0 // pred_check_branch
    %12 = sbr.rel (0) target = $region9
  $region8: #{forward.10} parent=0 // pred_region
    _
  $region9: #{forward.10} parent=0 // pred_fallthru
    _
  // Predicated region
  $region10: #{forward.10} parent=0 // pred_check
    _
  $region11: #{forward.10} parent=0 // pred_check_branch
    %14 = sbr.rel (0) target = $region13
  $region12: #{forward.10} parent=0 // pred_region
    _
  $region13: #{forward.10} parent=0 // pred_fallthru
    _
  // Predicated region
  $region14: #{forward.10} parent=0 // pred_check
    _
  $region15: #{forward.10} parent=0 // pred_check_branch
    %16 = sbr.rel (0) target = $region17
  $region16: #{forward.10} parent=0 // pred_region
    _
  $region17: #{forward.10} parent=0 // pred_fallthru
    _
  %p18 = scmp.eq.s32.totalorder 0, 0
  // Predicated region
  $region18: #{forward.10} parent=0 // pred_check
    %p19 = pneg %p18
  $region19: #{forward.10} parent=0 // pred_check_branch
    %21 = sbr.rel (%p19) target = $region21
  $region20: #{forward.10} parent=0 // pred_region
    %v22 = vld [vmem:[%s2] sm:$0xff]
    %23 = vst [vmem:[#allocation2] sm:$0xff] %v22
    %v24 = vld [vmem:[%s3] sm:$0xff]
    %25 = vst [vmem:[#allocation3] sm:$0xff] %v24
  $region21: #{forward.10} parent=0 // pred_fallthru
    _
  %v26 = vld [vmem:[#allocation2] sm:$0xff]
  %v27 = vld [vmem:[#allocation3] sm:$0xff]
  %v28 = vld [vmem:[%s0] sm:$0xff]
  %v29 = vld [vmem:[%s0 + $0x8] sm:$0xff]
  %v30 = vld [vmem:[%s0 + $0x10] sm:$0xff]
  %v31 = vld [vmem:[%s0 + $0x18] sm:$0xff]
  %v32 = vpack.c.bf16 %v26, %v26
  %v33 = vld [vmem:[%s1] sm:$0xff]
  %v34 = vld [vmem:[%s1 + $0x8] sm:$0xff]
  %v35 = vld [vmem:[%s1 + $0x10] sm:$0xff]
  %v36 = vld [vmem:[%s1 + $0x18] sm:$0xff]
  %v37 = vld [vmem:[%s1 + $0x20] sm:$0xff]
  %v38 = vld [vmem:[%s1 + $0x28] sm:$0xff]
  %v39 = vld [vmem:[%s1 + $0x30] sm:$0xff]
  %v40 = vld [vmem:[%s1 + $0x38] sm:$0xff]
  %v41 = vld [vmem:[%s1 + $0x40] sm:$0xff]
  %v42 = vld [vmem:[%s1 + $0x48] sm:$0xff]
  %v43 = vld [vmem:[%s1 + $0x50] sm:$0xff]
  %v44 = vld [vmem:[%s1 + $0x58] sm:$0xff]
  %v45 = vld [vmem:[%s1 + $0x60] sm:$0xff]
  %v46 = vld [vmem:[%s1 + $0x68] sm:$0xff]
  %v47 = vld [vmem:[%s1 + $0x70] sm:$0xff]
  %v48 = vld [vmem:[%s1 + $0x78] sm:$0xff]
  %v49 = vld [vmem:[%s1 + $0x80] sm:$0xff]
  %v50 = vld [vmem:[%s1 + $0x88] sm:$0xff]
  %v51 = vld [vmem:[%s1 + $0x90] sm:$0xff]
  %v52 = vld [vmem:[%s1 + $0x98] sm:$0xff]
  %v53 = vld [vmem:[%s1 + $0xa0] sm:$0xff]
  %v54 = vld [vmem:[%s1 + $0xa8] sm:$0xff]
  %v55 = vld [vmem:[%s1 + $0xb0] sm:$0xff]
  %v56 = vld [vmem:[%s1 + $0xb8] sm:$0xff]
  %v57 = vld [vmem:[%s1 + $0xc0] sm:$0xff]
  %v58 = vld [vmem:[%s1 + $0xc8] sm:$0xff]
  %v59 = vld [vmem:[%s1 + $0xd0] sm:$0xff]
  %v60 = vld [vmem:[%s1 + $0xd8] sm:$0xff]
  %v61 = vld [vmem:[%s1 + $0xe0] sm:$0xff]
  %v62 = vld [vmem:[%s1 + $0xe8] sm:$0xff]
  %v63 = vld [vmem:[%s1 + $0xf0] sm:$0xff]
  %v64 = vld [vmem:[%s1 + $0xf8] sm:$0xff]
  %v97 = vunpack.c.l.b16 %v33
  %v98 = vunpack.c.h.b16 %v33
  %v99 = vunpack.c.l.b16 %v34
  %v100 = vunpack.c.h.b16 %v34
  %v101 = vunpack.c.l.b16 %v35
  %v102 = vunpack.c.h.b16 %v35
  %v103 = vunpack.c.l.b16 %v36
  %v104 = vunpack.c.h.b16 %v36
  %v105 = vunpack.c.l.b16 %v37
  %v106 = vunpack.c.h.b16 %v37
  %v107 = vunpack.c.l.b16 %v38
  %v108 = vunpack.c.h.b16 %v38
  %v109 = vunpack.c.l.b16 %v39
  %v110 = vunpack.c.h.b16 %v39
  %v111 = vunpack.c.l.b16 %v40
  %v112 = vunpack.c.h.b16 %v40
  %v113 = vunpack.c.l.b16 %v41
  %v114 = vunpack.c.h.b16 %v41
  %v115 = vunpack.c.l.b16 %v42
  %v116 = vunpack.c.h.b16 %v42
  %v117 = vunpack.c.l.b16 %v43
  %v118 = vunpack.c.h.b16 %v43
  %v119 = vunpack.c.l.b16 %v44
  %v120 = vunpack.c.h.b16 %v44
  %v121 = vunpack.c.l.b16 %v45
  %v122 = vunpack.c.h.b16 %v45
  %v123 = vunpack.c.l.b16 %v46
  %v124 = vunpack.c.h.b16 %v46
  %v125 = vunpack.c.l.b16 %v47
  %v126 = vunpack.c.h.b16 %v47
  %v127 = vunpack.c.l.b16 %v48
  %v128 = vunpack.c.h.b16 %v48
  %v129 = vunpack.c.l.b16 %v49
  %v130 = vunpack.c.h.b16 %v49
  %v131 = vunpack.c.l.b16 %v50
  %v132 = vunpack.c.h.b16 %v50
  %v133 = vunpack.c.l.b16 %v51
  %v134 = vunpack.c.h.b16 %v51
  %v135 = vunpack.c.l.b16 %v52
  %v136 = vunpack.c.h.b16 %v52
  %v137 = vunpack.c.l.b16 %v53
  %v138 = vunpack.c.h.b16 %v53
  %v139 = vunpack.c.l.b16 %v54
  %v140 = vunpack.c.h.b16 %v54
  %v141 = vunpack.c.l.b16 %v55
  %v142 = vunpack.c.h.b16 %v55
  %v143 = vunpack.c.l.b16 %v56
  %v144 = vunpack.c.h.b16 %v56
  %v145 = vunpack.c.l.b16 %v57
  %v146 = vunpack.c.h.b16 %v57
  %v147 = vunpack.c.l.b16 %v58
  %v148 = vunpack.c.h.b16 %v58
  %v149 = vunpack.c.l.b16 %v59
  %v150 = vunpack.c.h.b16 %v59
  %v151 = vunpack.c.l.b16 %v60
  %v152 = vunpack.c.h.b16 %v60
  %v153 = vunpack.c.l.b16 %v61
  %v154 = vunpack.c.h.b16 %v61
  %v155 = vunpack.c.l.b16 %v62
  %v156 = vunpack.c.h.b16 %v62
  %v157 = vunpack.c.l.b16 %v63
  %v158 = vunpack.c.h.b16 %v63
  %v159 = vunpack.c.l.b16 %v64
  %v160 = vunpack.c.h.b16 %v64
  %v161 = vpack.c.b16 %v101, %v97
  %v162 = vpack.c.b16 %v102, %v98
  %v163 = vpack.c.b16 %v103, %v99
  %v164 = vpack.c.b16 %v104, %v100
  %v165 = vpack.c.b16 %v109, %v105
  %v166 = vpack.c.b16 %v110, %v106
  %v167 = vpack.c.b16 %v111, %v107
  %v168 = vpack.c.b16 %v112, %v108
  %v169 = vpack.c.b16 %v117, %v113
  %v170 = vpack.c.b16 %v118, %v114
  %v171 = vpack.c.b16 %v119, %v115
  %v172 = vpack.c.b16 %v120, %v116
  %v173 = vpack.c.b16 %v125, %v121
  %v174 = vpack.c.b16 %v126, %v122
  %v175 = vpack.c.b16 %v127, %v123
  %v176 = vpack.c.b16 %v128, %v124
  %v177 = vpack.c.b16 %v133, %v129
  %v178 = vpack.c.b16 %v134, %v130
  %v179 = vpack.c.b16 %v135, %v131
  %v180 = vpack.c.b16 %v136, %v132
  %v181 = vpack.c.b16 %v141, %v137
  %v182 = vpack.c.b16 %v142, %v138
  %v183 = vpack.c.b16 %v143, %v139
  %v184 = vpack.c.b16 %v144, %v140
  %v185 = vpack.c.b16 %v149, %v145
  %v186 = vpack.c.b16 %v150, %v146
  %v187 = vpack.c.b16 %v151, %v147
  %v188 = vpack.c.b16 %v152, %v148
  %v189 = vpack.c.b16 %v157, %v153
  %v190 = vpack.c.b16 %v158, %v154
  %v191 = vpack.c.b16 %v159, %v155
  %v192 = vpack.c.b16 %v160, %v156
  %225 = vmatprep.subr.bf16.mxu0 %v162
  %226 = vmatpush1.bf16.msra.mxu0 %v161
  %227 = vmatprep.subr.bf16.mxu0 %v166
  %228 = vmatpush1.bf16.msra.mxu0 %v165
  %229 = vmatprep.subr.bf16.mxu0 %v170
  %230 = vmatpush1.bf16.msra.mxu0 %v169
  %231 = vmatprep.subr.bf16.mxu0 %v174
  %232 = vmatpush1.bf16.msra.mxu0 %v173
  %233 = vmatprep.subr.bf16.mxu0 %v178
  %234 = vmatpush1.bf16.msra.mxu0 %v177
  %235 = vmatprep.subr.bf16.mxu0 %v182
  %236 = vmatpush1.bf16.msra.mxu0 %v181
  %237 = vmatprep.subr.bf16.mxu0 %v186
  %238 = vmatpush1.bf16.msra.mxu0 %v185
  %239 = vmatprep.subr.bf16.mxu0 %v190
  %240 = vmatpush1.bf16.msra.mxu0 %v189
  %241 = vmatprep.subr.bf16.mxu0 0
  %242 = vmatpush1.bf16.msra.mxu0 0
  %243 = vmatprep.subr.bf16.mxu0 0
  %244 = vmatpush1.bf16.msra.mxu0 0
  %245 = vmatprep.subr.bf16.mxu0 0
  %246 = vmatpush1.bf16.msra.mxu0 0
  %247 = vmatprep.subr.bf16.mxu0 0
  %248 = vmatpush1.bf16.msra.mxu0 0
  %249 = vmatprep.subr.bf16.mxu0 0
  %250 = vmatpush1.bf16.msra.mxu0 0
  %251 = vmatprep.subr.bf16.mxu0 0
  %252 = vmatpush1.bf16.msra.mxu0 0
  %253 = vmatprep.subr.bf16.mxu0 0
  %254 = vmatpush1.bf16.msra.mxu0 0
  %255 = vmatprep.subr.bf16.mxu0 0
  %256 = vmatpush1.bf16.msra.mxu0 0
  %257 = vmatprep.mubr.bf16.mxu0 0
  %258 = vmatmul.mubr.bf16.gmra.mrb[0].mxu0 %v32
  %v259 = vpop.f32.mrb[0].mxu0
  %v260 = vadd.f32 0.0, %v259
  %v261 = vpop.f32.mrb[0].mxu0
  %v262 = vadd.f32 0.0, %v261
  %v263 = vpop.f32.mrb[0].mxu0
  %v264 = vpop.f32.mrb[0].mxu0
  %265 = vdwg.mxu0
  %266 = vmatprep.subr.bf16.mxu0 %v164
  %267 = vmatpush1.bf16.msra.mxu0 %v163
  %268 = vmatprep.subr.bf16.mxu0 %v168
  %269 = vmatpush1.bf16.msra.mxu0 %v167
  %270 = vmatprep.subr.bf16.mxu0 %v172
  %271 = vmatpush1.bf16.msra.mxu0 %v171
  %272 = vmatprep.subr.bf16.mxu0 %v176
  %273 = vmatpush1.bf16.msra.mxu0 %v175
  %274 = vmatprep.subr.bf16.mxu0 %v180
  %275 = vmatpush1.bf16.msra.mxu0 %v179
  %276 = vmatprep.subr.bf16.mxu0 %v184
  %277 = vmatpush1.bf16.msra.mxu0 %v183
  %278 = vmatprep.subr.bf16.mxu0 %v188
  %279 = vmatpush1.bf16.msra.mxu0 %v187
  %280 = vmatprep.subr.bf16.mxu0 %v192
  %281 = vmatpush1.bf16.msra.mxu0 %v191
  %282 = vmatprep.subr.bf16.mxu0 0
  %283 = vmatpush1.bf16.msra.mxu0 0
  %284 = vmatprep.subr.bf16.mxu0 0
  %285 = vmatpush1.bf16.msra.mxu0 0
  %286 = vmatprep.subr.bf16.mxu0 0
  %287 = vmatpush1.bf16.msra.mxu0 0
  %288 = vmatprep.subr.bf16.mxu0 0
  %289 = vmatpush1.bf16.msra.mxu0 0
  %290 = vmatprep.subr.bf16.mxu0 0
  %291 = vmatpush1.bf16.msra.mxu0 0
  %292 = vmatprep.subr.bf16.mxu0 0
  %293 = vmatpush1.bf16.msra.mxu0 0
  %294 = vmatprep.subr.bf16.mxu0 0
  %295 = vmatpush1.bf16.msra.mxu0 0
  %296 = vmatprep.subr.bf16.mxu0 0
  %297 = vmatpush1.bf16.msra.mxu0 0
  %298 = vmatprep.mubr.bf16.mxu0 0
  %299 = vmatmul.mubr.bf16.gmra.mrb[0].mxu0 %v32
  %v300 = vpop.f32.mrb[0].mxu0
  %v301 = vadd.f32 0.0, %v300
  %v302 = vpop.f32.mrb[0].mxu0
  %v303 = vadd.f32 0.0, %v302
  %v304 = vpop.f32.mrb[0].mxu0
  %v305 = vpop.f32.mrb[0].mxu0
  %306 = vdwg.mxu0
  %v307 = vadd.f32 %v28, %v260
  %v308 = vadd.f32 %v29, %v262
  %v309 = vadd.f32 %v30, %v301
  %v310 = vadd.f32 %v31, %v303
  %v311 = vxor.u32 %v307, 2147483648
  %v312 = vxor.u32 %v308, 2147483648
  %v313 = vxor.u32 %v309, 2147483648
  %v314 = vmul.f32 %v311, 1.442695
  %v315 = vpow.pop %v314
  %v316 = vmul.f32 %v312, 1.442695
  %v317 = vpow.pop %v316
  %v318 = vmul.f32 %v313, 1.442695
  %v319 = vpow.pop %v318
  %v320 = vadd.f32 %v315, 1.0
  %v321 = vadd.f32 %v317, 1.0
  %v322 = vadd.f32 %v319, 1.0
  %v323 = vrcp.pop %v320
  %v324 = vmul.f32 1.0, %v323
  %v325 = vrcp.pop %v321
  %v326 = vmul.f32 1.0, %v325
  %v327 = vrcp.pop %v322
  %v328 = vmul.f32 1.0, %v327
  %v329 = vtanh.pop %v310
  %v330 = vmul.f32 %v326, %v27
  %v331 = vmul.f32 %v324, %v329
  %v332 = vadd.f32 %v330, %v331
  %v333 = vtanh.pop %v332
  %v334 = vmul.f32 %v328, %v333
  %335 = vst [vmem:[%s4] sm:$0xff] %v334
  %s336 = scalar_lea.vmem %s0, 32
  %v337 = vld [vmem:[%s336] sm:$0xff]
  %v338 = vld [vmem:[%s336 + $0x8] sm:$0xff]
  %v339 = vld [vmem:[%s336 + $0x10] sm:$0xff]
  %v340 = vld [vmem:[%s336 + $0x18] sm:$0xff]
  %v341 = vpack.c.bf16 %v334, %v334
  %v342 = vld [vmem:[%s1] sm:$0xff]
  %v343 = vld [vmem:[%s1 + $0x8] sm:$0xff]
  %v344 = vld [vmem:[%s1 + $0x10] sm:$0xff]
  %v345 = vld [vmem:[%s1 + $0x18] sm:$0xff]
  %v346 = vld [vmem:[%s1 + $0x20] sm:$0xff]
  %v347 = vld [vmem:[%s1 + $0x28] sm:$0xff]
  %v348 = vld [vmem:[%s1 + $0x30] sm:$0xff]
  %v349 = vld [vmem:[%s1 + $0x38] sm:$0xff]
  %v350 = vld [vmem:[%s1 + $0x40] sm:$0xff]
  %v351 = vld [vmem:[%s1 + $0x48] sm:$0xff]
  %v352 = vld [vmem:[%s1 + $0x50] sm:$0xff]
  %v353 = vld [vmem:[%s1 + $0x58] sm:$0xff]
  %v354 = vld [vmem:[%s1 + $0x60] sm:$0xff]
  %v355 = vld [vmem:[%s1 + $0x68] sm:$0xff]
  %v356 = vld [vmem:[%s1 + $0x70] sm:$0xff]
  %v357 = vld [vmem:[%s1 + $0x78] sm:$0xff]
  %v358 = vld [vmem:[%s1 + $0x80] sm:$0xff]
  %v359 = vld [vmem:[%s1 + $0x88] sm:$0xff]
  %v360 = vld [vmem:[%s1 + $0x90] sm:$0xff]
  %v361 = vld [vmem:[%s1 + $0x98] sm:$0xff]
  %v362 = vld [vmem:[%s1 + $0xa0] sm:$0xff]
  %v363 = vld [vmem:[%s1 + $0xa8] sm:$0xff]
  %v364 = vld [vmem:[%s1 + $0xb0] sm:$0xff]
  %v365 = vld [vmem:[%s1 + $0xb8] sm:$0xff]
  %v366 = vld [vmem:[%s1 + $0xc0] sm:$0xff]
  %v367 = vld [vmem:[%s1 + $0xc8] sm:$0xff]
  %v368 = vld [vmem:[%s1 + $0xd0] sm:$0xff]
  %v369 = vld [vmem:[%s1 + $0xd8] sm:$0xff]
  %v370 = vld [vmem:[%s1 + $0xe0] sm:$0xff]
  %v371 = vld [vmem:[%s1 + $0xe8] sm:$0xff]
  %v372 = vld [vmem:[%s1 + $0xf0] sm:$0xff]
  %v373 = vld [vmem:[%s1 + $0xf8] sm:$0xff]
  %v406 = vunpack.c.l.b16 %v342
  %v407 = vunpack.c.h.b16 %v342
  %v408 = vunpack.c.l.b16 %v343
  %v409 = vunpack.c.h.b16 %v343
  %v410 = vunpack.c.l.b16 %v344
  %v411 = vunpack.c.h.b16 %v344
  %v412 = vunpack.c.l.b16 %v345
  %v413 = vunpack.c.h.b16 %v345
  %v414 = vunpack.c.l.b16 %v346
  %v415 = vunpack.c.h.b16 %v346
  %v416 = vunpack.c.l.b16 %v347
  %v417 = vunpack.c.h.b16 %v347
  %v418 = vunpack.c.l.b16 %v348
  %v419 = vunpack.c.h.b16 %v348
  %v420 = vunpack.c.l.b16 %v349
  %v421 = vunpack.c.h.b16 %v349
  %v422 = vunpack.c.l.b16 %v350
  %v423 = vunpack.c.h.b16 %v350
  %v424 = vunpack.c.l.b16 %v351
  %v425 = vunpack.c.h.b16 %v351
  %v426 = vunpack.c.l.b16 %v352
  %v427 = vunpack.c.h.b16 %v352
  %v428 = vunpack.c.l.b16 %v353
  %v429 = vunpack.c.h.b16 %v353
  %v430 = vunpack.c.l.b16 %v354
  %v431 = vunpack.c.h.b16 %v354
  %v432 = vunpack.c.l.b16 %v355
  %v433 = vunpack.c.h.b16 %v355
  %v434 = vunpack.c.l.b16 %v356
  %v435 = vunpack.c.h.b16 %v356
  %v436 = vunpack.c.l.b16 %v357
  %v437 = vunpack.c.h.b16 %v357
  %v438 = vunpack.c.l.b16 %v358
  %v439 = vunpack.c.h.b16 %v358
  %v440 = vunpack.c.l.b16 %v359
  %v441 = vunpack.c.h.b16 %v359
  %v442 = vunpack.c.l.b16 %v360
  %v443 = vunpack.c.h.b16 %v360
  %v444 = vunpack.c.l.b16 %v361
  %v445 = vunpack.c.h.b16 %v361
  %v446 = vunpack.c.l.b16 %v362
  %v447 = vunpack.c.h.b16 %v362
  %v448 = vunpack.c.l.b16 %v363
  %v449 = vunpack.c.h.b16 %v363
  %v450 = vunpack.c.l.b16 %v364
  %v451 = vunpack.c.h.b16 %v364
  %v452 = vunpack.c.l.b16 %v365
  %v453 = vunpack.c.h.b16 %v365
  %v454 = vunpack.c.l.b16 %v366
  %v455 = vunpack.c.h.b16 %v366
  %v456 = vunpack.c.l.b16 %v367
  %v457 = vunpack.c.h.b16 %v367
  %v458 = vunpack.c.l.b16 %v368
  %v459 = vunpack.c.h.b16 %v368
  %v460 = vunpack.c.l.b16 %v369
  %v461 = vunpack.c.h.b16 %v369
  %v462 = vunpack.c.l.b16 %v370
  %v463 = vunpack.c.h.b16 %v370
  %v464 = vunpack.c.l.b16 %v371
  %v465 = vunpack.c.h.b16 %v371
  %v466 = vunpack.c.l.b16 %v372
  %v467 = vunpack.c.h.b16 %v372
  %v468 = vunpack.c.l.b16 %v373
  %v469 = vunpack.c.h.b16 %v373
  %v470 = vpack.c.b16 %v410, %v406
  %v471 = vpack.c.b16 %v411, %v407
  %v472 = vpack.c.b16 %v412, %v408
  %v473 = vpack.c.b16 %v413, %v409
  %v474 = vpack.c.b16 %v418, %v414
  %v475 = vpack.c.b16 %v419, %v415
  %v476 = vpack.c.b16 %v420, %v416
  %v477 = vpack.c.b16 %v421, %v417
  %v478 = vpack.c.b16 %v426, %v422
  %v479 = vpack.c.b16 %v427, %v423
  %v480 = vpack.c.b16 %v428, %v424
  %v481 = vpack.c.b16 %v429, %v425
  %v482 = vpack.c.b16 %v434, %v430
  %v483 = vpack.c.b16 %v435, %v431
  %v484 = vpack.c.b16 %v436, %v432
  %v485 = vpack.c.b16 %v437, %v433
  %v486 = vpack.c.b16 %v442, %v438
  %v487 = vpack.c.b16 %v443, %v439
  %v488 = vpack.c.b16 %v444, %v440
  %v489 = vpack.c.b16 %v445, %v441
  %v490 = vpack.c.b16 %v450, %v446
  %v491 = vpack.c.b16 %v451, %v447
  %v492 = vpack.c.b16 %v452, %v448
  %v493 = vpack.c.b16 %v453, %v449
  %v494 = vpack.c.b16 %v458, %v454
  %v495 = vpack.c.b16 %v459, %v455
  %v496 = vpack.c.b16 %v460, %v456
  %v497 = vpack.c.b16 %v461, %v457
  %v498 = vpack.c.b16 %v466, %v462
  %v499 = vpack.c.b16 %v467, %v463
  %v500 = vpack.c.b16 %v468, %v464
  %v501 = vpack.c.b16 %v469, %v465
  %534 = vmatprep.subr.bf16.mxu0 %v471
  %535 = vmatpush1.bf16.msra.mxu0 %v470
  %536 = vmatprep.subr.bf16.mxu0 %v475
  %537 = vmatpush1.bf16.msra.mxu0 %v474
  %538 = vmatprep.subr.bf16.mxu0 %v479
  %539 = vmatpush1.bf16.msra.mxu0 %v478
  %540 = vmatprep.subr.bf16.mxu0 %v483
  %541 = vmatpush1.bf16.msra.mxu0 %v482
  %542 = vmatprep.subr.bf16.mxu0 %v487
  %543 = vmatpush1.bf16.msra.mxu0 %v486
  %544 = vmatprep.subr.bf16.mxu0 %v491
  %545 = vmatpush1.bf16.msra.mxu0 %v490
  %546 = vmatprep.subr.bf16.mxu0 %v495
  %547 = vmatpush1.bf16.msra.mxu0 %v494
  %548 = vmatprep.subr.bf16.mxu0 %v499
  %549 = vmatpush1.bf16.msra.mxu0 %v498
  %550 = vmatprep.subr.bf16.mxu0 0
  %551 = vmatpush1.bf16.msra.mxu0 0
  %552 = vmatprep.subr.bf16.mxu0 0
  %553 = vmatpush1.bf16.msra.mxu0 0
  %554 = vmatprep.subr.bf16.mxu0 0
  %555 = vmatpush1.bf16.msra.mxu0 0
  %556 = vmatprep.subr.bf16.mxu0 0
  %557 = vmatpush1.bf16.msra.mxu0 0
  %558 = vmatprep.subr.bf16.mxu0 0
  %559 = vmatpush1.bf16.msra.mxu0 0
  %560 = vmatprep.subr.bf16.mxu0 0
  %561 = vmatpush1.bf16.msra.mxu0 0
  %562 = vmatprep.subr.bf16.mxu0 0
  %563 = vmatpush1.bf16.msra.mxu0 0
  %564 = vmatprep.subr.bf16.mxu0 0
  %565 = vmatpush1.bf16.msra.mxu0 0
  %566 = vmatprep.mubr.bf16.mxu0 0
  %567 = vmatmul.mubr.bf16.gmra.mrb[0].mxu0 %v341
  %v568 = vpop.f32.mrb[0].mxu0
  %v569 = vadd.f32 0.0, %v568
  %v570 = vpop.f32.mrb[0].mxu0
  %v571 = vadd.f32 0.0, %v570
  %v572 = vpop.f32.mrb[0].mxu0
  %v573 = vpop.f32.mrb[0].mxu0
  %574 = vdwg.mxu0
  %575 = vmatprep.subr.bf16.mxu0 %v473
  %576 = vmatpush1.bf16.msra.mxu0 %v472
  %577 = vmatprep.subr.bf16.mxu0 %v477
  %578 = vmatpush1.bf16.msra.mxu0 %v476
  %579 = vmatprep.subr.bf16.mxu0 %v481
  %580 = vmatpush1.bf16.msra.mxu0 %v480
  %581 = vmatprep.subr.bf16.mxu0 %v485
  %582 = vmatpush1.bf16.msra.mxu0 %v484
  %583 = vmatprep.subr.bf16.mxu0 %v489
  %584 = vmatpush1.bf16.msra.mxu0 %v488
  %585 = vmatprep.subr.bf16.mxu0 %v493
  %586 = vmatpush1.bf16.msra.mxu0 %v492
  %587 = vmatprep.subr.bf16.mxu0 %v497
  %588 = vmatpush1.bf16.msra.mxu0 %v496
  %589 = vmatprep.subr.bf16.mxu0 %v501
  %590 = vmatpush1.bf16.msra.mxu0 %v500
  %591 = vmatprep.subr.bf16.mxu0 0
  %592 = vmatpush1.bf16.msra.mxu0 0
  %593 = vmatprep.subr.bf16.mxu0 0
  %594 = vmatpush1.bf16.msra.mxu0 0
  %595 = vmatprep.subr.bf16.mxu0 0
  %596 = vmatpush1.bf16.msra.mxu0 0
  %597 = vmatprep.subr.bf16.mxu0 0
  %598 = vmatpush1.bf16.msra.mxu0 0
  %599 = vmatprep.subr.bf16.mxu0 0
  %600 = vmatpush1.bf16.msra.mxu0 0
  %601 = vmatprep.subr.bf16.mxu0 0
  %602 = vmatpush1.bf16.msra.mxu0 0
  %603 = vmatprep.subr.bf16.mxu0 0
  %604 = vmatpush1.bf16.msra.mxu0 0
  %605 = vmatprep.subr.bf16.mxu0 0
  %606 = vmatpush1.bf16.msra.mxu0 0
  %607 = vmatprep.mubr.bf16.mxu0 0
  %608 = vmatmul.mubr.bf16.gmra.mrb[0].mxu0 %v341
  %v609 = vpop.f32.mrb[0].mxu0
  %v610 = vadd.f32 0.0, %v609
  %v611 = vpop.f32.mrb[0].mxu0
  %v612 = vadd.f32 0.0, %v611
  %v613 = vpop.f32.mrb[0].mxu0
  %v614 = vpop.f32.mrb[0].mxu0
  %615 = vdwg.mxu0
  %v616 = vadd.f32 %v337, %v569
  %v617 = vadd.f32 %v338, %v571
  %v618 = vadd.f32 %v339, %v610
  %v619 = vadd.f32 %v340, %v612
  %v620 = vxor.u32 %v616, 2147483648
  %v621 = vxor.u32 %v617, 2147483648
  %v622 = vxor.u32 %v618, 2147483648
  %v623 = vmul.f32 %v620, 1.442695
  %v624 = vpow.pop %v623
  %v625 = vmul.f32 %v621, 1.442695
  %v626 = vpow.pop %v625
  %v627 = vmul.f32 %v622, 1.442695
  %v628 = vpow.pop %v627
  %v629 = vadd.f32 %v624, 1.0
  %v630 = vadd.f32 %v626, 1.0
  %v631 = vadd.f32 %v628, 1.0
  %v632 = vrcp.pop %v629
  %v633 = vmul.f32 1.0, %v632
  %v634 = vrcp.pop %v630
  %v635 = vmul.f32 1.0, %v634
  %v636 = vrcp.pop %v631
  %v637 = vmul.f32 1.0, %v636
  %v638 = vtanh.pop %v619
  %v639 = vmul.f32 %v635, %v332
  %v640 = vmul.f32 %v633, %v638
  %v641 = vadd.f32 %v639, %v640
  %v642 = vtanh.pop %v641
  %v643 = vmul.f32 %v637, %v642
  %s644 = scalar_lea.vmem %s4, 8
  %645 = vst [vmem:[%s644] sm:$0xff] %v643
  %s646 = scalar_lea.vmem %s0, 64
  %v647 = vld [vmem:[%s646] sm:$0xff]
  %v648 = vld [vmem:[%s646 + $0x8] sm:$0xff]
  %v649 = vld [vmem:[%s646 + $0x10] sm:$0xff]
  %v650 = vld [vmem:[%s646 + $0x18] sm:$0xff]
  %v651 = vpack.c.bf16 %v643, %v643
  %v652 = vld [vmem:[%s1] sm:$0xff]
  %v653 = vld [vmem:[%s1 + $0x8] sm:$0xff]
  %v654 = vld [vmem:[%s1 + $0x10] sm:$0xff]
  %v655 = vld [vmem:[%s1 + $0x18] sm:$0xff]
  %v656 = vld [vmem:[%s1 + $0x20] sm:$0xff]
  %v657 = vld [vmem:[%s1 + $0x28] sm:$0xff]
  %v658 = vld [vmem:[%s1 + $0x30] sm:$0xff]
  %v659 = vld [vmem:[%s1 + $0x38] sm:$0xff]
  %v660 = vld [vmem:[%s1 + $0x40] sm:$0xff]
  %v661 = vld [vmem:[%s1 + $0x48] sm:$0xff]
  %v662 = vld [vmem:[%s1 + $0x50] sm:$0xff]
  %v663 = vld [vmem:[%s1 + $0x58] sm:$0xff]
  %v664 = vld [vmem:[%s1 + $0x60] sm:$0xff]
  %v665 = vld [vmem:[%s1 + $0x68] sm:$0xff]
  %v666 = vld [vmem:[%s1 + $0x70] sm:$0xff]
  %v667 = vld [vmem:[%s1 + $0x78] sm:$0xff]
  %v668 = vld [vmem:[%s1 + $0x80] sm:$0xff]
  %v669 = vld [vmem:[%s1 + $0x88] sm:$0xff]
  %v670 = vld [vmem:[%s1 + $0x90] sm:$0xff]
  %v671 = vld [vmem:[%s1 + $0x98] sm:$0xff]
  %v672 = vld [vmem:[%s1 + $0xa0] sm:$0xff]
  %v673 = vld [vmem:[%s1 + $0xa8] sm:$0xff]
  %v674 = vld [vmem:[%s1 + $0xb0] sm:$0xff]
  %v675 = vld [vmem:[%s1 + $0xb8] sm:$0xff]
  %v676 = vld [vmem:[%s1 + $0xc0] sm:$0xff]
  %v677 = vld [vmem:[%s1 + $0xc8] sm:$0xff]
  %v678 = vld [vmem:[%s1 + $0xd0] sm:$0xff]
  %v679 = vld [vmem:[%s1 + $0xd8] sm:$0xff]
  %v680 = vld [vmem:[%s1 + $0xe0] sm:$0xff]
  %v681 = vld [vmem:[%s1 + $0xe8] sm:$0xff]
  %v682 = vld [vmem:[%s1 + $0xf0] sm:$0xff]
  %v683 = vld [vmem:[%s1 + $0xf8] sm:$0xff]
  %v716 = vunpack.c.l.b16 %v652
  %v717 = vunpack.c.h.b16 %v652
  %v718 = vunpack.c.l.b16 %v653
  %v719 = vunpack.c.h.b16 %v653
  %v720 = vunpack.c.l.b16 %v654
  %v721 = vunpack.c.h.b16 %v654
  %v722 = vunpack.c.l.b16 %v655
  %v723 = vunpack.c.h.b16 %v655
  %v724 = vunpack.c.l.b16 %v656
  %v725 = vunpack.c.h.b16 %v656
  %v726 = vunpack.c.l.b16 %v657
  %v727 = vunpack.c.h.b16 %v657
  %v728 = vunpack.c.l.b16 %v658
  %v729 = vunpack.c.h.b16 %v658
  %v730 = vunpack.c.l.b16 %v659
  %v731 = vunpack.c.h.b16 %v659
  %v732 = vunpack.c.l.b16 %v660
  %v733 = vunpack.c.h.b16 %v660
  %v734 = vunpack.c.l.b16 %v661
  %v735 = vunpack.c.h.b16 %v661
  %v736 = vunpack.c.l.b16 %v662
  %v737 = vunpack.c.h.b16 %v662
  %v738 = vunpack.c.l.b16 %v663
  %v739 = vunpack.c.h.b16 %v663
  %v740 = vunpack.c.l.b16 %v664
  %v741 = vunpack.c.h.b16 %v664
  %v742 = vunpack.c.l.b16 %v665
  %v743 = vunpack.c.h.b16 %v665
  %v744 = vunpack.c.l.b16 %v666
  %v745 = vunpack.c.h.b16 %v666
  %v746 = vunpack.c.l.b16 %v667
  %v747 = vunpack.c.h.b16 %v667
  %v748 = vunpack.c.l.b16 %v668
  %v749 = vunpack.c.h.b16 %v668
  %v750 = vunpack.c.l.b16 %v669
  %v751 = vunpack.c.h.b16 %v669
  %v752 = vunpack.c.l.b16 %v670
  %v753 = vunpack.c.h.b16 %v670
  %v754 = vunpack.c.l.b16 %v671
  %v755 = vunpack.c.h.b16 %v671
  %v756 = vunpack.c.l.b16 %v672
  %v757 = vunpack.c.h.b16 %v672
  %v758 = vunpack.c.l.b16 %v673
  %v759 = vunpack.c.h.b16 %v673
  %v760 = vunpack.c.l.b16 %v674
  %v761 = vunpack.c.h.b16 %v674
  %v762 = vunpack.c.l.b16 %v675
  %v763 = vunpack.c.h.b16 %v675
  %v764 = vunpack.c.l.b16 %v676
  %v765 = vunpack.c.h.b16 %v676
  %v766 = vunpack.c.l.b16 %v677
  %v767 = vunpack.c.h.b16 %v677
  %v768 = vunpack.c.l.b16 %v678
  %v769 = vunpack.c.h.b16 %v678
  %v770 = vunpack.c.l.b16 %v679
  %v771 = vunpack.c.h.b16 %v679
  %v772 = vunpack.c.l.b16 %v680
  %v773 = vunpack.c.h.b16 %v680
  %v774 = vunpack.c.l.b16 %v681
  %v775 = vunpack.c.h.b16 %v681
  %v776 = vunpack.c.l.b16 %v682
  %v777 = vunpack.c.h.b16 %v682
  %v778 = vunpack.c.l.b16 %v683
  %v779 = vunpack.c.h.b16 %v683
  %v780 = vpack.c.b16 %v720, %v716
  %v781 = vpack.c.b16 %v721, %v717
  %v782 = vpack.c.b16 %v722, %v718
  %v783 = vpack.c.b16 %v723, %v719
  %v784 = vpack.c.b16 %v728, %v724
  %v785 = vpack.c.b16 %v729, %v725
  %v786 = vpack.c.b16 %v730, %v726
  %v787 = vpack.c.b16 %v731, %v727
  %v788 = vpack.c.b16 %v736, %v732
  %v789 = vpack.c.b16 %v737, %v733
  %v790 = vpack.c.b16 %v738, %v734
  %v791 = vpack.c.b16 %v739, %v735
  %v792 = vpack.c.b16 %v744, %v740
  %v793 = vpack.c.b16 %v745, %v741
  %v794 = vpack.c.b16 %v746, %v742
  %v795 = vpack.c.b16 %v747, %v743
  %v796 = vpack.c.b16 %v752, %v748
  %v797 = vpack.c.b16 %v753, %v749
  %v798 = vpack.c.b16 %v754, %v750
  %v799 = vpack.c.b16 %v755, %v751
  %v800 = vpack.c.b16 %v760, %v756
  %v801 = vpack.c.b16 %v761, %v757
  %v802 = vpack.c.b16 %v762, %v758
  %v803 = vpack.c.b16 %v763, %v759
  %v804 = vpack.c.b16 %v768, %v764
  %v805 = vpack.c.b16 %v769, %v765
  %v806 = vpack.c.b16 %v770, %v766
  %v807 = vpack.c.b16 %v771, %v767
  %v808 = vpack.c.b16 %v776, %v772
  %v809 = vpack.c.b16 %v777, %v773
  %v810 = vpack.c.b16 %v778, %v774
  %v811 = vpack.c.b16 %v779, %v775
  %844 = vmatprep.subr.bf16.mxu0 %v781
  %845 = vmatpush1.bf16.msra.mxu0 %v780
  %846 = vmatprep.subr.bf16.mxu0 %v785
  %847 = vmatpush1.bf16.msra.mxu0 %v784
  %848 = vmatprep.subr.bf16.mxu0 %v789
  %849 = vmatpush1.bf16.msra.mxu0 %v788
  %850 = vmatprep.subr.bf16.mxu0 %v793
  %851 = vmatpush1.bf16.msra.mxu0 %v792
  %852 = vmatprep.subr.bf16.mxu0 %v797
  %853 = vmatpush1.bf16.msra.mxu0 %v796
  %854 = vmatprep.subr.bf16.mxu0 %v801
  %855 = vmatpush1.bf16.msra.mxu0 %v800
  %856 = vmatprep.subr.bf16.mxu0 %v805
  %857 = vmatpush1.bf16.msra.mxu0 %v804
  %858 = vmatprep.subr.bf16.mxu0 %v809
  %859 = vmatpush1.bf16.msra.mxu0 %v808
  %860 = vmatprep.subr.bf16.mxu0 0
  %861 = vmatpush1.bf16.msra.mxu0 0
  %862 = vmatprep.subr.bf16.mxu0 0
  %863 = vmatpush1.bf16.msra.mxu0 0
  %864 = vmatprep.subr.bf16.mxu0 0
  %865 = vmatpush1.bf16.msra.mxu0 0
  %866 = vmatprep.subr.bf16.mxu0 0
  %867 = vmatpush1.bf16.msra.mxu0 0
  %868 = vmatprep.subr.bf16.mxu0 0
  %869 = vmatpush1.bf16.msra.mxu0 0
  %870 = vmatprep.subr.bf16.mxu0 0
  %871 = vmatpush1.bf16.msra.mxu0 0
  %872 = vmatprep.subr.bf16.mxu0 0
  %873 = vmatpush1.bf16.msra.mxu0 0
  %874 = vmatprep.subr.bf16.mxu0 0
  %875 = vmatpush1.bf16.msra.mxu0 0
  %876 = vmatprep.mubr.bf16.mxu0 0
  %877 = vmatmul.mubr.bf16.gmra.mrb[0].mxu0 %v651
  %v878 = vpop.f32.mrb[0].mxu0
  %v879 = vadd.f32 0.0, %v878
  %v880 = vpop.f32.mrb[0].mxu0
  %v881 = vadd.f32 0.0, %v880
  %v882 = vpop.f32.mrb[0].mxu0
  %v883 = vpop.f32.mrb[0].mxu0
  %884 = vdwg.mxu0
  %885 = vmatprep.subr.bf16.mxu0 %v783
  %886 = vmatpush1.bf16.msra.mxu0 %v782
  %887 = vmatprep.subr.bf16.mxu0 %v787
  %888 = vmatpush1.bf16.msra.mxu0 %v786
  %889 = vmatprep.subr.bf16.mxu0 %v791
  %890 = vmatpush1.bf16.msra.mxu0 %v790
  %891 = vmatprep.subr.bf16.mxu0 %v795
  %892 = vmatpush1.bf16.msra.mxu0 %v794
  %893 = vmatprep.subr.bf16.mxu0 %v799
  %894 = vmatpush1.bf16.msra.mxu0 %v798
  %895 = vmatprep.subr.bf16.mxu0 %v803
  %896 = vmatpush1.bf16.msra.mxu0 %v802
  %897 = vmatprep.subr.bf16.mxu0 %v807
  %898 = vmatpush1.bf16.msra.mxu0 %v806
  %899 = vmatprep.subr.bf16.mxu0 %v811
  %900 = vmatpush1.bf16.msra.mxu0 %v810
  %901 = vmatprep.subr.bf16.mxu0 0
  %902 = vmatpush1.bf16.msra.mxu0 0
  %903 = vmatprep.subr.bf16.mxu0 0
  %904 = vmatpush1.bf16.msra.mxu0 0
  %905 = vmatprep.subr.bf16.mxu0 0
  %906 = vmatpush1.bf16.msra.mxu0 0
  %907 = vmatprep.subr.bf16.mxu0 0
  %908 = vmatpush1.bf16.msra.mxu0 0
  %909 = vmatprep.subr.bf16.mxu0 0
  %910 = vmatpush1.bf16.msra.mxu0 0
  %911 = vmatprep.subr.bf16.mxu0 0
  %912 = vmatpush1.bf16.msra.mxu0 0
  %913 = vmatprep.subr.bf16.mxu0 0
  %914 = vmatpush1.bf16.msra.mxu0 0
  %915 = vmatprep.subr.bf16.mxu0 0
  %916 = vmatpush1.bf16.msra.mxu0 0
  %917 = vmatprep.mubr.bf16.mxu0 0
  %918 = vmatmul.mubr.bf16.gmra.mrb[0].mxu0 %v651
  %v919 = vpop.f32.mrb[0].mxu0
  %v920 = vadd.f32 0.0, %v919
  %v921 = vpop.f32.mrb[0].mxu0
  %v922 = vadd.f32 0.0, %v921
  %v923 = vpop.f32.mrb[0].mxu0
  %v924 = vpop.f32.mrb[0].mxu0
  %925 = vdwg.mxu0
  %v926 = vadd.f32 %v647, %v879
  %v927 = vadd.f32 %v648, %v881
  %v928 = vadd.f32 %v649, %v920
  %v929 = vadd.f32 %v650, %v922
  %v930 = vxor.u32 %v926, 2147483648
  %v931 = vxor.u32 %v927, 2147483648
  %v932 = vxor.u32 %v928, 2147483648
  %v933 = vmul.f32 %v930, 1.442695
  %v934 = vpow.pop %v933
  %v935 = vmul.f32 %v931, 1.442695
  %v936 = vpow.pop %v935
  %v937 = vmul.f32 %v932, 1.442695
  %v938 = vpow.pop %v937
  %v939 = vadd.f32 %v934, 1.0
  %v940 = vadd.f32 %v936, 1.0
  %v941 = vadd.f32 %v938, 1.0
  %v942 = vrcp.pop %v939
  %v943 = vmul.f32 1.0, %v942
  %v944 = vrcp.pop %v940
  %v945 = vmul.f32 1.0, %v944
  %v946 = vrcp.pop %v941
  %v947 = vmul.f32 1.0, %v946
  %v948 = vtanh.pop %v929
  %v949 = vmul.f32 %v945, %v641
  %v950 = vmul.f32 %v943, %v948
  %v951 = vadd.f32 %v949, %v950
  %v952 = vtanh.pop %v951
  %v953 = vmul.f32 %v947, %v952
  %s954 = scalar_lea.vmem %s4, 16
  %955 = vst [vmem:[%s954] sm:$0xff] %v953
  %s956 = scalar_lea.vmem %s0, 96
  %v957 = vld [vmem:[%s956] sm:$0xff]
  %v958 = vld [vmem:[%s956 + $0x8] sm:$0xff]
  %v959 = vld [vmem:[%s956 + $0x10] sm:$0xff]
  %v960 = vld [vmem:[%s956 + $0x18] sm:$0xff]
  %v961 = vpack.c.bf16 %v953, %v953
  %v962 = vld [vmem:[%s1] sm:$0xff]
  %v963 = vld [vmem:[%s1 + $0x8] sm:$0xff]
  %v964 = vld [vmem:[%s1 + $0x10] sm:$0xff]
  %v965 = vld [vmem:[%s1 + $0x18] sm:$0xff]
  %v966 = vld [vmem:[%s1 + $0x20] sm:$0xff]
  %v967 = vld [vmem:[%s1 + $0x28] sm:$0xff]
  %v968 = vld [vmem:[%s1 + $0x30] sm:$0xff]
  %v969 = vld [vmem:[%s1 + $0x38] sm:$0xff]
  %v970 = vld [vmem:[%s1 + $0x40] sm:$0xff]
  %v971 = vld [vmem:[%s1 + $0x48] sm:$0xff]
  %v972 = vld [vmem:[%s1 + $0x50] sm:$0xff]
  %v973 = vld [vmem:[%s1 + $0x58] sm:$0xff]
  %v974 = vld [vmem:[%s1 + $0x60] sm:$0xff]
  %v975 = vld [vmem:[%s1 + $0x68] sm:$0xff]
  %v976 = vld [vmem:[%s1 + $0x70] sm:$0xff]
  %v977 = vld [vmem:[%s1 + $0x78] sm:$0xff]
  %v978 = vld [vmem:[%s1 + $0x80] sm:$0xff]
  %v979 = vld [vmem:[%s1 + $0x88] sm:$0xff]
  %v980 = vld [vmem:[%s1 + $0x90] sm:$0xff]
  %v981 = vld [vmem:[%s1 + $0x98] sm:$0xff]
  %v982 = vld [vmem:[%s1 + $0xa0] sm:$0xff]
  %v983 = vld [vmem:[%s1 + $0xa8] sm:$0xff]
  %v984 = vld [vmem:[%s1 + $0xb0] sm:$0xff]
  %v985 = vld [vmem:[%s1 + $0xb8] sm:$0xff]
  %v986 = vld [vmem:[%s1 + $0xc0] sm:$0xff]
  %v987 = vld [vmem:[%s1 + $0xc8] sm:$0xff]
  %v988 = vld [vmem:[%s1 + $0xd0] sm:$0xff]
  %v989 = vld [vmem:[%s1 + $0xd8] sm:$0xff]
  %v990 = vld [vmem:[%s1 + $0xe0] sm:$0xff]
  %v991 = vld [vmem:[%s1 + $0xe8] sm:$0xff]
  %v992 = vld [vmem:[%s1 + $0xf0] sm:$0xff]
  %v993 = vld [vmem:[%s1 + $0xf8] sm:$0xff]
  %v1026 = vunpack.c.l.b16 %v962
  %v1027 = vunpack.c.h.b16 %v962
  %v1028 = vunpack.c.l.b16 %v963
  %v1029 = vunpack.c.h.b16 %v963
  %v1030 = vunpack.c.l.b16 %v964
  %v1031 = vunpack.c.h.b16 %v964
  %v1032 = vunpack.c.l.b16 %v965
  %v1033 = vunpack.c.h.b16 %v965
  %v1034 = vunpack.c.l.b16 %v966
  %v1035 = vunpack.c.h.b16 %v966
  %v1036 = vunpack.c.l.b16 %v967
  %v1037 = vunpack.c.h.b16 %v967
  %v1038 = vunpack.c.l.b16 %v968
  %v1039 = vunpack.c.h.b16 %v968
  %v1040 = vunpack.c.l.b16 %v969
  %v1041 = vunpack.c.h.b16 %v969
  %v1042 = vunpack.c.l.b16 %v970
  %v1043 = vunpack.c.h.b16 %v970
  %v1044 = vunpack.c.l.b16 %v971
  %v1045 = vunpack.c.h.b16 %v971
  %v1046 = vunpack.c.l.b16 %v972
  %v1047 = vunpack.c.h.b16 %v972
  %v1048 = vunpack.c.l.b16 %v973
  %v1049 = vunpack.c.h.b16 %v973
  %v1050 = vunpack.c.l.b16 %v974
  %v1051 = vunpack.c.h.b16 %v974
  %v1052 = vunpack.c.l.b16 %v975
  %v1053 = vunpack.c.h.b16 %v975
  %v1054 = vunpack.c.l.b16 %v976
  %v1055 = vunpack.c.h.b16 %v976
  %v1056 = vunpack.c.l.b16 %v977
  %v1057 = vunpack.c.h.b16 %v977
  %v1058 = vunpack.c.l.b16 %v978
  %v1059 = vunpack.c.h.b16 %v978
  %v1060 = vunpack.c.l.b16 %v979
  %v1061 = vunpack.c.h.b16 %v979
  %v1062 = vunpack.c.l.b16 %v980
  %v1063 = vunpack.c.h.b16 %v980
  %v1064 = vunpack.c.l.b16 %v981
  %v1065 = vunpack.c.h.b16 %v981
  %v1066 = vunpack.c.l.b16 %v982
  %v1067 = vunpack.c.h.b16 %v982
  %v1068 = vunpack.c.l.b16 %v983
  %v1069 = vunpack.c.h.b16 %v983
  %v1070 = vunpack.c.l.b16 %v984
  %v1071 = vunpack.c.h.b16 %v984
  %v1072 = vunpack.c.l.b16 %v985
  %v1073 = vunpack.c.h.b16 %v985
  %v1074 = vunpack.c.l.b16 %v986
  %v1075 = vunpack.c.h.b16 %v986
  %v1076 = vunpack.c.l.b16 %v987
  %v1077 = vunpack.c.h.b16 %v987
  %v1078 = vunpack.c.l.b16 %v988
  %v1079 = vunpack.c.h.b16 %v988
  %v1080 = vunpack.c.l.b16 %v989
  %v1081 = vunpack.c.h.b16 %v989
  %v1082 = vunpack.c.l.b16 %v990
  %v1083 = vunpack.c.h.b16 %v990
  %v1084 = vunpack.c.l.b16 %v991
  %v1085 = vunpack.c.h.b16 %v991
  %v1086 = vunpack.c.l.b16 %v992
  %v1087 = vunpack.c.h.b16 %v992
  %v1088 = vunpack.c.l.b16 %v993
  %v1089 = vunpack.c.h.b16 %v993
  %v1090 = vpack.c.b16 %v1030, %v1026
  %v1091 = vpack.c.b16 %v1031, %v1027
  %v1092 = vpack.c.b16 %v1032, %v1028
  %v1093 = vpack.c.b16 %v1033, %v1029
  %v1094 = vpack.c.b16 %v1038, %v1034
  %v1095 = vpack.c.b16 %v1039, %v1035
  %v1096 = vpack.c.b16 %v1040, %v1036
  %v1097 = vpack.c.b16 %v1041, %v1037
  %v1098 = vpack.c.b16 %v1046, %v1042
  %v1099 = vpack.c.b16 %v1047, %v1043
  %v1100 = vpack.c.b16 %v1048, %v1044
  %v1101 = vpack.c.b16 %v1049, %v1045
  %v1102 = vpack.c.b16 %v1054, %v1050
  %v1103 = vpack.c.b16 %v1055, %v1051
  %v1104 = vpack.c.b16 %v1056, %v1052
  %v1105 = vpack.c.b16 %v1057, %v1053
  %v1106 = vpack.c.b16 %v1062, %v1058
  %v1107 = vpack.c.b16 %v1063, %v1059
  %v1108 = vpack.c.b16 %v1064, %v1060
  %v1109 = vpack.c.b16 %v1065, %v1061
  %v1110 = vpack.c.b16 %v1070, %v1066
  %v1111 = vpack.c.b16 %v1071, %v1067
  %v1112 = vpack.c.b16 %v1072, %v1068
  %v1113 = vpack.c.b16 %v1073, %v1069
  %v1114 = vpack.c.b16 %v1078, %v1074
  %v1115 = vpack.c.b16 %v1079, %v1075
  %v1116 = vpack.c.b16 %v1080, %v1076
  %v1117 = vpack.c.b16 %v1081, %v1077
  %v1118 = vpack.c.b16 %v1086, %v1082
  %v1119 = vpack.c.b16 %v1087, %v1083
  %v1120 = vpack.c.b16 %v1088, %v1084
  %v1121 = vpack.c.b16 %v1089, %v1085
  %1154 = vmatprep.subr.bf16.mxu0 %v1091
  %1155 = vmatpush1.bf16.msra.mxu0 %v1090
  %1156 = vmatprep.subr.bf16.mxu0 %v1095
  %1157 = vmatpush1.bf16.msra.mxu0 %v1094
  %1158 = vmatprep.subr.bf16.mxu0 %v1099
  %1159 = vmatpush1.bf16.msra.mxu0 %v1098
  %1160 = vmatprep.subr.bf16.mxu0 %v1103
  %1161 = vmatpush1.bf16.msra.mxu0 %v1102
  %1162 = vmatprep.subr.bf16.mxu0 %v1107
  %1163 = vmatpush1.bf16.msra.mxu0 %v1106
  %1164 = vmatprep.subr.bf16.mxu0 %v1111
  %1165 = vmatpush1.bf16.msra.mxu0 %v1110
  %1166 = vmatprep.subr.bf16.mxu0 %v1115
  %1167 = vmatpush1.bf16.msra.mxu0 %v1114
  %1168 = vmatprep.subr.bf16.mxu0 %v1119
  %1169 = vmatpush1.bf16.msra.mxu0 %v1118
  %1170 = vmatprep.subr.bf16.mxu0 0
  %1171 = vmatpush1.bf16.msra.mxu0 0
  %1172 = vmatprep.subr.bf16.mxu0 0
  %1173 = vmatpush1.bf16.msra.mxu0 0
  %1174 = vmatprep.subr.bf16.mxu0 0
  %1175 = vmatpush1.bf16.msra.mxu0 0
  %1176 = vmatprep.subr.bf16.mxu0 0
  %1177 = vmatpush1.bf16.msra.mxu0 0
  %1178 = vmatprep.subr.bf16.mxu0 0
  %1179 = vmatpush1.bf16.msra.mxu0 0
  %1180 = vmatprep.subr.bf16.mxu0 0
  %1181 = vmatpush1.bf16.msra.mxu0 0
  %1182 = vmatprep.subr.bf16.mxu0 0
  %1183 = vmatpush1.bf16.msra.mxu0 0
  %1184 = vmatprep.subr.bf16.mxu0 0
  %1185 = vmatpush1.bf16.msra.mxu0 0
  %1186 = vmatprep.mubr.bf16.mxu0 0
  %1187 = vmatmul.mubr.bf16.gmra.mrb[0].mxu0 %v961
  %v1188 = vpop.f32.mrb[0].mxu0
  %v1189 = vadd.f32 0.0, %v1188
  %v1190 = vpop.f32.mrb[0].mxu0
  %v1191 = vadd.f32 0.0, %v1190
  %v1192 = vpop.f32.mrb[0].mxu0
  %v1193 = vpop.f32.mrb[0].mxu0
  %1194 = vdwg.mxu0
  %1195 = vmatprep.subr.bf16.mxu0 %v1093
  %1196 = vmatpush1.bf16.msra.mxu0 %v1092
  %1197 = vmatprep.subr.bf16.mxu0 %v1097
  %1198 = vmatpush1.bf16.msra.mxu0 %v1096
  %1199 = vmatprep.subr.bf16.mxu0 %v1101
  %1200 = vmatpush1.bf16.msra.mxu0 %v1100
  %1201 = vmatprep.subr.bf16.mxu0 %v1105
  %1202 = vmatpush1.bf16.msra.mxu0 %v1104
  %1203 = vmatprep.subr.bf16.mxu0 %v1109
  %1204 = vmatpush1.bf16.msra.mxu0 %v1108
  %1205 = vmatprep.subr.bf16.mxu0 %v1113
  %1206 = vmatpush1.bf16.msra.mxu0 %v1112
  %1207 = vmatprep.subr.bf16.mxu0 %v1117
  %1208 = vmatpush1.bf16.msra.mxu0 %v1116
  %1209 = vmatprep.subr.bf16.mxu0 %v1121
  %1210 = vmatpush1.bf16.msra.mxu0 %v1120
  %1211 = vmatprep.subr.bf16.mxu0 0
  %1212 = vmatpush1.bf16.msra.mxu0 0
  %1213 = vmatprep.subr.bf16.mxu0 0
  %1214 = vmatpush1.bf16.msra.mxu0 0
  %1215 = vmatprep.subr.bf16.mxu0 0
  %1216 = vmatpush1.bf16.msra.mxu0 0
  %1217 = vmatprep.subr.bf16.mxu0 0
  %1218 = vmatpush1.bf16.msra.mxu0 0
  %1219 = vmatprep.subr.bf16.mxu0 0
  %1220 = vmatpush1.bf16.msra.mxu0 0
  %1221 = vmatprep.subr.bf16.mxu0 0
  %1222 = vmatpush1.bf16.msra.mxu0 0
  %1223 = vmatprep.subr.bf16.mxu0 0
  %1224 = vmatpush1.bf16.msra.mxu0 0
  %1225 = vmatprep.subr.bf16.mxu0 0
  %1226 = vmatpush1.bf16.msra.mxu0 0
  %1227 = vmatprep.mubr.bf16.mxu0 0
  %1228 = vmatmul.mubr.bf16.gmra.mrb[0].mxu0 %v961
  %v1229 = vpop.f32.mrb[0].mxu0
  %v1230 = vadd.f32 0.0, %v1229
  %v1231 = vpop.f32.mrb[0].mxu0
  %v1232 = vadd.f32 0.0, %v1231
  %v1233 = vpop.f32.mrb[0].mxu0
  %v1234 = vpop.f32.mrb[0].mxu0
  %1235 = vdwg.mxu0
  %v1236 = vadd.f32 %v957, %v1189
  %v1237 = vadd.f32 %v958, %v1191
  %v1238 = vadd.f32 %v959, %v1230
  %v1239 = vadd.f32 %v960, %v1232
  %v1240 = vxor.u32 %v1236, 2147483648
  %v1241 = vxor.u32 %v1237, 2147483648
  %v1242 = vxor.u32 %v1238, 2147483648
  %v1243 = vmul.f32 %v1240, 1.442695
  %v1244 = vpow.pop %v1243
  %v1245 = vmul.f32 %v1241, 1.442695
  %v1246 = vpow.pop %v1245
  %v1247 = vmul.f32 %v1242, 1.442695
  %v1248 = vpow.pop %v1247
  %v1249 = vadd.f32 %v1244, 1.0
  %v1250 = vadd.f32 %v1246, 1.0
  %v1251 = vadd.f32 %v1248, 1.0
  %v1252 = vrcp.pop %v1249
  %v1253 = vmul.f32 1.0, %v1252
  %v1254 = vrcp.pop %v1250
  %v1255 = vmul.f32 1.0, %v1254
  %v1256 = vrcp.pop %v1251
  %v1257 = vmul.f32 1.0, %v1256
  %v1258 = vtanh.pop %v1239
  %v1259 = vmul.f32 %v1255, %v951
  %v1260 = vmul.f32 %v1253, %v1258
  %v1261 = vadd.f32 %v1259, %v1260
  %v1262 = vtanh.pop %v1261
  %v1263 = vmul.f32 %v1257, %v1262
  %s1264 = scalar_lea.vmem %s4, 24
  %1265 = vst [vmem:[%s1264] sm:$0xff] %v1263
  %s1266 = scalar_lea.vmem %s0, 128
  %v1267 = vld [vmem:[%s1266] sm:$0xff]
  %v1268 = vld [vmem:[%s1266 + $0x8] sm:$0xff]
  %v1269 = vld [vmem:[%s1266 + $0x10] sm:$0xff]
  %v1270 = vld [vmem:[%s1266 + $0x18] sm:$0xff]
  %v1271 = vpack.c.bf16 %v1263, %v1263
  %v1272 = vld [vmem:[%s1] sm:$0xff]
  %v1273 = vld [vmem:[%s1 + $0x8] sm:$0xff]
  %v1274 = vld [vmem:[%s1 + $0x10] sm:$0xff]
  %v1275 = vld [vmem:[%s1 + $0x18] sm:$0xff]
  %v1276 = vld [vmem:[%s1 + $0x20] sm:$0xff]
  %v1277 = vld [vmem:[%s1 + $0x28] sm:$0xff]
  %v1278 = vld [vmem:[%s1 + $0x30] sm:$0xff]
  %v1279 = vld [vmem:[%s1 + $0x38] sm:$0xff]
  %v1280 = vld [vmem:[%s1 + $0x40] sm:$0xff]
  %v1281 = vld [vmem:[%s1 + $0x48] sm:$0xff]
  %v1282 = vld [vmem:[%s1 + $0x50] sm:$0xff]
  %v1283 = vld [vmem:[%s1 + $0x58] sm:$0xff]
  %v1284 = vld [vmem:[%s1 + $0x60] sm:$0xff]
  %v1285 = vld [vmem:[%s1 + $0x68] sm:$0xff]
  %v1286 = vld [vmem:[%s1 + $0x70] sm:$0xff]
  %v1287 = vld [vmem:[%s1 + $0x78] sm:$0xff]
  %v1288 = vld [vmem:[%s1 + $0x80] sm:$0xff]
  %v1289 = vld [vmem:[%s1 + $0x88] sm:$0xff]
  %v1290 = vld [vmem:[%s1 + $0x90] sm:$0xff]
  %v1291 = vld [vmem:[%s1 + $0x98] sm:$0xff]
  %v1292 = vld [vmem:[%s1 + $0xa0] sm:$0xff]
  %v1293 = vld [vmem:[%s1 + $0xa8] sm:$0xff]
  %v1294 = vld [vmem:[%s1 + $0xb0] sm:$0xff]
  %v1295 = vld [vmem:[%s1 + $0xb8] sm:$0xff]
  %v1296 = vld [vmem:[%s1 + $0xc0] sm:$0xff]
  %v1297 = vld [vmem:[%s1 + $0xc8] sm:$0xff]
  %v1298 = vld [vmem:[%s1 + $0xd0] sm:$0xff]
  %v1299 = vld [vmem:[%s1 + $0xd8] sm:$0xff]
  %v1300 = vld [vmem:[%s1 + $0xe0] sm:$0xff]
  %v1301 = vld [vmem:[%s1 + $0xe8] sm:$0xff]
  %v1302 = vld [vmem:[%s1 + $0xf0] sm:$0xff]
  %v1303 = vld [vmem:[%s1 + $0xf8] sm:$0xff]
  %v1336 = vunpack.c.l.b16 %v1272
  %v1337 = vunpack.c.h.b16 %v1272
  %v1338 = vunpack.c.l.b16 %v1273
  %v1339 = vunpack.c.h.b16 %v1273
  %v1340 = vunpack.c.l.b16 %v1274
  %v1341 = vunpack.c.h.b16 %v1274
  %v1342 = vunpack.c.l.b16 %v1275
  %v1343 = vunpack.c.h.b16 %v1275
  %v1344 = vunpack.c.l.b16 %v1276
  %v1345 = vunpack.c.h.b16 %v1276
  %v1346 = vunpack.c.l.b16 %v1277
  %v1347 = vunpack.c.h.b16 %v1277
  %v1348 = vunpack.c.l.b16 %v1278
  %v1349 = vunpack.c.h.b16 %v1278
  %v1350 = vunpack.c.l.b16 %v1279
  %v1351 = vunpack.c.h.b16 %v1279
  %v1352 = vunpack.c.l.b16 %v1280
  %v1353 = vunpack.c.h.b16 %v1280
  %v1354 = vunpack.c.l.b16 %v1281
  %v1355 = vunpack.c.h.b16 %v1281
  %v1356 = vunpack.c.l.b16 %v1282
  %v1357 = vunpack.c.h.b16 %v1282
  %v1358 = vunpack.c.l.b16 %v1283
  %v1359 = vunpack.c.h.b16 %v1283
  %v1360 = vunpack.c.l.b16 %v1284
  %v1361 = vunpack.c.h.b16 %v1284
  %v1362 = vunpack.c.l.b16 %v1285
  %v1363 = vunpack.c.h.b16 %v1285
  %v1364 = vunpack.c.l.b16 %v1286
  %v1365 = vunpack.c.h.b16 %v1286
  %v1366 = vunpack.c.l.b16 %v1287
  %v1367 = vunpack.c.h.b16 %v1287
  %v1368 = vunpack.c.l.b16 %v1288
  %v1369 = vunpack.c.h.b16 %v1288
  %v1370 = vunpack.c.l.b16 %v1289
  %v1371 = vunpack.c.h.b16 %v1289
  %v1372 = vunpack.c.l.b16 %v1290
  %v1373 = vunpack.c.h.b16 %v1290
  %v1374 = vunpack.c.l.b16 %v1291
  %v1375 = vunpack.c.h.b16 %v1291
  %v1376 = vunpack.c.l.b16 %v1292
  %v1377 = vunpack.c.h.b16 %v1292
  %v1378 = vunpack.c.l.b16 %v1293
  %v1379 = vunpack.c.h.b16 %v1293
  %v1380 = vunpack.c.l.b16 %v1294
  %v1381 = vunpack.c.h.b16 %v1294
  %v1382 = vunpack.c.l.b16 %v1295
  %v1383 = vunpack.c.h.b16 %v1295
  %v1384 = vunpack.c.l.b16 %v1296
  %v1385 = vunpack.c.h.b16 %v1296
  %v1386 = vunpack.c.l.b16 %v1297
  %v1387 = vunpack.c.h.b16 %v1297
  %v1388 = vunpack.c.l.b16 %v1298
  %v1389 = vunpack.c.h.b16 %v1298
  %v1390 = vunpack.c.l.b16 %v1299
  %v1391 = vunpack.c.h.b16 %v1299
  %v1392 = vunpack.c.l.b16 %v1300
  %v1393 = vunpack.c.h.b16 %v1300
  %v1394 = vunpack.c.l.b16 %v1301
  %v1395 = vunpack.c.h.b16 %v1301
  %v1396 = vunpack.c.l.b16 %v1302
  %v1397 = vunpack.c.h.b16 %v1302
  %v1398 = vunpack.c.l.b16 %v1303
  %v1399 = vunpack.c.h.b16 %v1303
  %v1400 = vpack.c.b16 %v1340, %v1336
  %v1401 = vpack.c.b16 %v1341, %v1337
  %v1402 = vpack.c.b16 %v1342, %v1338
  %v1403 = vpack.c.b16 %v1343, %v1339
  %v1404 = vpack.c.b16 %v1348, %v1344
  %v1405 = vpack.c.b16 %v1349, %v1345
  %v1406 = vpack.c.b16 %v1350, %v1346
  %v1407 = vpack.c.b16 %v1351, %v1347
  %v1408 = vpack.c.b16 %v1356, %v1352
  %v1409 = vpack.c.b16 %v1357, %v1353
  %v1410 = vpack.c.b16 %v1358, %v1354
  %v1411 = vpack.c.b16 %v1359, %v1355
  %v1412 = vpack.c.b16 %v1364, %v1360
  %v1413 = vpack.c.b16 %v1365, %v1361
  %v1414 = vpack.c.b16 %v1366, %v1362
  %v1415 = vpack.c.b16 %v1367, %v1363
  %v1416 = vpack.c.b16 %v1372, %v1368
  %v1417 = vpack.c.b16 %v1373, %v1369
  %v1418 = vpack.c.b16 %v1374, %v1370
  %v1419 = vpack.c.b16 %v1375, %v1371
  %v1420 = vpack.c.b16 %v1380, %v1376
  %v1421 = vpack.c.b16 %v1381, %v1377
  %v1422 = vpack.c.b16 %v1382, %v1378
  %v1423 = vpack.c.b16 %v1383, %v1379
  %v1424 = vpack.c.b16 %v1388, %v1384
  %v1425 = vpack.c.b16 %v1389, %v1385
  %v1426 = vpack.c.b16 %v1390, %v1386
  %v1427 = vpack.c.b16 %v1391, %v1387
  %v1428 = vpack.c.b16 %v1396, %v1392
  %v1429 = vpack.c.b16 %v1397, %v1393
  %v1430 = vpack.c.b16 %v1398, %v1394
  %v1431 = vpack.c.b16 %v1399, %v1395
  %1464 = vmatprep.subr.bf16.mxu0 %v1401
  %1465 = vmatpush1.bf16.msra.mxu0 %v1400
  %1466 = vmatprep.subr.bf16.mxu0 %v1405
  %1467 = vmatpush1.bf16.msra.mxu0 %v1404
  %1468 = vmatprep.subr.bf16.mxu0 %v1409
  %1469 = vmatpush1.bf16.msra.mxu0 %v1408
  %1470 = vmatprep.subr.bf16.mxu0 %v1413
  %1471 = vmatpush1.bf16.msra.mxu0 %v1412
  %1472 = vmatprep.subr.bf16.mxu0 %v1417
  %1473 = vmatpush1.bf16.msra.mxu0 %v1416
  %1474 = vmatprep.subr.bf16.mxu0 %v1421
  %1475 = vmatpush1.bf16.msra.mxu0 %v1420
  %1476 = vmatprep.subr.bf16.mxu0 %v1425
  %1477 = vmatpush1.bf16.msra.mxu0 %v1424
  %1478 = vmatprep.subr.bf16.mxu0 %v1429
  %1479 = vmatpush1.bf16.msra.mxu0 %v1428
  %1480 = vmatprep.subr.bf16.mxu0 0
  %1481 = vmatpush1.bf16.msra.mxu0 0
  %1482 = vmatprep.subr.bf16.mxu0 0
  %1483 = vmatpush1.bf16.msra.mxu0 0
  %1484 = vmatprep.subr.bf16.mxu0 0
  %1485 = vmatpush1.bf16.msra.mxu0 0
  %1486 = vmatprep.subr.bf16.mxu0 0
  %1487 = vmatpush1.bf16.msra.mxu0 0
  %1488 = vmatprep.subr.bf16.mxu0 0
  %1489 = vmatpush1.bf16.msra.mxu0 0
  %1490 = vmatprep.subr.bf16.mxu0 0
  %1491 = vmatpush1.bf16.msra.mxu0 0
  %1492 = vmatprep.subr.bf16.mxu0 0
  %1493 = vmatpush1.bf16.msra.mxu0 0
  %1494 = vmatprep.subr.bf16.mxu0 0
  %1495 = vmatpush1.bf16.msra.mxu0 0
  %1496 = vmatprep.mubr.bf16.mxu0 0
  %1497 = vmatmul.mubr.bf16.gmra.mrb[0].mxu0 %v1271
  %v1498 = vpop.f32.mrb[0].mxu0
  %v1499 = vadd.f32 0.0, %v1498
  %v1500 = vpop.f32.mrb[0].mxu0
  %v1501 = vadd.f32 0.0, %v1500
  %v1502 = vpop.f32.mrb[0].mxu0
  %v1503 = vpop.f32.mrb[0].mxu0
  %1504 = vdwg.mxu0
  %1505 = vmatprep.subr.bf16.mxu0 %v1403
  %1506 = vmatpush1.bf16.msra.mxu0 %v1402
  %1507 = vmatprep.subr.bf16.mxu0 %v1407
  %1508 = vmatpush1.bf16.msra.mxu0 %v1406
  %1509 = vmatprep.subr.bf16.mxu0 %v1411
  %1510 = vmatpush1.bf16.msra.mxu0 %v1410
  %1511 = vmatprep.subr.bf16.mxu0 %v1415
  %1512 = vmatpush1.bf16.msra.mxu0 %v1414
  %1513 = vmatprep.subr.bf16.mxu0 %v1419
  %1514 = vmatpush1.bf16.msra.mxu0 %v1418
  %1515 = vmatprep.subr.bf16.mxu0 %v1423
  %1516 = vmatpush1.bf16.msra.mxu0 %v1422
  %1517 = vmatprep.subr.bf16.mxu0 %v1427
  %1518 = vmatpush1.bf16.msra.mxu0 %v1426
  %1519 = vmatprep.subr.bf16.mxu0 %v1431
  %1520 = vmatpush1.bf16.msra.mxu0 %v1430
  %1521 = vmatprep.subr.bf16.mxu0 0
  %1522 = vmatpush1.bf16.msra.mxu0 0
  %1523 = vmatprep.subr.bf16.mxu0 0
  %1524 = vmatpush1.bf16.msra.mxu0 0
  %1525 = vmatprep.subr.bf16.mxu0 0
  %1526 = vmatpush1.bf16.msra.mxu0 0
  %1527 = vmatprep.subr.bf16.mxu0 0
  %1528 = vmatpush1.bf16.msra.mxu0 0
  %1529 = vmatprep.subr.bf16.mxu0 0
  %1530 = vmatpush1.bf16.msra.mxu0 0
  %1531 = vmatprep.subr.bf16.mxu0 0
  %1532 = vmatpush1.bf16.msra.mxu0 0
  %1533 = vmatprep.subr.bf16.mxu0 0
  %1534 = vmatpush1.bf16.msra.mxu0 0
  %1535 = vmatprep.subr.bf16.mxu0 0
  %1536 = vmatpush1.bf16.msra.mxu0 0
  %1537 = vmatprep.mubr.bf16.mxu0 0
  %1538 = vmatmul.mubr.bf16.gmra.mrb[0].mxu0 %v1271
  %v1539 = vpop.f32.mrb[0].mxu0
  %v1540 = vadd.f32 0.0, %v1539
  %v1541 = vpop.f32.mrb[0].mxu0
  %v1542 = vadd.f32 0.0, %v1541
  %v1543 = vpop.f32.mrb[0].mxu0
  %v1544 = vpop.f32.mrb[0].mxu0
  %1545 = vdwg.mxu0
  %v1546 = vadd.f32 %v1267, %v1499
  %v1547 = vadd.f32 %v1268, %v1501
  %v1548 = vadd.f32 %v1269, %v1540
  %v1549 = vadd.f32 %v1270, %v1542
  %v1550 = vxor.u32 %v1546, 2147483648
  %v1551 = vxor.u32 %v1547, 2147483648
  %v1552 = vxor.u32 %v1548, 2147483648
  %v1553 = vmul.f32 %v1550, 1.442695
  %v1554 = vpow.pop %v1553
  %v1555 = vmul.f32 %v1551, 1.442695
  %v1556 = vpow.pop %v1555
  %v1557 = vmul.f32 %v1552, 1.442695
  %v1558 = vpow.pop %v1557
  %v1559 = vadd.f32 %v1554, 1.0
  %v1560 = vadd.f32 %v1556, 1.0
  %v1561 = vadd.f32 %v1558, 1.0
  %v1562 = vrcp.pop %v1559
  %v1563 = vmul.f32 1.0, %v1562
  %v1564 = vrcp.pop %v1560
  %v1565 = vmul.f32 1.0, %v1564
  %v1566 = vrcp.pop %v1561
  %v1567 = vmul.f32 1.0, %v1566
  %v1568 = vtanh.pop %v1549
  %v1569 = vmul.f32 %v1565, %v1261
  %v1570 = vmul.f32 %v1563, %v1568
  %v1571 = vadd.f32 %v1569, %v1570
  %v1572 = vtanh.pop %v1571
  %v1573 = vmul.f32 %v1567, %v1572
  %s1574 = scalar_lea.vmem %s4, 32
  %1575 = vst [vmem:[%s1574] sm:$0xff] %v1573
  %s1576 = scalar_lea.vmem %s0, 160
  %v1577 = vld [vmem:[%s1576] sm:$0xff]
  %v1578 = vld [vmem:[%s1576 + $0x8] sm:$0xff]
  %v1579 = vld [vmem:[%s1576 + $0x10] sm:$0xff]
  %v1580 = vld [vmem:[%s1576 + $0x18] sm:$0xff]
  %v1581 = vpack.c.bf16 %v1573, %v1573
  %v1582 = vld [vmem:[%s1] sm:$0xff]
  %v1583 = vld [vmem:[%s1 + $0x8] sm:$0xff]
  %v1584 = vld [vmem:[%s1 + $0x10] sm:$0xff]
  %v1585 = vld [vmem:[%s1 + $0x18] sm:$0xff]
  %v1586 = vld [vmem:[%s1 + $0x20] sm:$0xff]
  %v1587 = vld [vmem:[%s1 + $0x28] sm:$0xff]
  %v1588 = vld [vmem:[%s1 + $0x30] sm:$0xff]
  %v1589 = vld [vmem:[%s1 + $0x38] sm:$0xff]
  %v1590 = vld [vmem:[%s1 + $0x40] sm:$0xff]
  %v1591 = vld [vmem:[%s1 + $0x48] sm:$0xff]
  %v1592 = vld [vmem:[%s1 + $0x50] sm:$0xff]
  %v1593 = vld [vmem:[%s1 + $0x58] sm:$0xff]
  %v1594 = vld [vmem:[%s1 + $0x60] sm:$0xff]
  %v1595 = vld [vmem:[%s1 + $0x68] sm:$0xff]
  %v1596 = vld [vmem:[%s1 + $0x70] sm:$0xff]
  %v1597 = vld [vmem:[%s1 + $0x78] sm:$0xff]
  %v1598 = vld [vmem:[%s1 + $0x80] sm:$0xff]
  %v1599 = vld [vmem:[%s1 + $0x88] sm:$0xff]
  %v1600 = vld [vmem:[%s1 + $0x90] sm:$0xff]
  %v1601 = vld [vmem:[%s1 + $0x98] sm:$0xff]
  %v1602 = vld [vmem:[%s1 + $0xa0] sm:$0xff]
  %v1603 = vld [vmem:[%s1 + $0xa8] sm:$0xff]
  %v1604 = vld [vmem:[%s1 + $0xb0] sm:$0xff]
  %v1605 = vld [vmem:[%s1 + $0xb8] sm:$0xff]
  %v1606 = vld [vmem:[%s1 + $0xc0] sm:$0xff]
  %v1607 = vld [vmem:[%s1 + $0xc8] sm:$0xff]
  %v1608 = vld [vmem:[%s1 + $0xd0] sm:$0xff]
  %v1609 = vld [vmem:[%s1 + $0xd8] sm:$0xff]
  %v1610 = vld [vmem:[%s1 + $0xe0] sm:$0xff]
  %v1611 = vld [vmem:[%s1 + $0xe8] sm:$0xff]
  %v1612 = vld [vmem:[%s1 + $0xf0] sm:$0xff]
  %v1613 = vld [vmem:[%s1 + $0xf8] sm:$0xff]
  %v1646 = vunpack.c.l.b16 %v1582
  %v1647 = vunpack.c.h.b16 %v1582
  %v1648 = vunpack.c.l.b16 %v1583
  %v1649 = vunpack.c.h.b16 %v1583
  %v1650 = vunpack.c.l.b16 %v1584
  %v1651 = vunpack.c.h.b16 %v1584
  %v1652 = vunpack.c.l.b16 %v1585
  %v1653 = vunpack.c.h.b16 %v1585
  %v1654 = vunpack.c.l.b16 %v1586
  %v1655 = vunpack.c.h.b16 %v1586
  %v1656 = vunpack.c.l.b16 %v1587
  %v1657 = vunpack.c.h.b16 %v1587
  %v1658 = vunpack.c.l.b16 %v1588
  %v1659 = vunpack.c.h.b16 %v1588
  %v1660 = vunpack.c.l.b16 %v1589
  %v1661 = vunpack.c.h.b16 %v1589
  %v1662 = vunpack.c.l.b16 %v1590
  %v1663 = vunpack.c.h.b16 %v1590
  %v1664 = vunpack.c.l.b16 %v1591
  %v1665 = vunpack.c.h.b16 %v1591
  %v1666 = vunpack.c.l.b16 %v1592
  %v1667 = vunpack.c.h.b16 %v1592
  %v1668 = vunpack.c.l.b16 %v1593
  %v1669 = vunpack.c.h.b16 %v1593
  %v1670 = vunpack.c.l.b16 %v1594
  %v1671 = vunpack.c.h.b16 %v1594
  %v1672 = vunpack.c.l.b16 %v1595
  %v1673 = vunpack.c.h.b16 %v1595
  %v1674 = vunpack.c.l.b16 %v1596
  %v1675 = vunpack.c.h.b16 %v1596
  %v1676 = vunpack.c.l.b16 %v1597
  %v1677 = vunpack.c.h.b16 %v1597
  %v1678 = vunpack.c.l.b16 %v1598
  %v1679 = vunpack.c.h.b16 %v1598
  %v1680 = vunpack.c.l.b16 %v1599
  %v1681 = vunpack.c.h.b16 %v1599
  %v1682 = vunpack.c.l.b16 %v1600
  %v1683 = vunpack.c.h.b16 %v1600
  %v1684 = vunpack.c.l.b16 %v1601
  %v1685 = vunpack.c.h.b16 %v1601
  %v1686 = vunpack.c.l.b16 %v1602
  %v1687 = vunpack.c.h.b16 %v1602
  %v1688 = vunpack.c.l.b16 %v1603
  %v1689 = vunpack.c.h.b16 %v1603
  %v1690 = vunpack.c.l.b16 %v1604
  %v1691 = vunpack.c.h.b16 %v1604
  %v1692 = vunpack.c.l.b16 %v1605
  %v1693 = vunpack.c.h.b16 %v1605
  %v1694 = vunpack.c.l.b16 %v1606
  %v1695 = vunpack.c.h.b16 %v1606
  %v1696 = vunpack.c.l.b16 %v1607
  %v1697 = vunpack.c.h.b16 %v1607
  %v1698 = vunpack.c.l.b16 %v1608
  %v1699 = vunpack.c.h.b16 %v1608
  %v1700 = vunpack.c.l.b16 %v1609
  %v1701 = vunpack.c.h.b16 %v1609
  %v1702 = vunpack.c.l.b16 %v1610
  %v1703 = vunpack.c.h.b16 %v1610
  %v1704 = vunpack.c.l.b16 %v1611
  %v1705 = vunpack.c.h.b16 %v1611
  %v1706 = vunpack.c.l.b16 %v1612
  %v1707 = vunpack.c.h.b16 %v1612
  %v1708 = vunpack.c.l.b16 %v1613
  %v1709 = vunpack.c.h.b16 %v1613
  %v1710 = vpack.c.b16 %v1650, %v1646
  %v1711 = vpack.c.b16 %v1651, %v1647
  %v1712 = vpack.c.b16 %v1652, %v1648
  %v1713 = vpack.c.b16 %v1653, %v1649
  %v1714 = vpack.c.b16 %v1658, %v1654
  %v1715 = vpack.c.b16 %v1659, %v1655
  %v1716 = vpack.c.b16 %v1660, %v1656
  %v1717 = vpack.c.b16 %v1661, %v1657
  %v1718 = vpack.c.b16 %v1666, %v1662
  %v1719 = vpack.c.b16 %v1667, %v1663
  %v1720 = vpack.c.b16 %v1668, %v1664
  %v1721 = vpack.c.b16 %v1669, %v1665
  %v1722 = vpack.c.b16 %v1674, %v1670
  %v1723 = vpack.c.b16 %v1675, %v1671
  %v1724 = vpack.c.b16 %v1676, %v1672
  %v1725 = vpack.c.b16 %v1677, %v1673
  %v1726 = vpack.c.b16 %v1682, %v1678
  %v1727 = vpack.c.b16 %v1683, %v1679
  %v1728 = vpack.c.b16 %v1684, %v1680
  %v1729 = vpack.c.b16 %v1685, %v1681
  %v1730 = vpack.c.b16 %v1690, %v1686
  %v1731 = vpack.c.b16 %v1691, %v1687
  %v1732 = vpack.c.b16 %v1692, %v1688
  %v1733 = vpack.c.b16 %v1693, %v1689
  %v1734 = vpack.c.b16 %v1698, %v1694
  %v1735 = vpack.c.b16 %v1699, %v1695
  %v1736 = vpack.c.b16 %v1700, %v1696
  %v1737 = vpack.c.b16 %v1701, %v1697
  %v1738 = vpack.c.b16 %v1706, %v1702
  %v1739 = vpack.c.b16 %v1707, %v1703
  %v1740 = vpack.c.b16 %v1708, %v1704
  %v1741 = vpack.c.b16 %v1709, %v1705
  %1774 = vmatprep.subr.bf16.mxu0 %v1711
  %1775 = vmatpush1.bf16.msra.mxu0 %v1710
  %1776 = vmatprep.subr.bf16.mxu0 %v1715
  %1777 = vmatpush1.bf16.msra.mxu0 %v1714
  %1778 = vmatprep.subr.bf16.mxu0 %v1719
  %1779 = vmatpush1.bf16.msra.mxu0 %v1718
  %1780 = vmatprep.subr.bf16.mxu0 %v1723
  %1781 = vmatpush1.bf16.msra.mxu0 %v1722
  %1782 = vmatprep.subr.bf16.mxu0 %v1727
  %1783 = vmatpush1.bf16.msra.mxu0 %v1726
  %1784 = vmatprep.subr.bf16.mxu0 %v1731
  %1785 = vmatpush1.bf16.msra.mxu0 %v1730
  %1786 = vmatprep.subr.bf16.mxu0 %v1735
  %1787 = vmatpush1.bf16.msra.mxu0 %v1734
  %1788 = vmatprep.subr.bf16.mxu0 %v1739
  %1789 = vmatpush1.bf16.msra.mxu0 %v1738
  %1790 = vmatprep.subr.bf16.mxu0 0
  %1791 = vmatpush1.bf16.msra.mxu0 0
  %1792 = vmatprep.subr.bf16.mxu0 0
  %1793 = vmatpush1.bf16.msra.mxu0 0
  %1794 = vmatprep.subr.bf16.mxu0 0
  %1795 = vmatpush1.bf16.msra.mxu0 0
  %1796 = vmatprep.subr.bf16.mxu0 0
  %1797 = vmatpush1.bf16.msra.mxu0 0
  %1798 = vmatprep.subr.bf16.mxu0 0
  %1799 = vmatpush1.bf16.msra.mxu0 0
  %1800 = vmatprep.subr.bf16.mxu0 0
  %1801 = vmatpush1.bf16.msra.mxu0 0
  %1802 = vmatprep.subr.bf16.mxu0 0
  %1803 = vmatpush1.bf16.msra.mxu0 0
  %1804 = vmatprep.subr.bf16.mxu0 0
  %1805 = vmatpush1.bf16.msra.mxu0 0
  %1806 = vmatprep.mubr.bf16.mxu0 0
  %1807 = vmatmul.mubr.bf16.gmra.mrb[0].mxu0 %v1581
  %v1808 = vpop.f32.mrb[0].mxu0
  %v1809 = vadd.f32 0.0, %v1808
  %v1810 = vpop.f32.mrb[0].mxu0
  %v1811 = vadd.f32 0.0, %v1810
  %v1812 = vpop.f32.mrb[0].mxu0
  %v1813 = vpop.f32.mrb[0].mxu0
  %1814 = vdwg.mxu0
  %1815 = vmatprep.subr.bf16.mxu0 %v1713
  %1816 = vmatpush1.bf16.msra.mxu0 %v1712
  %1817 = vmatprep.subr.bf16.mxu0 %v1717
  %1818 = vmatpush1.bf16.msra.mxu0 %v1716
  %1819 = vmatprep.subr.bf16.mxu0 %v1721
  %1820 = vmatpush1.bf16.msra.mxu0 %v1720
  %1821 = vmatprep.subr.bf16.mxu0 %v1725
  %1822 = vmatpush1.bf16.msra.mxu0 %v1724
  %1823 = vmatprep.subr.bf16.mxu0 %v1729
  %1824 = vmatpush1.bf16.msra.mxu0 %v1728
  %1825 = vmatprep.subr.bf16.mxu0 %v1733
  %1826 = vmatpush1.bf16.msra.mxu0 %v1732
  %1827 = vmatprep.subr.bf16.mxu0 %v1737
  %1828 = vmatpush1.bf16.msra.mxu0 %v1736
  %1829 = vmatprep.subr.bf16.mxu0 %v1741
  %1830 = vmatpush1.bf16.msra.mxu0 %v1740
  %1831 = vmatprep.subr.bf16.mxu0 0
  %1832 = vmatpush1.bf16.msra.mxu0 0
  %1833 = vmatprep.subr.bf16.mxu0 0
  %1834 = vmatpush1.bf16.msra.mxu0 0
  %1835 = vmatprep.subr.bf16.mxu0 0
  %1836 = vmatpush1.bf16.msra.mxu0 0
  %1837 = vmatprep.subr.bf16.mxu0 0
  %1838 = vmatpush1.bf16.msra.mxu0 0
  %1839 = vmatprep.subr.bf16.mxu0 0
  %1840 = vmatpush1.bf16.msra.mxu0 0
  %1841 = vmatprep.subr.bf16.mxu0 0
  %1842 = vmatpush1.bf16.msra.mxu0 0
  %1843 = vmatprep.subr.bf16.mxu0 0
  %1844 = vmatpush1.bf16.msra.mxu0 0
  %1845 = vmatprep.subr.bf16.mxu0 0
  %1846 = vmatpush1.bf16.msra.mxu0 0
  %1847 = vmatprep.mubr.bf16.mxu0 0
  %1848 = vmatmul.mubr.bf16.gmra.mrb[0].mxu0 %v1581
  %v1849 = vpop.f32.mrb[0].mxu0
  %v1850 = vadd.f32 0.0, %v1849
  %v1851 = vpop.f32.mrb[0].mxu0
  %v1852 = vadd.f32 0.0, %v1851
  %v1853 = vpop.f32.mrb[0].mxu0
  %v1854 = vpop.f32.mrb[0].mxu0
  %1855 = vdwg.mxu0
  %v1856 = vadd.f32 %v1577, %v1809
  %v1857 = vadd.f32 %v1578, %v1811
  %v1858 = vadd.f32 %v1579, %v1850
  %v1859 = vadd.f32 %v1580, %v1852
  %v1860 = vxor.u32 %v1856, 2147483648
  %v1861 = vxor.u32 %v1857, 2147483648
  %v1862 = vxor.u32 %v1858, 2147483648
  %v1863 = vmul.f32 %v1860, 1.442695
  %v1864 = vpow.pop %v1863
  %v1865 = vmul.f32 %v1861, 1.442695
  %v1866 = vpow.pop %v1865
  %v1867 = vmul.f32 %v1862, 1.442695
  %v1868 = vpow.pop %v1867
  %v1869 = vadd.f32 %v1864, 1.0
  %v1870 = vadd.f32 %v1866, 1.0
  %v1871 = vadd.f32 %v1868, 1.0
  %v1872 = vrcp.pop %v1869
  %v1873 = vmul.f32 1.0, %v1872
  %v1874 = vrcp.pop %v1870
  %v1875 = vmul.f32 1.0, %v1874
  %v1876 = vrcp.pop %v1871
  %v1877 = vmul.f32 1.0, %v1876
  %v1878 = vtanh.pop %v1859
  %v1879 = vmul.f32 %v1875, %v1571
  %v1880 = vmul.f32 %v1873, %v1878
  %v1881 = vadd.f32 %v1879, %v1880
  %v1882 = vtanh.pop %v1881
  %v1883 = vmul.f32 %v1877, %v1882
  %s1884 = scalar_lea.vmem %s4, 40
  %1885 = vst [vmem:[%s1884] sm:$0xff] %v1883
  %s1886 = scalar_lea.vmem %s0, 192
  %v1887 = vld [vmem:[%s1886] sm:$0xff]
  %v1888 = vld [vmem:[%s1886 + $0x8] sm:$0xff]
  %v1889 = vld [vmem:[%s1886 + $0x10] sm:$0xff]
  %v1890 = vld [vmem:[%s1886 + $0x18] sm:$0xff]
  %v1891 = vpack.c.bf16 %v1883, %v1883
  %v1892 = vld [vmem:[%s1] sm:$0xff]
  %v1893 = vld [vmem:[%s1 + $0x8] sm:$0xff]
  %v1894 = vld [vmem:[%s1 + $0x10] sm:$0xff]
  %v1895 = vld [vmem:[%s1 + $0x18] sm:$0xff]
  %v1896 = vld [vmem:[%s1 + $0x20] sm:$0xff]
  %v1897 = vld [vmem:[%s1 + $0x28] sm:$0xff]
  %v1898 = vld [vmem:[%s1 + $0x30] sm:$0xff]
  %v1899 = vld [vmem:[%s1 + $0x38] sm:$0xff]
  %v1900 = vld [vmem:[%s1 + $0x40] sm:$0xff]
  %v1901 = vld [vmem:[%s1 + $0x48] sm:$0xff]
  %v1902 = vld [vmem:[%s1 + $0x50] sm:$0xff]
  %v1903 = vld [vmem:[%s1 + $0x58] sm:$0xff]
  %v1904 = vld [vmem:[%s1 + $0x60] sm:$0xff]
  %v1905 = vld [vmem:[%s1 + $0x68] sm:$0xff]
  %v1906 = vld [vmem:[%s1 + $0x70] sm:$0xff]
  %v1907 = vld [vmem:[%s1 + $0x78] sm:$0xff]
  %v1908 = vld [vmem:[%s1 + $0x80] sm:$0xff]
  %v1909 = vld [vmem:[%s1 + $0x88] sm:$0xff]
  %v1910 = vld [vmem:[%s1 + $0x90] sm:$0xff]
  %v1911 = vld [vmem:[%s1 + $0x98] sm:$0xff]
  %v1912 = vld [vmem:[%s1 + $0xa0] sm:$0xff]
  %v1913 = vld [vmem:[%s1 + $0xa8] sm:$0xff]
  %v1914 = vld [vmem:[%s1 + $0xb0] sm:$0xff]
  %v1915 = vld [vmem:[%s1 + $0xb8] sm:$0xff]
  %v1916 = vld [vmem:[%s1 + $0xc0] sm:$0xff]
  %v1917 = vld [vmem:[%s1 + $0xc8] sm:$0xff]
  %v1918 = vld [vmem:[%s1 + $0xd0] sm:$0xff]
  %v1919 = vld [vmem:[%s1 + $0xd8] sm:$0xff]
  %v1920 = vld [vmem:[%s1 + $0xe0] sm:$0xff]
  %v1921 = vld [vmem:[%s1 + $0xe8] sm:$0xff]
  %v1922 = vld [vmem:[%s1 + $0xf0] sm:$0xff]
  %v1923 = vld [vmem:[%s1 + $0xf8] sm:$0xff]
  %v1956 = vunpack.c.l.b16 %v1892
  %v1957 = vunpack.c.h.b16 %v1892
  %v1958 = vunpack.c.l.b16 %v1893
  %v1959 = vunpack.c.h.b16 %v1893
  %v1960 = vunpack.c.l.b16 %v1894
  %v1961 = vunpack.c.h.b16 %v1894
  %v1962 = vunpack.c.l.b16 %v1895
  %v1963 = vunpack.c.h.b16 %v1895
  %v1964 = vunpack.c.l.b16 %v1896
  %v1965 = vunpack.c.h.b16 %v1896
  %v1966 = vunpack.c.l.b16 %v1897
  %v1967 = vunpack.c.h.b16 %v1897
  %v1968 = vunpack.c.l.b16 %v1898
  %v1969 = vunpack.c.h.b16 %v1898
  %v1970 = vunpack.c.l.b16 %v1899
  %v1971 = vunpack.c.h.b16 %v1899
  %v1972 = vunpack.c.l.b16 %v1900
  %v1973 = vunpack.c.h.b16 %v1900
  %v1974 = vunpack.c.l.b16 %v1901
  %v1975 = vunpack.c.h.b16 %v1901
  %v1976 = vunpack.c.l.b16 %v1902
  %v1977 = vunpack.c.h.b16 %v1902
  %v1978 = vunpack.c.l.b16 %v1903
  %v1979 = vunpack.c.h.b16 %v1903
  %v1980 = vunpack.c.l.b16 %v1904
  %v1981 = vunpack.c.h.b16 %v1904
  %v1982 = vunpack.c.l.b16 %v1905
  %v1983 = vunpack.c.h.b16 %v1905
  %v1984 = vunpack.c.l.b16 %v1906
  %v1985 = vunpack.c.h.b16 %v1906
  %v1986 = vunpack.c.l.b16 %v1907
  %v1987 = vunpack.c.h.b16 %v1907
  %v1988 = vunpack.c.l.b16 %v1908
  %v1989 = vunpack.c.h.b16 %v1908
  %v1990 = vunpack.c.l.b16 %v1909
  %v1991 = vunpack.c.h.b16 %v1909
  %v1992 = vunpack.c.l.b16 %v1910
  %v1993 = vunpack.c.h.b16 %v1910
  %v1994 = vunpack.c.l.b16 %v1911
  %v1995 = vunpack.c.h.b16 %v1911
  %v1996 = vunpack.c.l.b16 %v1912
  %v1997 = vunpack.c.h.b16 %v1912
  %v1998 = vunpack.c.l.b16 %v1913
  %v1999 = vunpack.c.h.b16 %v1913
  %v2000 = vunpack.c.l.b16 %v1914
  %v2001 = vunpack.c.h.b16 %v1914
  %v2002 = vunpack.c.l.b16 %v1915
  %v2003 = vunpack.c.h.b16 %v1915
  %v2004 = vunpack.c.l.b16 %v1916
  %v2005 = vunpack.c.h.b16 %v1916
  %v2006 = vunpack.c.l.b16 %v1917
  %v2007 = vunpack.c.h.b16 %v1917
  %v2008 = vunpack.c.l.b16 %v1918
  %v2009 = vunpack.c.h.b16 %v1918
  %v2010 = vunpack.c.l.b16 %v1919
  %v2011 = vunpack.c.h.b16 %v1919
  %v2012 = vunpack.c.l.b16 %v1920
  %v2013 = vunpack.c.h.b16 %v1920
  %v2014 = vunpack.c.l.b16 %v1921
  %v2015 = vunpack.c.h.b16 %v1921
  %v2016 = vunpack.c.l.b16 %v1922
  %v2017 = vunpack.c.h.b16 %v1922
  %v2018 = vunpack.c.l.b16 %v1923
  %v2019 = vunpack.c.h.b16 %v1923
  %v2020 = vpack.c.b16 %v1960, %v1956
  %v2021 = vpack.c.b16 %v1961, %v1957
  %v2022 = vpack.c.b16 %v1962, %v1958
  %v2023 = vpack.c.b16 %v1963, %v1959
  %v2024 = vpack.c.b16 %v1968, %v1964
  %v2025 = vpack.c.b16 %v1969, %v1965
  %v2026 = vpack.c.b16 %v1970, %v1966
  %v2027 = vpack.c.b16 %v1971, %v1967
  %v2028 = vpack.c.b16 %v1976, %v1972
  %v2029 = vpack.c.b16 %v1977, %v1973
  %v2030 = vpack.c.b16 %v1978, %v1974
  %v2031 = vpack.c.b16 %v1979, %v1975
  %v2032 = vpack.c.b16 %v1984, %v1980
  %v2033 = vpack.c.b16 %v1985, %v1981
  %v2034 = vpack.c.b16 %v1986, %v1982
  %v2035 = vpack.c.b16 %v1987, %v1983
  %v2036 = vpack.c.b16 %v1992, %v1988
  %v2037 = vpack.c.b16 %v1993, %v1989
  %v2038 = vpack.c.b16 %v1994, %v1990
  %v2039 = vpack.c.b16 %v1995, %v1991
  %v2040 = vpack.c.b16 %v2000, %v1996
  %v2041 = vpack.c.b16 %v2001, %v1997
  %v2042 = vpack.c.b16 %v2002, %v1998
  %v2043 = vpack.c.b16 %v2003, %v1999
  %v2044 = vpack.c.b16 %v2008, %v2004
  %v2045 = vpack.c.b16 %v2009, %v2005
  %v2046 = vpack.c.b16 %v2010, %v2006
  %v2047 = vpack.c.b16 %v2011, %v2007
  %v2048 = vpack.c.b16 %v2016, %v2012
  %v2049 = vpack.c.b16 %v2017, %v2013
  %v2050 = vpack.c.b16 %v2018, %v2014
  %v2051 = vpack.c.b16 %v2019, %v2015
  %2084 = vmatprep.subr.bf16.mxu0 %v2021
  %2085 = vmatpush1.bf16.msra.mxu0 %v2020
  %2086 = vmatprep.subr.bf16.mxu0 %v2025
  %2087 = vmatpush1.bf16.msra.mxu0 %v2024
  %2088 = vmatprep.subr.bf16.mxu0 %v2029
  %2089 = vmatpush1.bf16.msra.mxu0 %v2028
  %2090 = vmatprep.subr.bf16.mxu0 %v2033
  %2091 = vmatpush1.bf16.msra.mxu0 %v2032
  %2092 = vmatprep.subr.bf16.mxu0 %v2037
  %2093 = vmatpush1.bf16.msra.mxu0 %v2036
  %2094 = vmatprep.subr.bf16.mxu0 %v2041
  %2095 = vmatpush1.bf16.msra.mxu0 %v2040
  %2096 = vmatprep.subr.bf16.mxu0 %v2045
  %2097 = vmatpush1.bf16.msra.mxu0 %v2044
  %2098 = vmatprep.subr.bf16.mxu0 %v2049
  %2099 = vmatpush1.bf16.msra.mxu0 %v2048
  %2100 = vmatprep.subr.bf16.mxu0 0
  %2101 = vmatpush1.bf16.msra.mxu0 0
  %2102 = vmatprep.subr.bf16.mxu0 0
  %2103 = vmatpush1.bf16.msra.mxu0 0
  %2104 = vmatprep.subr.bf16.mxu0 0
  %2105 = vmatpush1.bf16.msra.mxu0 0
  %2106 = vmatprep.subr.bf16.mxu0 0
  %2107 = vmatpush1.bf16.msra.mxu0 0
  %2108 = vmatprep.subr.bf16.mxu0 0
  %2109 = vmatpush1.bf16.msra.mxu0 0
  %2110 = vmatprep.subr.bf16.mxu0 0
  %2111 = vmatpush1.bf16.msra.mxu0 0
  %2112 = vmatprep.subr.bf16.mxu0 0
  %2113 = vmatpush1.bf16.msra.mxu0 0
  %2114 = vmatprep.subr.bf16.mxu0 0
  %2115 = vmatpush1.bf16.msra.mxu0 0
  %2116 = vmatprep.mubr.bf16.mxu0 0
  %2117 = vmatmul.mubr.bf16.gmra.mrb[0].mxu0 %v1891
  %v2118 = vpop.f32.mrb[0].mxu0
  %v2119 = vadd.f32 0.0, %v2118
  %v2120 = vpop.f32.mrb[0].mxu0
  %v2121 = vadd.f32 0.0, %v2120
  %v2122 = vpop.f32.mrb[0].mxu0
  %v2123 = vpop.f32.mrb[0].mxu0
  %2124 = vdwg.mxu0
  %2125 = vmatprep.subr.bf16.mxu0 %v2023
  %2126 = vmatpush1.bf16.msra.mxu0 %v2022
  %2127 = vmatprep.subr.bf16.mxu0 %v2027
  %2128 = vmatpush1.bf16.msra.mxu0 %v2026
  %2129 = vmatprep.subr.bf16.mxu0 %v2031
  %2130 = vmatpush1.bf16.msra.mxu0 %v2030
  %2131 = vmatprep.subr.bf16.mxu0 %v2035
  %2132 = vmatpush1.bf16.msra.mxu0 %v2034
  %2133 = vmatprep.subr.bf16.mxu0 %v2039
  %2134 = vmatpush1.bf16.msra.mxu0 %v2038
  %2135 = vmatprep.subr.bf16.mxu0 %v2043
  %2136 = vmatpush1.bf16.msra.mxu0 %v2042
  %2137 = vmatprep.subr.bf16.mxu0 %v2047
  %2138 = vmatpush1.bf16.msra.mxu0 %v2046
  %2139 = vmatprep.subr.bf16.mxu0 %v2051
  %2140 = vmatpush1.bf16.msra.mxu0 %v2050
  %2141 = vmatprep.subr.bf16.mxu0 0
  %2142 = vmatpush1.bf16.msra.mxu0 0
  %2143 = vmatprep.subr.bf16.mxu0 0
  %2144 = vmatpush1.bf16.msra.mxu0 0
  %2145 = vmatprep.subr.bf16.mxu0 0
  %2146 = vmatpush1.bf16.msra.mxu0 0
  %2147 = vmatprep.subr.bf16.mxu0 0
  %2148 = vmatpush1.bf16.msra.mxu0 0
  %2149 = vmatprep.subr.bf16.mxu0 0
  %2150 = vmatpush1.bf16.msra.mxu0 0
  %2151 = vmatprep.subr.bf16.mxu0 0
  %2152 = vmatpush1.bf16.msra.mxu0 0
  %2153 = vmatprep.subr.bf16.mxu0 0
  %2154 = vmatpush1.bf16.msra.mxu0 0
  %2155 = vmatprep.subr.bf16.mxu0 0
  %2156 = vmatpush1.bf16.msra.mxu0 0
  %2157 = vmatprep.mubr.bf16.mxu0 0
  %2158 = vmatmul.mubr.bf16.gmra.mrb[0].mxu0 %v1891
  %v2159 = vpop.f32.mrb[0].mxu0
  %v2160 = vadd.f32 0.0, %v2159
  %v2161 = vpop.f32.mrb[0].mxu0
  %v2162 = vadd.f32 0.0, %v2161
  %v2163 = vpop.f32.mrb[0].mxu0
  %v2164 = vpop.f32.mrb[0].mxu0
  %2165 = vdwg.mxu0
  %v2166 = vadd.f32 %v1887, %v2119
  %v2167 = vadd.f32 %v1888, %v2121
  %v2168 = vadd.f32 %v1889, %v2160
  %v2169 = vadd.f32 %v1890, %v2162
  %v2170 = vxor.u32 %v2166, 2147483648
  %v2171 = vxor.u32 %v2167, 2147483648
  %v2172 = vxor.u32 %v2168, 2147483648
  %v2173 = vmul.f32 %v2170, 1.442695
  %v2174 = vpow.pop %v2173
  %v2175 = vmul.f32 %v2171, 1.442695
  %v2176 = vpow.pop %v2175
  %v2177 = vmul.f32 %v2172, 1.442695
  %v2178 = vpow.pop %v2177
  %v2179 = vadd.f32 %v2174, 1.0
  %v2180 = vadd.f32 %v2176, 1.0
  %v2181 = vadd.f32 %v2178, 1.0
  %v2182 = vrcp.pop %v2179
  %v2183 = vmul.f32 1.0, %v2182
  %v2184 = vrcp.pop %v2180
  %v2185 = vmul.f32 1.0, %v2184
  %v2186 = vrcp.pop %v2181
  %v2187 = vmul.f32 1.0, %v2186
  %v2188 = vtanh.pop %v2169
  %v2189 = vmul.f32 %v2185, %v1881
  %v2190 = vmul.f32 %v2183, %v2188
  %v2191 = vadd.f32 %v2189, %v2190
  %v2192 = vtanh.pop %v2191
  %v2193 = vmul.f32 %v2187, %v2192
  %s2194 = scalar_lea.vmem %s4, 48
  %2195 = vst [vmem:[%s2194] sm:$0xff] %v2193
  %2196 = vst [vmem:[#allocation2] sm:$0xff] %v2193
  %2197 = vst [vmem:[#allocation3] sm:$0xff] %v2191
  // Predicated region
  $region22: #{forward.10} parent=0 // pred_check
    _
  $region23: #{forward.10} parent=0 // pred_check_branch
    %2199 = sbr.rel (0) target = $region25
  $region24: #{forward.10} parent=0 // pred_region
    _
  $region25: #{forward.10} parent=0 // pred_fallthru
    _
  // Predicated region
  $region26: #{forward.10} parent=0 // pred_check
    _
  $region27: #{forward.10} parent=0 // pred_check_branch
    %2201 = sbr.rel (0) target = $region29
  $region28: #{forward.10} parent=0 // pred_region
    _
  $region29: #{forward.10} parent=0 // pred_fallthru
    _

</llo_original>
